<compile_context>
chip_gen: v7x
topology: tpu7x:2x2x1
jax: 0.10.0
libtpu: 0.0.40
codegen_flags: <defaults>
</compile_context>

<pallas_src>
import functools

import jax
import jax.numpy as jnp
from jax import lax
from jax.experimental import pallas as pl
from jax.experimental.pallas import tpu as pltpu


def _fused_kernel(x_ref, w1_ref, w2_ref, w3_ref, scale_ref, bias_ref, mask_ref,
                  o_ref, act_ref, stack_ref, *, Wp):
    # x_ref    : (9*Cin, M) bf16  layer-1 im2col (taps*channels on sublanes)
    # w1_ref   : (F, 9*Cin) bf16
    # w2_ref   : (F, 9*F)   bf16
    # w3_ref   : (Co, 9*F)  bf16
    # scale_ref: (F, 1) f32 folded BN scale     bias_ref: (F, 1) f32
    # mask_ref : (1, M) f32 1.0 on real pixels, 0.0 on junk/inter-batch lanes
    # o_ref    : (Co, M) f32 lane-dense output slab
    # act_ref  : (F, L) bf16 padded activation slab, L = M + 2*(Wp+1)
    # stack_ref: (9*F, M) bf16 im2col tap stack for layers 2/3
    M = x_ref.shape[-1]             # flattened padded-row spatial extent (lanes)
    F = w2_ref.shape[0]             # hidden features (64)

    mask = mask_ref[...]            # (1, M)

    # Halo lanes (never touched by the masked activation store) must be zero.
    act_ref[...] = jnp.zeros_like(act_ref)

    def conv_from_act(w_ref_):
        # Build the 9-tap im2col slab so the 3x3 conv is ONE matmul, K = 9*F.
        for t in range(9):
            dy, dx = divmod(t, 3)
            off = dy * Wp + dx                       # static lane offset
            stack_ref[t * F:(t + 1) * F, :] = act_ref[:, pl.ds(off, M)]
        return jnp.dot(w_ref_[...], stack_ref[...],
                       preferred_element_type=jnp.float32)

    def store_act(a_f32):
        # Masked activation written at lane offset Wp+1 becomes the next
        # layer's zero-padded input (junk lanes == padding columns/rows).
        act_ref[:, pl.ds(Wp + 1, M)] = (a_f32 * mask).astype(act_ref.dtype)

    # layer 1: Conv(Cin -> F) as a single im2col matmul (K = 9*Cin) + ReLU
    acc1 = jnp.dot(w1_ref[...], x_ref[...], preferred_element_type=jnp.float32)
    store_act(jnp.maximum(acc1, 0.0))

    # layer 2: Conv(F -> F) + folded BatchNorm + ReLU
    acc2 = conv_from_act(w2_ref) * scale_ref[...] + bias_ref[...]
    store_act(jnp.maximum(acc2, 0.0))

    # layer 3: Conv(F -> Co), no activation; lane-dense (Co, M) store
    o_ref[...] = conv_from_act(w3_ref).astype(o_ref.dtype)


def _hwio_to_mat(w_hwio, dtype=jnp.bfloat16):
    """(3,3,Cin,Cout) HWIO -> (Cout, 9*Cin) with K index = (dy*3+dx)*Cin + c."""
    co = w_hwio.shape[-1]
    return jnp.transpose(w_hwio, (3, 0, 1, 2)).reshape(co, -1).astype(dtype)


def estimation_direct_forward(x_nchw, params):
    """Fused Pallas forward pass. Input/output are NCHW like the PyTorch module."""
    N, Cin, H, W = x_nchw.shape
    Wp = W + 2
    R = N * (H + 2)                  # padded rows of the batch-stacked super image
    M = (R - 2) * Wp                 # flattened output span (lanes)
    L = R * Wp + 2                   # padded activation slab length (+2 lanes slack)
    F = params["w1"].shape[-1]
    Co = params["w3"].shape[-1]

    # ---- wrapper-side layout plumbing (all tiny tensors) ----
    # Batch-stacked padded super image, then layer-1 im2col: (9*Cin, M) bf16.
    xp = jnp.pad(x_nchw.astype(jnp.float32), ((0, 0), (0, 0), (1, 1), (1, 1)))
    xsup = jnp.transpose(xp, (1, 0, 2, 3)).reshape(Cin, R * Wp)
    xf = jnp.pad(xsup, ((0, 0), (0, 2)))
    cols = jnp.concatenate(
        [xf[:, dy * Wp + dx: dy * Wp + dx + M]
         for dy in range(3) for dx in range(3)],
        axis=0).astype(jnp.bfloat16)                       # (9*Cin, M)

    w1m = _hwio_to_mat(params["w1"])                       # (F, 9*Cin)
    w2m = _hwio_to_mat(params["w2"])                       # (F, 9*F)
    w3m = _hwio_to_mat(params["w3"])                       # (Co, 9*F)
    scale = params["bn_scale"].astype(jnp.float32).reshape(F, 1)
    bias = params["bn_bias"].astype(jnp.float32).reshape(F, 1)

    # Mask: 1.0 on real output pixels, 0.0 on row-wrap junk columns and on the
    # inter-batch halo rows of the super image.
    f = jnp.arange(M)
    mask = (((f % Wp) < W) & (((f // Wp) % (H + 2)) < H)).astype(
        jnp.float32).reshape(1, M)

    kernel = functools.partial(_fused_kernel, Wp=Wp)
    out = pl.pallas_call(
        kernel,
        out_shape=jax.ShapeDtypeStruct((Co, M), jnp.float32),
        grid=(1,),
        in_specs=[
            pl.BlockSpec((9 * Cin, M), lambda i: (0, 0)),
            pl.BlockSpec((F, 9 * Cin), lambda i: (0, 0)),
            pl.BlockSpec((F, 9 * F), lambda i: (0, 0)),
            pl.BlockSpec((Co, 9 * F), lambda i: (0, 0)),
            pl.BlockSpec((F, 1), lambda i: (0, 0)),
            pl.BlockSpec((F, 1), lambda i: (0, 0)),
            pl.BlockSpec((1, M), lambda i: (0, 0)),
        ],
        out_specs=pl.BlockSpec((Co, M), lambda i: (0, 0)),
        scratch_shapes=[
            pltpu.VMEM((F, L), jnp.bfloat16),        # padded activation slab
            pltpu.VMEM((9 * F, M), jnp.bfloat16),    # im2col tap stack
        ],
        compiler_params=pltpu.CompilerParams(
            dimension_semantics=("arbitrary",)),
    )(cols, w1m, w2m, w3m, scale, bias, mask)

    # (Co, (R-2)*Wp) -> pad back to R rows -> split batch -> drop halos/junk.
    slab = jnp.pad(out.reshape(Co, R - 2, Wp), ((0, 0), (0, 2), (0, 0)))
    y = slab.reshape(Co, N, H + 2, Wp)[:, :, :H, :W]       # (Co, N, H, W)
    return jnp.transpose(y, (1, 0, 2, 3))                  # NCHW


def init_params(key, input_channels=4, output_channels=3, features=64):
    """Deterministic synthetic parameters (shapes from Estimation_direct.__init__)."""
    k1, k2, k3, k4, k5, k6, k7 = jax.random.split(key, 7)

    def conv_w(k, cin, cout):
        bound = 1.0 / jnp.sqrt(cin * 9.0)   # PyTorch-style fan_in scaling
        return jax.random.uniform(k, (3, 3, cin, cout), jnp.float32,
                                  minval=-bound, maxval=bound)

    w1 = conv_w(k1, input_channels, features)
    w2 = conv_w(k2, features, features)
    w3 = conv_w(k3, features, output_channels)

    # BatchNorm2d(features) params + running stats, folded to scale/bias.
    gamma = 1.0 + 0.1 * jax.random.normal(k4, (features,), jnp.float32)
    beta = 0.05 * jax.random.normal(k5, (features,), jnp.float32)
    running_mean = 0.02 * jax.random.normal(k6, (features,), jnp.float32)
    running_var = 1.0 + 0.1 * jnp.abs(jax.random.normal(k7, (features,),
                                                        jnp.float32))
    eps = 1e-5
    bn_scale = gamma / jnp.sqrt(running_var + eps)
    bn_bias = beta - running_mean * bn_scale
    return dict(w1=w1, w2=w2, w3=w3, bn_scale=bn_scale, bn_bias=bn_bias)


def reference_forward(x_nchw, params):
    """Pure-JAX reference with matching bf16 inputs / f32 accumulation."""
    x = jnp.transpose(x_nchw, (0, 2, 3, 1))

    def conv(h, w):
        return lax.conv_general_dilated(
            h.astype(jnp.bfloat16), w.astype(jnp.bfloat16),
            window_strides=(1, 1), padding="SAME",
            dimension_numbers=("NHWC", "HWIO", "NHWC"),
            preferred_element_type=jnp.float32)

    h = jax.nn.relu(conv(x, params["w1"]))
    h = jax.nn.relu(conv(h, params["w2"]) * params["bn_scale"]
                    + params["bn_bias"])
    y = conv(h, params["w3"])
    return jnp.transpose(y, (0, 3, 1, 2))


if __name__ == "__main__":
    key = jax.random.PRNGKey(0)
    kx, kp = jax.random.split(key)

    N, C, H, W = 2, 4, 16, 16
    x = jax.random.normal(kx, (N, C, H, W), jnp.float32)
    params = init_params(kp, input_channels=C, output_channels=3, features=64)

    out = jax.block_until_ready(estimation_direct_forward(x, params))
    ref = jax.block_until_ready(reference_forward(x, params))

    assert out.shape == (N, 3, H, W), out.shape
    max_err = float(jnp.max(jnp.abs(out - ref)))
    assert jnp.allclose(out, ref, atol=2e-2, rtol=2e-2), max_err

    print("KERNEL_OK")
</pallas_src>

<mosaic_0001>
module attributes {stable_mosaic.version = 11 : i64} {
  func.func @_fused_kernel(%arg0: i32, %arg1: memref<36x612xbf16, #tpu.memory_space<vmem>>, %arg2: memref<64x36xbf16, #tpu.memory_space<vmem>>, %arg3: memref<64x576xbf16, #tpu.memory_space<vmem>>, %arg4: memref<3x576xbf16, #tpu.memory_space<vmem>>, %arg5: memref<64x1xf32, #tpu.memory_space<vmem>>, %arg6: memref<64x1xf32, #tpu.memory_space<vmem>>, %arg7: memref<1x612xf32, #tpu.memory_space<vmem>>, %arg8: memref<3x612xf32, #tpu.memory_space<vmem>>, %arg9: memref<64x650xbf16, #tpu.memory_space<vmem>>, %arg10: memref<576x612xbf16, #tpu.memory_space<vmem>>) attributes {dimension_semantics = [#tpu.dimension_semantics<arbitrary>], iteration_bounds = array<i64: 1>, scalar_prefetch = 0 : i64, scratch_operands = 2 : i64, tpu.core_type = #tpu.core_type<tc>, window_params = [{pipeline_mode = #tpu.pipeline_mode<synchronous>, transform_indices = @transform_0, window_bounds = array<i64: 36, 612>}, {pipeline_mode = #tpu.pipeline_mode<synchronous>, transform_indices = @transform_1, window_bounds = array<i64: 64, 36>}, {pipeline_mode = #tpu.pipeline_mode<synchronous>, transform_indices = @transform_2, window_bounds = array<i64: 64, 576>}, {pipeline_mode = #tpu.pipeline_mode<synchronous>, transform_indices = @transform_3, window_bounds = array<i64: 3, 576>}, {pipeline_mode = #tpu.pipeline_mode<synchronous>, transform_indices = @transform_4, window_bounds = array<i64: 64, 1>}, {pipeline_mode = #tpu.pipeline_mode<synchronous>, transform_indices = @transform_5, window_bounds = array<i64: 64, 1>}, {pipeline_mode = #tpu.pipeline_mode<synchronous>, transform_indices = @transform_6, window_bounds = array<i64: 1, 612>}, {pipeline_mode = #tpu.pipeline_mode<synchronous>, transform_indices = @transform_7, window_bounds = array<i64: 3, 612>}]} {
    %c0 = arith.constant 0 : index
    %c0_0 = arith.constant 0 : index
    %0 = vector.load %arg7[%c0, %c0_0] : memref<1x612xf32, #tpu.memory_space<vmem>>, vector<1x612xf32>
    %cst = arith.constant 0.000000e+00 : bf16
    %1 = vector.broadcast %cst : bf16 to vector<64x650xbf16>
    %c0_1 = arith.constant 0 : index
    %c0_2 = arith.constant 0 : index
    %2 = vector.load %arg9[%c0_1, %c0_2] : memref<64x650xbf16, #tpu.memory_space<vmem>>, vector<64x650xbf16>
    tpu.vector_store %arg9[%c0_1, %c0_2], %1 {strides = array<i32>} : memref<64x650xbf16, #tpu.memory_space<vmem>>, vector<64x650xbf16>,
    %c0_3 = arith.constant 0 : index
    %c0_4 = arith.constant 0 : index
    %3 = vector.load %arg2[%c0_3, %c0_4] : memref<64x36xbf16, #tpu.memory_space<vmem>>, vector<64x36xbf16>
    %c0_5 = arith.constant 0 : index
    %c0_6 = arith.constant 0 : index
    %4 = vector.load %arg1[%c0_5, %c0_6] : memref<36x612xbf16, #tpu.memory_space<vmem>>, vector<36x612xbf16>
    %cst_7 = arith.constant dense<0.000000e+00> : vector<64x612xf32>
    %5 = tpu.matmul %3, %4, %cst_7 {dimension_numbers = #tpu.dot_dimension_numbers<[1], [0], [0], [1], [0, 0, 1, 1], [], []>} : vector<64x36xbf16>, vector<36x612xbf16>, vector<64x612xf32> -> vector<64x612xf32>
    %cst_8 = arith.constant 0.000000e+00 : f32
    %6 = vector.broadcast %cst_8 : f32 to vector<64x612xf32>
    %7 = arith.maximumf %5, %6 : vector<64x612xf32>
    %8 = vector.broadcast %0 : vector<1x612xf32> to vector<64x612xf32>
    %9 = arith.mulf %7, %8 : vector<64x612xf32>
    %10 = arith.truncf %9 : vector<64x612xf32> to vector<64x612xbf16>
    %c0_9 = arith.constant 0 : index
    %c19 = arith.constant 19 : index
    %11 = vector.load %arg9[%c0_9, %c19] : memref<64x650xbf16, #tpu.memory_space<vmem>>, vector<64x612xbf16>
    tpu.vector_store %arg9[%c0_9, %c19], %10 {strides = array<i32>} : memref<64x650xbf16, #tpu.memory_space<vmem>>, vector<64x612xbf16>,
    %c0_10 = arith.constant 0 : index
    %c0_11 = arith.constant 0 : index
    %12 = vector.load %arg9[%c0_10, %c0_11] : memref<64x650xbf16, #tpu.memory_space<vmem>>, vector<64x612xbf16>
    %c0_12 = arith.constant 0 : index
    %c0_13 = arith.constant 0 : index
    %13 = vector.load %arg10[%c0_12, %c0_13] : memref<576x612xbf16, #tpu.memory_space<vmem>>, vector<64x612xbf16>
    tpu.vector_store %arg10[%c0_12, %c0_13], %12 {strides = array<i32>} : memref<576x612xbf16, #tpu.memory_space<vmem>>, vector<64x612xbf16>,
    %c0_14 = arith.constant 0 : index
    %c1 = arith.constant 1 : index
    %14 = vector.load %arg9[%c0_14, %c1] : memref<64x650xbf16, #tpu.memory_space<vmem>>, vector<64x612xbf16>
    %c64 = arith.constant 64 : index
    %c0_15 = arith.constant 0 : index
    %15 = vector.load %arg10[%c64, %c0_15] : memref<576x612xbf16, #tpu.memory_space<vmem>>, vector<64x612xbf16>
    tpu.vector_store %arg10[%c64, %c0_15], %14 {strides = array<i32>} : memref<576x612xbf16, #tpu.memory_space<vmem>>, vector<64x612xbf16>,
    %c0_16 = arith.constant 0 : index
    %c2 = arith.constant 2 : index
    %16 = vector.load %arg9[%c0_16, %c2] : memref<64x650xbf16, #tpu.memory_space<vmem>>, vector<64x612xbf16>
    %c128 = arith.constant 128 : index
    %c0_17 = arith.constant 0 : index
    %17 = vector.load %arg10[%c128, %c0_17] : memref<576x612xbf16, #tpu.memory_space<vmem>>, vector<64x612xbf16>
    tpu.vector_store %arg10[%c128, %c0_17], %16 {strides = array<i32>} : memref<576x612xbf16, #tpu.memory_space<vmem>>, vector<64x612xbf16>,
    %c0_18 = arith.constant 0 : index
    %c18 = arith.constant 18 : index
    %18 = vector.load %arg9[%c0_18, %c18] : memref<64x650xbf16, #tpu.memory_space<vmem>>, vector<64x612xbf16>
    %c192 = arith.constant 192 : index
    %c0_19 = arith.constant 0 : index
    %19 = vector.load %arg10[%c192, %c0_19] : memref<576x612xbf16, #tpu.memory_space<vmem>>, vector<64x612xbf16>
    tpu.vector_store %arg10[%c192, %c0_19], %18 {strides = array<i32>} : memref<576x612xbf16, #tpu.memory_space<vmem>>, vector<64x612xbf16>,
    %c0_20 = arith.constant 0 : index
    %c19_21 = arith.constant 19 : index
    %20 = vector.load %arg9[%c0_20, %c19_21] : memref<64x650xbf16, #tpu.memory_space<vmem>>, vector<64x612xbf16>
    %c256 = arith.constant 256 : index
    %c0_22 = arith.constant 0 : index
    %21 = vector.load %arg10[%c256, %c0_22] : memref<576x612xbf16, #tpu.memory_space<vmem>>, vector<64x612xbf16>
    tpu.vector_store %arg10[%c256, %c0_22], %20 {strides = array<i32>} : memref<576x612xbf16, #tpu.memory_space<vmem>>, vector<64x612xbf16>,
    %c0_23 = arith.constant 0 : index
    %c20 = arith.constant 20 : index
    %22 = vector.load %arg9[%c0_23, %c20] : memref<64x650xbf16, #tpu.memory_space<vmem>>, vector<64x612xbf16>
    %c320 = arith.constant 320 : index
    %c0_24 = arith.constant 0 : index
    %23 = vector.load %arg10[%c320, %c0_24] : memref<576x612xbf16, #tpu.memory_space<vmem>>, vector<64x612xbf16>
    tpu.vector_store %arg10[%c320, %c0_24], %22 {strides = array<i32>} : memref<576x612xbf16, #tpu.memory_space<vmem>>, vector<64x612xbf16>,
    %c0_25 = arith.constant 0 : index
    %c36 = arith.constant 36 : index
    %24 = vector.load %arg9[%c0_25, %c36] : memref<64x650xbf16, #tpu.memory_space<vmem>>, vector<64x612xbf16>
    %c384 = arith.constant 384 : index
    %c0_26 = arith.constant 0 : index
    %25 = vector.load %arg10[%c384, %c0_26] : memref<576x612xbf16, #tpu.memory_space<vmem>>, vector<64x612xbf16>
    tpu.vector_store %arg10[%c384, %c0_26], %24 {strides = array<i32>} : memref<576x612xbf16, #tpu.memory_space<vmem>>, vector<64x612xbf16>,
    %c0_27 = arith.constant 0 : index
    %c37 = arith.constant 37 : index
    %26 = vector.load %arg9[%c0_27, %c37] : memref<64x650xbf16, #tpu.memory_space<vmem>>, vector<64x612xbf16>
    %c448 = arith.constant 448 : index
    %c0_28 = arith.constant 0 : index
    %27 = vector.load %arg10[%c448, %c0_28] : memref<576x612xbf16, #tpu.memory_space<vmem>>, vector<64x612xbf16>
    tpu.vector_store %arg10[%c448, %c0_28], %26 {strides = array<i32>} : memref<576x612xbf16, #tpu.memory_space<vmem>>, vector<64x612xbf16>,
    %c0_29 = arith.constant 0 : index
    %c38 = arith.constant 38 : index
    %28 = vector.load %arg9[%c0_29, %c38] : memref<64x650xbf16, #tpu.memory_space<vmem>>, vector<64x612xbf16>
    %c512 = arith.constant 512 : index
    %c0_30 = arith.constant 0 : index
    %29 = vector.load %arg10[%c512, %c0_30] : memref<576x612xbf16, #tpu.memory_space<vmem>>, vector<64x612xbf16>
    tpu.vector_store %arg10[%c512, %c0_30], %28 {strides = array<i32>} : memref<576x612xbf16, #tpu.memory_space<vmem>>, vector<64x612xbf16>,
    %c0_31 = arith.constant 0 : index
    %c0_32 = arith.constant 0 : index
    %30 = vector.load %arg3[%c0_31, %c0_32] : memref<64x576xbf16, #tpu.memory_space<vmem>>, vector<64x576xbf16>
    %c0_33 = arith.constant 0 : index
    %c0_34 = arith.constant 0 : index
    %31 = vector.load %arg10[%c0_33, %c0_34] : memref<576x612xbf16, #tpu.memory_space<vmem>>, vector<576x612xbf16>
    %cst_35 = arith.constant dense<0.000000e+00> : vector<64x612xf32>
    %32 = tpu.matmul %30, %31, %cst_35 {dimension_numbers = #tpu.dot_dimension_numbers<[1], [0], [0], [1], [0, 0, 1, 1], [], []>} : vector<64x576xbf16>, vector<576x612xbf16>, vector<64x612xf32> -> vector<64x612xf32>
    %c0_36 = arith.constant 0 : index
    %c0_37 = arith.constant 0 : index
    %33 = vector.load %arg5[%c0_36, %c0_37] : memref<64x1xf32, #tpu.memory_space<vmem>>, vector<64x1xf32>
    %34 = vector.broadcast %33 : vector<64x1xf32> to vector<64x612xf32>
    %35 = arith.mulf %32, %34 : vector<64x612xf32>
    %c0_38 = arith.constant 0 : index
    %c0_39 = arith.constant 0 : index
    %36 = vector.load %arg6[%c0_38, %c0_39] : memref<64x1xf32, #tpu.memory_space<vmem>>, vector<64x1xf32>
    %37 = vector.broadcast %36 : vector<64x1xf32> to vector<64x612xf32>
    %38 = arith.addf %35, %37 : vector<64x612xf32>
    %cst_40 = arith.constant 0.000000e+00 : f32
    %39 = vector.broadcast %cst_40 : f32 to vector<64x612xf32>
    %40 = arith.maximumf %38, %39 : vector<64x612xf32>
    %41 = vector.broadcast %0 : vector<1x612xf32> to vector<64x612xf32>
    %42 = arith.mulf %40, %41 : vector<64x612xf32>
    %43 = arith.truncf %42 : vector<64x612xf32> to vector<64x612xbf16>
    %c0_41 = arith.constant 0 : index
    %c19_42 = arith.constant 19 : index
    %44 = vector.load %arg9[%c0_41, %c19_42] : memref<64x650xbf16, #tpu.memory_space<vmem>>, vector<64x612xbf16>
    tpu.vector_store %arg9[%c0_41, %c19_42], %43 {strides = array<i32>} : memref<64x650xbf16, #tpu.memory_space<vmem>>, vector<64x612xbf16>,
    %c0_43 = arith.constant 0 : index
    %c0_44 = arith.constant 0 : index
    %45 = vector.load %arg9[%c0_43, %c0_44] : memref<64x650xbf16, #tpu.memory_space<vmem>>, vector<64x612xbf16>
    %c0_45 = arith.constant 0 : index
    %c0_46 = arith.constant 0 : index
    %46 = vector.load %arg10[%c0_45, %c0_46] : memref<576x612xbf16, #tpu.memory_space<vmem>>, vector<64x612xbf16>
    tpu.vector_store %arg10[%c0_45, %c0_46], %45 {strides = array<i32>} : memref<576x612xbf16, #tpu.memory_space<vmem>>, vector<64x612xbf16>,
    %c0_47 = arith.constant 0 : index
    %c1_48 = arith.constant 1 : index
    %47 = vector.load %arg9[%c0_47, %c1_48] : memref<64x650xbf16, #tpu.memory_space<vmem>>, vector<64x612xbf16>
    %c64_49 = arith.constant 64 : index
    %c0_50 = arith.constant 0 : index
    %48 = vector.load %arg10[%c64_49, %c0_50] : memref<576x612xbf16, #tpu.memory_space<vmem>>, vector<64x612xbf16>
    tpu.vector_store %arg10[%c64_49, %c0_50], %47 {strides = array<i32>} : memref<576x612xbf16, #tpu.memory_space<vmem>>, vector<64x612xbf16>,
    %c0_51 = arith.constant 0 : index
    %c2_52 = arith.constant 2 : index
    %49 = vector.load %arg9[%c0_51, %c2_52] : memref<64x650xbf16, #tpu.memory_space<vmem>>, vector<64x612xbf16>
    %c128_53 = arith.constant 128 : index
    %c0_54 = arith.constant 0 : index
    %50 = vector.load %arg10[%c128_53, %c0_54] : memref<576x612xbf16, #tpu.memory_space<vmem>>, vector<64x612xbf16>
    tpu.vector_store %arg10[%c128_53, %c0_54], %49 {strides = array<i32>} : memref<576x612xbf16, #tpu.memory_space<vmem>>, vector<64x612xbf16>,
    %c0_55 = arith.constant 0 : index
    %c18_56 = arith.constant 18 : index
    %51 = vector.load %arg9[%c0_55, %c18_56] : memref<64x650xbf16, #tpu.memory_space<vmem>>, vector<64x612xbf16>
    %c192_57 = arith.constant 192 : index
    %c0_58 = arith.constant 0 : index
    %52 = vector.load %arg10[%c192_57, %c0_58] : memref<576x612xbf16, #tpu.memory_space<vmem>>, vector<64x612xbf16>
    tpu.vector_store %arg10[%c192_57, %c0_58], %51 {strides = array<i32>} : memref<576x612xbf16, #tpu.memory_space<vmem>>, vector<64x612xbf16>,
    %c0_59 = arith.constant 0 : index
    %c19_60 = arith.constant 19 : index
    %53 = vector.load %arg9[%c0_59, %c19_60] : memref<64x650xbf16, #tpu.memory_space<vmem>>, vector<64x612xbf16>
    %c256_61 = arith.constant 256 : index
    %c0_62 = arith.constant 0 : index
    %54 = vector.load %arg10[%c256_61, %c0_62] : memref<576x612xbf16, #tpu.memory_space<vmem>>, vector<64x612xbf16>
    tpu.vector_store %arg10[%c256_61, %c0_62], %53 {strides = array<i32>} : memref<576x612xbf16, #tpu.memory_space<vmem>>, vector<64x612xbf16>,
    %c0_63 = arith.constant 0 : index
    %c20_64 = arith.constant 20 : index
    %55 = vector.load %arg9[%c0_63, %c20_64] : memref<64x650xbf16, #tpu.memory_space<vmem>>, vector<64x612xbf16>
    %c320_65 = arith.constant 320 : index
    %c0_66 = arith.constant 0 : index
    %56 = vector.load %arg10[%c320_65, %c0_66] : memref<576x612xbf16, #tpu.memory_space<vmem>>, vector<64x612xbf16>
    tpu.vector_store %arg10[%c320_65, %c0_66], %55 {strides = array<i32>} : memref<576x612xbf16, #tpu.memory_space<vmem>>, vector<64x612xbf16>,
    %c0_67 = arith.constant 0 : index
    %c36_68 = arith.constant 36 : index
    %57 = vector.load %arg9[%c0_67, %c36_68] : memref<64x650xbf16, #tpu.memory_space<vmem>>, vector<64x612xbf16>
    %c384_69 = arith.constant 384 : index
    %c0_70 = arith.constant 0 : index
    %58 = vector.load %arg10[%c384_69, %c0_70] : memref<576x612xbf16, #tpu.memory_space<vmem>>, vector<64x612xbf16>
    tpu.vector_store %arg10[%c384_69, %c0_70], %57 {strides = array<i32>} : memref<576x612xbf16, #tpu.memory_space<vmem>>, vector<64x612xbf16>,
    %c0_71 = arith.constant 0 : index
    %c37_72 = arith.constant 37 : index
    %59 = vector.load %arg9[%c0_71, %c37_72] : memref<64x650xbf16, #tpu.memory_space<vmem>>, vector<64x612xbf16>
    %c448_73 = arith.constant 448 : index
    %c0_74 = arith.constant 0 : index
    %60 = vector.load %arg10[%c448_73, %c0_74] : memref<576x612xbf16, #tpu.memory_space<vmem>>, vector<64x612xbf16>
    tpu.vector_store %arg10[%c448_73, %c0_74], %59 {strides = array<i32>} : memref<576x612xbf16, #tpu.memory_space<vmem>>, vector<64x612xbf16>,
    %c0_75 = arith.constant 0 : index
    %c38_76 = arith.constant 38 : index
    %61 = vector.load %arg9[%c0_75, %c38_76] : memref<64x650xbf16, #tpu.memory_space<vmem>>, vector<64x612xbf16>
    %c512_77 = arith.constant 512 : index
    %c0_78 = arith.constant 0 : index
    %62 = vector.load %arg10[%c512_77, %c0_78] : memref<576x612xbf16, #tpu.memory_space<vmem>>, vector<64x612xbf16>
    tpu.vector_store %arg10[%c512_77, %c0_78], %61 {strides = array<i32>} : memref<576x612xbf16, #tpu.memory_space<vmem>>, vector<64x612xbf16>,
    %c0_79 = arith.constant 0 : index
    %c0_80 = arith.constant 0 : index
    %63 = vector.load %arg4[%c0_79, %c0_80] : memref<3x576xbf16, #tpu.memory_space<vmem>>, vector<3x576xbf16>
    %c0_81 = arith.constant 0 : index
    %c0_82 = arith.constant 0 : index
    %64 = vector.load %arg10[%c0_81, %c0_82] : memref<576x612xbf16, #tpu.memory_space<vmem>>, vector<576x612xbf16>
    %cst_83 = arith.constant dense<0.000000e+00> : vector<3x612xf32>
    %65 = tpu.matmul %63, %64, %cst_83 {dimension_numbers = #tpu.dot_dimension_numbers<[1], [0], [0], [1], [0, 0, 1, 1], [], []>} : vector<3x576xbf16>, vector<576x612xbf16>, vector<3x612xf32> -> vector<3x612xf32>
    %c0_84 = arith.constant 0 : index
    %c0_85 = arith.constant 0 : index
    %66 = vector.load %arg8[%c0_84, %c0_85] : memref<3x612xf32, #tpu.memory_space<vmem>>, vector<3x612xf32>
    tpu.vector_store %arg8[%c0_84, %c0_85], %65 {strides = array<i32>} : memref<3x612xf32, #tpu.memory_space<vmem>>, vector<3x612xf32>,
    return
  }
  func.func @transform_0(%arg0: i32) -> (i32, i32) {
    %c0_i32 = arith.constant 0 : i32
    %c0_i32_0 = arith.constant 0 : i32
    %c0_i32_1 = arith.constant 0 : i32
    return %c0_i32, %c0_i32_0 : i32, i32
  }
  func.func @transform_1(%arg0: i32) -> (i32, i32) {
    %c0_i32 = arith.constant 0 : i32
    %c0_i32_0 = arith.constant 0 : i32
    %c0_i32_1 = arith.constant 0 : i32
    return %c0_i32, %c0_i32_0 : i32, i32
  }
  func.func @transform_2(%arg0: i32) -> (i32, i32) {
    %c0_i32 = arith.constant 0 : i32
    %c0_i32_0 = arith.constant 0 : i32
    %c0_i32_1 = arith.constant 0 : i32
    return %c0_i32, %c0_i32_0 : i32, i32
  }
  func.func @transform_3(%arg0: i32) -> (i32, i32) {
    %c0_i32 = arith.constant 0 : i32
    %c0_i32_0 = arith.constant 0 : i32
    %c0_i32_1 = arith.constant 0 : i32
    return %c0_i32, %c0_i32_0 : i32, i32
  }
  func.func @transform_4(%arg0: i32) -> (i32, i32) {
    %c0_i32 = arith.constant 0 : i32
    %c0_i32_0 = arith.constant 0 : i32
    %c0_i32_1 = arith.constant 0 : i32
    return %c0_i32, %c0_i32_0 : i32, i32
  }
  func.func @transform_5(%arg0: i32) -> (i32, i32) {
    %c0_i32 = arith.constant 0 : i32
    %c0_i32_0 = arith.constant 0 : i32
    %c0_i32_1 = arith.constant 0 : i32
    return %c0_i32, %c0_i32_0 : i32, i32
  }
  func.func @transform_6(%arg0: i32) -> (i32, i32) {
    %c0_i32 = arith.constant 0 : i32
    %c0_i32_0 = arith.constant 0 : i32
    %c0_i32_1 = arith.constant 0 : i32
    return %c0_i32, %c0_i32_0 : i32, i32
  }
  func.func @transform_7(%arg0: i32) -> (i32, i32) {
    %c0_i32 = arith.constant 0 : i32
    %c0_i32_0 = arith.constant 0 : i32
    %c0_i32_1 = arith.constant 0 : i32
    return %c0_i32, %c0_i32_0 : i32, i32
  }
}

</mosaic_0001>

<llo_original>
// kernel: tpu_custom_call.1
$region0: #{tpu_custom_call.1}
  #allocation0 [shape = 'u32[]', space=smem, size = 0x4, offset = 0x4, fixed_abs, tag = 'smem constant byte address 0x4 - core index']
  #allocation1 [shape = 'u32[144,128]{1,0:T(1,128)}', space=vmem, size = 0x12000, scoped, tag = 'internal scratch']
  #allocation2 [shape = 'bf16[64,650]{1,0:T(16,128)(2,1)}', space=vmem, size = 0x18000, scoped, tag = 'scratch operand']
  #allocation3 [shape = 'bf16[576,612]{1,0:T(16,128)(2,1)}', space=vmem, size = 0xb4000, scoped, tag = 'scratch operand']
  %s0 = inlined_call_operand.hbm [shape: bf16[36,612], index: 0, kind: input, shape index: {}]
  %s1 = inlined_call_operand.vmem [shape: bf16[64,36], index: 1, kind: input, shape index: {}]
  %s2 = inlined_call_operand.vmem [shape: bf16[64,576], index: 2, kind: input, shape index: {}]
  %s3 = inlined_call_operand.vmem [shape: bf16[3,576], index: 3, kind: input, shape index: {}]
  %s4 = inlined_call_operand.vmem [shape: f32[64,1], index: 4, kind: input, shape index: {}]
  %s5 = inlined_call_operand.vmem [shape: f32[64,1], index: 5, kind: input, shape index: {}]
  %s6 = inlined_call_operand.vmem [shape: f32[1,612], index: 6, kind: input, shape index: {}]
  %s7 = inlined_call_operand.hbm [shape: f32[3,612], index: 7, kind: output, shape index: {}]
  %s8 = sld [smem:[#allocation0]]
  $region42: #{tpu_custom_call.1} parent=0
    _
  %s10 = ssub.s32 1, %s8
  %s11 = scalar_select 0, %s10, %s8
  $region1: #{tpu_custom_call.1} parent=0
    #allocation4 [shape = 'u8[51200]{0}', space=vmem, size = 0xc800, scoped, tag = 'input window, operand 0, single buffered']
    #allocation5 [shape = 's32[1]{0}', space=sflag, size = 0x4, scoped, tag = 'scoped memory for tpu_custom_call.1']
    #allocation6 [shape = 's32[1]{0}', space=sflag, size = 0x4, scoped, tag = 'scoped memory for tpu_custom_call.1']
    #allocation7 [shape = 'u8[10240]{0}', space=vmem, size = 0x2800, scoped, tag = 'output window, operand 0, single buffered']
    %12 = vsyncpa [#allocation5], 0
    %13 = vsyncpa [#allocation6], 0
    // Predicated region
    $region2: #{tpu_custom_call.1} parent=1 // pred_check
      _
    $region3: #{tpu_custom_call.1} parent=1 // pred_check_branch
      %15 = sbr.rel (0) target = $region5
    $region4: #{tpu_custom_call.1} parent=1 // pred_region
      %s17 = ssub.s32 1600, 1600
      %18 = vsyncadd [#allocation5], %s17
      %s19 = sshll.u32 [#allocation4], 4
      %s20 = int_to_ptr.vmem [resolvable:$true] %s19
      %25 = dma.hbm_to_vmem [thread:$0]  %s0, 1600, %s20, [#allocation5], 320, 320, 20
    $region5: #{tpu_custom_call.1} parent=1 // pred_fallthru
      _
    // Predicated region
    $region6: #{tpu_custom_call.1} parent=1 // pred_check
      _
    $region7: #{tpu_custom_call.1} parent=1 // pred_check_branch
      %27 = sbr.rel (0) target = $region9
    $region8: #{tpu_custom_call.1} parent=1 // pred_region
      _
    $region9: #{tpu_custom_call.1} parent=1 // pred_fallthru
      _
    // Predicated region
    $region10: #{tpu_custom_call.1} parent=1 // pred_check
      _
    $region11: #{tpu_custom_call.1} parent=1 // pred_check_branch
      %29 = sbr.rel (0) target = $region13
    $region12: #{tpu_custom_call.1} parent=1 // pred_region
      _
    $region13: #{tpu_custom_call.1} parent=1 // pred_fallthru
      _
    // Predicated region
    $region14: #{tpu_custom_call.1} parent=1 // pred_check
      _
    $region15: #{tpu_custom_call.1} parent=1 // pred_check_branch
      %31 = sbr.rel (0) target = $region17
    $region16: #{tpu_custom_call.1} parent=1 // pred_region
      _
    $region17: #{tpu_custom_call.1} parent=1 // pred_fallthru
      _
    // Predicated region
    $region18: #{tpu_custom_call.1} parent=1 // pred_check
      _
    $region19: #{tpu_custom_call.1} parent=1 // pred_check_branch
      %33 = sbr.rel (0) target = $region21
    $region20: #{tpu_custom_call.1} parent=1 // pred_region
      _
    $region21: #{tpu_custom_call.1} parent=1 // pred_fallthru
      _
    // Predicated region
    $region22: #{tpu_custom_call.1} parent=1 // pred_check
      _
    $region23: #{tpu_custom_call.1} parent=1 // pred_check_branch
      %35 = sbr.rel (0) target = $region25
    $region24: #{tpu_custom_call.1} parent=1 // pred_region
      _
    $region25: #{tpu_custom_call.1} parent=1 // pred_fallthru
      _
    // Predicated region
    $region26: #{tpu_custom_call.1} parent=1 // pred_check
      _
    $region27: #{tpu_custom_call.1} parent=1 // pred_check_branch
      %37 = sbr.rel (0) target = $region29
    $region28: #{tpu_custom_call.1} parent=1 // pred_region
      _
    $region29: #{tpu_custom_call.1} parent=1 // pred_fallthru
      _
    // Predicated region
    $region30: #{tpu_custom_call.1} parent=1 // pred_check
      _
    $region31: #{tpu_custom_call.1} parent=1 // pred_check_branch
      %39 = sbr.rel (0) target = $region33
    $region32: #{tpu_custom_call.1} parent=1 // pred_region
      %40 = dma.done [#allocation5], 1600
    $region33: #{tpu_custom_call.1} parent=1 // pred_fallthru
      _
    %v42 = vld [vmem:[%s6] sm:$0x1f]
    %43 = vst [vmem:[#allocation2] sm:$0xff] 0
    %44 = vst [vmem:[#allocation2 + $0x8] sm:$0xff] 0
    %45 = vst [vmem:[#allocation2 + $0x10] sm:$0xff] 0
    %46 = vst [vmem:[#allocation2 + $0x18] sm:$0xff] 0
    %47 = vst [vmem:[#allocation2 + $0x20] sm:$0xff] 0
    %vm48 = vcmask 80896
    %49 = vst.msk [vmem:[#allocation2 + $0x28] sm:$0xff] %vm48, 0
    %50 = vst [vmem:[#allocation2 + $0x30] sm:$0xff] 0
    %51 = vst [vmem:[#allocation2 + $0x38] sm:$0xff] 0
    %52 = vst [vmem:[#allocation2 + $0x40] sm:$0xff] 0
    %53 = vst [vmem:[#allocation2 + $0x48] sm:$0xff] 0
    %54 = vst [vmem:[#allocation2 + $0x50] sm:$0xff] 0
    %55 = vst.msk [vmem:[#allocation2 + $0x58] sm:$0xff] %vm48, 0
    %56 = vst [vmem:[#allocation2 + $0x60] sm:$0xff] 0
    %57 = vst [vmem:[#allocation2 + $0x68] sm:$0xff] 0
    %58 = vst [vmem:[#allocation2 + $0x70] sm:$0xff] 0
    %59 = vst [vmem:[#allocation2 + $0x78] sm:$0xff] 0
    %60 = vst [vmem:[#allocation2 + $0x80] sm:$0xff] 0
    %61 = vst.msk [vmem:[#allocation2 + $0x88] sm:$0xff] %vm48, 0
    %62 = vst [vmem:[#allocation2 + $0x90] sm:$0xff] 0
    %63 = vst [vmem:[#allocation2 + $0x98] sm:$0xff] 0
    %64 = vst [vmem:[#allocation2 + $0xa0] sm:$0xff] 0
    %65 = vst [vmem:[#allocation2 + $0xa8] sm:$0xff] 0
    %66 = vst [vmem:[#allocation2 + $0xb0] sm:$0xff] 0
    %67 = vst.msk [vmem:[#allocation2 + $0xb8] sm:$0xff] %vm48, 0
    %v68 = vld [vmem:[%s1] sm:$0xf]
    %v69 = vld [vmem:[%s1 + $0x4] sm:$0xf]
    %v70 = vld [vmem:[%s1 + $0x8] sm:$0xf]
    %v71 = vld [vmem:[%s1 + $0xc] sm:$0xf]
    %v72 = vld [vmem:[%s1 + $0x10] sm:$0xf]
    %v73 = vld [vmem:[%s1 + $0x14] sm:$0xf]
    %v74 = vld [vmem:[%s1 + $0x18] sm:$0xf]
    %v75 = vld [vmem:[%s1 + $0x1c] sm:$0xf]
    %v76 = vld [vmem:[#allocation4] sm:$0xff]
    %v77 = vld [vmem:[#allocation4 + $0x8] sm:$0xff]
    %v78 = vld [vmem:[#allocation4 + $0x10] sm:$0xf]
    %v79 = vld [vmem:[#allocation4 + $0x14] sm:$0xff]
    %v80 = vld [vmem:[#allocation4 + $0x1c] sm:$0xff]
    %v81 = vld [vmem:[#allocation4 + $0x24] sm:$0xf]
    %v82 = vld [vmem:[#allocation4 + $0x28] sm:$0xff]
    %v83 = vld [vmem:[#allocation4 + $0x30] sm:$0xff]
    %v84 = vld [vmem:[#allocation4 + $0x38] sm:$0xf]
    %v85 = vld [vmem:[#allocation4 + $0x3c] sm:$0xff]
    %v86 = vld [vmem:[#allocation4 + $0x44] sm:$0xff]
    %v87 = vld [vmem:[#allocation4 + $0x4c] sm:$0xf]
    %v88 = vld [vmem:[#allocation4 + $0x50] sm:$0x33]
    %v89 = vld [vmem:[#allocation4 + $0x58] sm:$0x33]
    %v90 = vld [vmem:[#allocation4 + $0x60] sm:$0x3]
    %v99 = vunpack.c.l.b16 %v68
    %v100 = vunpack.c.l.b16 %v69
    %v101 = vunpack.c.l.b16 %v70
    %v102 = vunpack.c.l.b16 %v71
    %v103 = vunpack.c.l.b16 %v72
    %v104 = vunpack.c.l.b16 %v73
    %v105 = vunpack.c.l.b16 %v74
    %v106 = vunpack.c.l.b16 %v75
    %v107 = vpack.c.b16 %v100, %v99
    %v108 = vpack.c.b16 %v102, %v101
    %v109 = vpack.c.b16 %v104, %v103
    %v110 = vpack.c.b16 %v106, %v105
    %v126 = vunpack.c.l.b16 %v76
    %v127 = vunpack.c.h.b16 %v76
    %v128 = vunpack.c.l.b16 %v77
    %v129 = vunpack.c.h.b16 %v77
    %v130 = vunpack.c.l.b16 %v78
    %v131 = vunpack.c.l.b16 %v79
    %v132 = vunpack.c.h.b16 %v79
    %v133 = vunpack.c.l.b16 %v80
    %v134 = vunpack.c.h.b16 %v80
    %v135 = vunpack.c.l.b16 %v81
    %v136 = vunpack.c.l.b16 %v82
    %v137 = vunpack.c.h.b16 %v82
    %v138 = vunpack.c.l.b16 %v83
    %v139 = vunpack.c.h.b16 %v83
    %v140 = vunpack.c.l.b16 %v84
    %v141 = vunpack.c.l.b16 %v85
    %v142 = vunpack.c.h.b16 %v85
    %v143 = vunpack.c.l.b16 %v86
    %v144 = vunpack.c.h.b16 %v86
    %v145 = vunpack.c.l.b16 %v87
    %v146 = vunpack.c.l.b16 %v88
    %v147 = vunpack.c.h.b16 %v88
    %v148 = vunpack.c.l.b16 %v89
    %v149 = vunpack.c.h.b16 %v89
    %v150 = vunpack.c.l.b16 %v90
    %v151 = vpack.c.b16 %v131, %v126
    %v152 = vpack.c.b16 %v132, %v127
    %v153 = vpack.c.b16 %v133, %v128
    %v154 = vpack.c.b16 %v134, %v129
    %v155 = vpack.c.b16 %v135, %v130
    %v156 = vpack.c.b16 %v141, %v136
    %v157 = vpack.c.b16 %v142, %v137
    %v158 = vpack.c.b16 %v143, %v138
    %v159 = vpack.c.b16 %v144, %v139
    %v160 = vpack.c.b16 %v145, %v140
    %v161 = vpack.c.b16 %v146, %v146
    %v162 = vpack.c.b16 %v147, %v147
    %v163 = vpack.c.b16 %v148, %v148
    %v164 = vpack.c.b16 %v149, %v149
    %v165 = vpack.c.b16 %v150, %v150
    %vm176 = vcmask 293888
    %v178 = vsel %vm176, %v107, 0
    %v181 = vsel %vm176, %v108, 0
    %v184 = vsel %vm176, %v109, 0
    %v187 = vsel %vm176, %v110, 0
    %vm189 = vcmask 1041408
    %v191 = vsel %vm189, %v161, 0
    %v194 = vsel %vm189, %v162, 0
    %v197 = vsel %vm189, %v163, 0
    %v200 = vsel %vm189, %v164, 0
    %v203 = vsel %vm189, %v165, 0
    %205 = vmatprep.subr.bf16.mxu0 %v152
    %206 = vmatpush1.bf16.msra.mxu0 %v151
    %207 = vmatprep.subr.bf16.mxu0 %v157
    %208 = vmatpush1.bf16.msra.mxu0 %v156
    %209 = vmatprep.subr.bf16.mxu0 %v194
    %210 = vmatpush1.bf16.msra.mxu0 %v191
    %211 = vmatprep.subr.bf16.mxu0 0
    %212 = vmatpush1.bf16.msra.mxu0 0
    %213 = vmatprep.subr.bf16.mxu0 0
    %214 = vmatpush1.bf16.msra.mxu0 0
    %215 = vmatprep.subr.bf16.mxu0 0
    %216 = vmatpush1.bf16.msra.mxu0 0
    %217 = vmatprep.subr.bf16.mxu0 0
    %218 = vmatpush1.bf16.msra.mxu0 0
    %219 = vmatprep.subr.bf16.mxu0 0
    %220 = vmatpush1.bf16.msra.mxu0 0
    %221 = vmatprep.subr.bf16.mxu0 0
    %222 = vmatpush1.bf16.msra.mxu0 0
    %223 = vmatprep.subr.bf16.mxu0 0
    %224 = vmatpush1.bf16.msra.mxu0 0
    %225 = vmatprep.subr.bf16.mxu0 0
    %226 = vmatpush1.bf16.msra.mxu0 0
    %227 = vmatprep.subr.bf16.mxu0 0
    %228 = vmatpush1.bf16.msra.mxu0 0
    %229 = vmatprep.subr.bf16.mxu0 0
    %230 = vmatpush1.bf16.msra.mxu0 0
    %231 = vmatprep.subr.bf16.mxu0 0
    %232 = vmatpush1.bf16.msra.mxu0 0
    %233 = vmatprep.subr.bf16.mxu0 0
    %234 = vmatpush1.bf16.msra.mxu0 0
    %235 = vmatprep.subr.bf16.mxu0 0
    %236 = vmatpush1.bf16.msra.mxu0 0
    %237 = vmatprep.mubr.bf16.mxu0 0
    %238 = vmatmul.mubr.bf16.gmra.mrb[0].mxu0 %v178
    %v239 = vpop.f32.mrb[0].mxu0
    %v240 = vadd.f32 0.0, %v239
    %v241 = vpop.f32.mrb[0].mxu0
    %v242 = vadd.f32 0.0, %v241
    %v243 = vpop.f32.mrb[0].mxu0
    %v244 = vadd.f32 0.0, %v243
    %v245 = vpop.f32.mrb[0].mxu0
    %v246 = vadd.f32 0.0, %v245
    %247 = vmatprep.mubr.bf16.mxu0 0
    %248 = vmatmul.mubr.bf16.gmra.mrb[0].mxu0 %v181
    %v249 = vpop.f32.mrb[0].mxu0
    %v250 = vadd.f32 0.0, %v249
    %v251 = vpop.f32.mrb[0].mxu0
    %v252 = vadd.f32 0.0, %v251
    %v253 = vpop.f32.mrb[0].mxu0
    %v254 = vadd.f32 0.0, %v253
    %v255 = vpop.f32.mrb[0].mxu0
    %v256 = vadd.f32 0.0, %v255
    %257 = vmatprep.mubr.bf16.mxu0 0
    %258 = vmatmul.mubr.bf16.gmra.mrb[0].mxu0 %v184
    %v259 = vpop.f32.mrb[0].mxu0
    %v260 = vadd.f32 0.0, %v259
    %v261 = vpop.f32.mrb[0].mxu0
    %v262 = vadd.f32 0.0, %v261
    %v263 = vpop.f32.mrb[0].mxu0
    %v264 = vadd.f32 0.0, %v263
    %v265 = vpop.f32.mrb[0].mxu0
    %v266 = vadd.f32 0.0, %v265
    %267 = vmatprep.mubr.bf16.mxu0 0
    %268 = vmatmul.mubr.bf16.gmra.mrb[0].mxu0 %v187
    %v269 = vpop.f32.mrb[0].mxu0
    %v270 = vadd.f32 0.0, %v269
    %v271 = vpop.f32.mrb[0].mxu0
    %v272 = vadd.f32 0.0, %v271
    %v273 = vpop.f32.mrb[0].mxu0
    %v274 = vadd.f32 0.0, %v273
    %v275 = vpop.f32.mrb[0].mxu0
    %v276 = vadd.f32 0.0, %v275
    %277 = vdwg.mxu0
    %278 = vmatprep.subr.bf16.mxu0 %v154
    %279 = vmatpush1.bf16.msra.mxu0 %v153
    %280 = vmatprep.subr.bf16.mxu0 %v159
    %281 = vmatpush1.bf16.msra.mxu0 %v158
    %282 = vmatprep.subr.bf16.mxu0 %v200
    %283 = vmatpush1.bf16.msra.mxu0 %v197
    %284 = vmatprep.subr.bf16.mxu0 0
    %285 = vmatpush1.bf16.msra.mxu0 0
    %286 = vmatprep.subr.bf16.mxu0 0
    %287 = vmatpush1.bf16.msra.mxu0 0
    %288 = vmatprep.subr.bf16.mxu0 0
    %289 = vmatpush1.bf16.msra.mxu0 0
    %290 = vmatprep.subr.bf16.mxu0 0
    %291 = vmatpush1.bf16.msra.mxu0 0
    %292 = vmatprep.subr.bf16.mxu0 0
    %293 = vmatpush1.bf16.msra.mxu0 0
    %294 = vmatprep.subr.bf16.mxu0 0
    %295 = vmatpush1.bf16.msra.mxu0 0
    %296 = vmatprep.subr.bf16.mxu0 0
    %297 = vmatpush1.bf16.msra.mxu0 0
    %298 = vmatprep.subr.bf16.mxu0 0
    %299 = vmatpush1.bf16.msra.mxu0 0
    %300 = vmatprep.subr.bf16.mxu0 0
    %301 = vmatpush1.bf16.msra.mxu0 0
    %302 = vmatprep.subr.bf16.mxu0 0
    %303 = vmatpush1.bf16.msra.mxu0 0
    %304 = vmatprep.subr.bf16.mxu0 0
    %305 = vmatpush1.bf16.msra.mxu0 0
    %306 = vmatprep.subr.bf16.mxu0 0
    %307 = vmatpush1.bf16.msra.mxu0 0
    %308 = vmatprep.subr.bf16.mxu0 0
    %309 = vmatpush1.bf16.msra.mxu0 0
    %310 = vmatprep.mubr.bf16.mxu0 0
    %311 = vmatmul.mubr.bf16.gmra.mrb[0].mxu0 %v178
    %v312 = vpop.f32.mrb[0].mxu0
    %v313 = vadd.f32 0.0, %v312
    %v314 = vpop.f32.mrb[0].mxu0
    %v315 = vadd.f32 0.0, %v314
    %v316 = vpop.f32.mrb[0].mxu0
    %v317 = vadd.f32 0.0, %v316
    %v318 = vpop.f32.mrb[0].mxu0
    %v319 = vadd.f32 0.0, %v318
    %320 = vmatprep.mubr.bf16.mxu0 0
    %321 = vmatmul.mubr.bf16.gmra.mrb[0].mxu0 %v181
    %v322 = vpop.f32.mrb[0].mxu0
    %v323 = vadd.f32 0.0, %v322
    %v324 = vpop.f32.mrb[0].mxu0
    %v325 = vadd.f32 0.0, %v324
    %v326 = vpop.f32.mrb[0].mxu0
    %v327 = vadd.f32 0.0, %v326
    %v328 = vpop.f32.mrb[0].mxu0
    %v329 = vadd.f32 0.0, %v328
    %330 = vmatprep.mubr.bf16.mxu0 0
    %331 = vmatmul.mubr.bf16.gmra.mrb[0].mxu0 %v184
    %v332 = vpop.f32.mrb[0].mxu0
    %v333 = vadd.f32 0.0, %v332
    %v334 = vpop.f32.mrb[0].mxu0
    %v335 = vadd.f32 0.0, %v334
    %v336 = vpop.f32.mrb[0].mxu0
    %v337 = vadd.f32 0.0, %v336
    %v338 = vpop.f32.mrb[0].mxu0
    %v339 = vadd.f32 0.0, %v338
    %340 = vmatprep.mubr.bf16.mxu0 0
    %341 = vmatmul.mubr.bf16.gmra.mrb[0].mxu0 %v187
    %v342 = vpop.f32.mrb[0].mxu0
    %v343 = vadd.f32 0.0, %v342
    %v344 = vpop.f32.mrb[0].mxu0
    %v345 = vadd.f32 0.0, %v344
    %v346 = vpop.f32.mrb[0].mxu0
    %v347 = vadd.f32 0.0, %v346
    %v348 = vpop.f32.mrb[0].mxu0
    %v349 = vadd.f32 0.0, %v348
    %350 = vdwg.mxu0
    %351 = vmatprep.subr.bf16.mxu0 0
    %352 = vmatpush1.bf16.msra.mxu0 %v155
    %353 = vmatprep.subr.bf16.mxu0 0
    %354 = vmatpush1.bf16.msra.mxu0 %v160
    %355 = vmatprep.subr.bf16.mxu0 0
    %356 = vmatpush1.bf16.msra.mxu0 %v203
    %357 = vmatprep.subr.bf16.mxu0 0
    %358 = vmatpush1.bf16.msra.mxu0 0
    %359 = vmatprep.subr.bf16.mxu0 0
    %360 = vmatpush1.bf16.msra.mxu0 0
    %361 = vmatprep.subr.bf16.mxu0 0
    %362 = vmatpush1.bf16.msra.mxu0 0
    %363 = vmatprep.subr.bf16.mxu0 0
    %364 = vmatpush1.bf16.msra.mxu0 0
    %365 = vmatprep.subr.bf16.mxu0 0
    %366 = vmatpush1.bf16.msra.mxu0 0
    %367 = vmatprep.subr.bf16.mxu0 0
    %368 = vmatpush1.bf16.msra.mxu0 0
    %369 = vmatprep.subr.bf16.mxu0 0
    %370 = vmatpush1.bf16.msra.mxu0 0
    %371 = vmatprep.subr.bf16.mxu0 0
    %372 = vmatpush1.bf16.msra.mxu0 0
    %373 = vmatprep.subr.bf16.mxu0 0
    %374 = vmatpush1.bf16.msra.mxu0 0
    %375 = vmatprep.subr.bf16.mxu0 0
    %376 = vmatpush1.bf16.msra.mxu0 0
    %377 = vmatprep.subr.bf16.mxu0 0
    %378 = vmatpush1.bf16.msra.mxu0 0
    %379 = vmatprep.subr.bf16.mxu0 0
    %380 = vmatpush1.bf16.msra.mxu0 0
    %381 = vmatprep.subr.bf16.mxu0 0
    %382 = vmatpush1.bf16.msra.mxu0 0
    %383 = vmatprep.mubr.bf16.mxu0 0
    %384 = vmatmul.mubr.bf16.gmra.mrb[0].mxu0 %v178
    %v385 = vpop.f32.mrb[0].mxu0
    %v386 = vadd.f32 0.0, %v385
    %v387 = vpop.f32.mrb[0].mxu0
    %v388 = vpop.f32.mrb[0].mxu0
    %v389 = vadd.f32 0.0, %v388
    %v390 = vpop.f32.mrb[0].mxu0
    %391 = vmatprep.mubr.bf16.mxu0 0
    %392 = vmatmul.mubr.bf16.gmra.mrb[0].mxu0 %v181
    %v393 = vpop.f32.mrb[0].mxu0
    %v394 = vadd.f32 0.0, %v393
    %v395 = vpop.f32.mrb[0].mxu0
    %v396 = vpop.f32.mrb[0].mxu0
    %v397 = vadd.f32 0.0, %v396
    %v398 = vpop.f32.mrb[0].mxu0
    %399 = vmatprep.mubr.bf16.mxu0 0
    %400 = vmatmul.mubr.bf16.gmra.mrb[0].mxu0 %v184
    %v401 = vpop.f32.mrb[0].mxu0
    %v402 = vadd.f32 0.0, %v401
    %v403 = vpop.f32.mrb[0].mxu0
    %v404 = vpop.f32.mrb[0].mxu0
    %v405 = vadd.f32 0.0, %v404
    %v406 = vpop.f32.mrb[0].mxu0
    %407 = vmatprep.mubr.bf16.mxu0 0
    %408 = vmatmul.mubr.bf16.gmra.mrb[0].mxu0 %v187
    %v409 = vpop.f32.mrb[0].mxu0
    %v410 = vadd.f32 0.0, %v409
    %v411 = vpop.f32.mrb[0].mxu0
    %v412 = vpop.f32.mrb[0].mxu0
    %v413 = vadd.f32 0.0, %v412
    %v414 = vpop.f32.mrb[0].mxu0
    %415 = vdwg.mxu0
    %v416 = vmax.f32 %v240, 0.0
    %v417 = vmax.f32 %v242, 0.0
    %v418 = vmax.f32 %v313, 0.0
    %v419 = vmax.f32 %v315, 0.0
    %v420 = vmax.f32 %v386, 0.0
    %v421 = vmax.f32 %v244, 0.0
    %v422 = vmax.f32 %v246, 0.0
    %v423 = vmax.f32 %v317, 0.0
    %v424 = vmax.f32 %v319, 0.0
    %v425 = vmax.f32 %v389, 0.0
    %v426 = vmax.f32 %v250, 0.0
    %v427 = vmax.f32 %v252, 0.0
    %v428 = vmax.f32 %v323, 0.0
    %v429 = vmax.f32 %v325, 0.0
    %v430 = vmax.f32 %v394, 0.0
    %v431 = vmax.f32 %v254, 0.0
    %v432 = vmax.f32 %v256, 0.0
    %v433 = vmax.f32 %v327, 0.0
    %v434 = vmax.f32 %v329, 0.0
    %v435 = vmax.f32 %v397, 0.0
    %v436 = vmax.f32 %v260, 0.0
    %v437 = vmax.f32 %v262, 0.0
    %v438 = vmax.f32 %v333, 0.0
    %v439 = vmax.f32 %v335, 0.0
    %v440 = vmax.f32 %v402, 0.0
    %v441 = vmax.f32 %v264, 0.0
    %v442 = vmax.f32 %v266, 0.0
    %v443 = vmax.f32 %v337, 0.0
    %v444 = vmax.f32 %v339, 0.0
    %v445 = vmax.f32 %v405, 0.0
    %v446 = vmax.f32 %v270, 0.0
    %v447 = vmax.f32 %v272, 0.0
    %v448 = vmax.f32 %v343, 0.0
    %v449 = vmax.f32 %v345, 0.0
    %v450 = vmax.f32 %v410, 0.0
    %v451 = vmax.f32 %v274, 0.0
    %v452 = vmax.f32 %v276, 0.0
    %v453 = vmax.f32 %v347, 0.0
    %v454 = vmax.f32 %v349, 0.0
    %v455 = vmax.f32 %v413, 0.0
    %v457 = vlaneseq
    %v458 = vshrl.u32 %v457, 7
    %v459 = vsub.s32 0, %v458
    %v460 = vrot.slane %v42, %v459
    %v461 = vlaneseq
    %v462 = vshrl.u32 %v461, 7
    %v463 = vsub.s32 1, %v462
    %v464 = vrot.slane %v42, %v463
    %v465 = vlaneseq
    %v466 = vshrl.u32 %v465, 7
    %v467 = vsub.s32 2, %v466
    %v468 = vrot.slane %v42, %v467
    %v469 = vlaneseq
    %v470 = vshrl.u32 %v469, 7
    %v471 = vsub.s32 3, %v470
    %v472 = vrot.slane %v42, %v471
    %v473 = vlaneseq
    %v474 = vshrl.u32 %v473, 7
    %v475 = vsub.s32 4, %v474
    %v476 = vrot.slane %v42, %v475
    %v482 = vmul.f32 %v416, %v460
    %v483 = vmul.f32 %v417, %v464
    %v484 = vmul.f32 %v418, %v468
    %v485 = vmul.f32 %v419, %v472
    %v486 = vmul.f32 %v420, %v476
    %v487 = vmul.f32 %v421, %v460
    %v488 = vmul.f32 %v422, %v464
    %v489 = vmul.f32 %v423, %v468
    %v490 = vmul.f32 %v424, %v472
    %v491 = vmul.f32 %v425, %v476
    %v492 = vmul.f32 %v426, %v460
    %v493 = vmul.f32 %v427, %v464
    %v494 = vmul.f32 %v428, %v468
    %v495 = vmul.f32 %v429, %v472
    %v496 = vmul.f32 %v430, %v476
    %v497 = vmul.f32 %v431, %v460
    %v498 = vmul.f32 %v432, %v464
    %v499 = vmul.f32 %v433, %v468
    %v500 = vmul.f32 %v434, %v472
    %v501 = vmul.f32 %v435, %v476
    %v502 = vmul.f32 %v436, %v460
    %v503 = vmul.f32 %v437, %v464
    %v504 = vmul.f32 %v438, %v468
    %v505 = vmul.f32 %v439, %v472
    %v506 = vmul.f32 %v440, %v476
    %v507 = vmul.f32 %v441, %v460
    %v508 = vmul.f32 %v442, %v464
    %v509 = vmul.f32 %v443, %v468
    %v510 = vmul.f32 %v444, %v472
    %v511 = vmul.f32 %v445, %v476
    %v512 = vmul.f32 %v446, %v460
    %v513 = vmul.f32 %v447, %v464
    %v514 = vmul.f32 %v448, %v468
    %v515 = vmul.f32 %v449, %v472
    %v516 = vmul.f32 %v450, %v476
    %v517 = vmul.f32 %v451, %v460
    %v518 = vmul.f32 %v452, %v464
    %v519 = vmul.f32 %v453, %v468
    %v520 = vmul.f32 %v454, %v472
    %v521 = vmul.f32 %v455, %v476
    %v522 = vpack.c.bf16 %v487, %v482
    %v523 = vpack.c.bf16 %v488, %v483
    %v524 = vpack.c.bf16 %v489, %v484
    %v525 = vpack.c.bf16 %v490, %v485
    %v526 = vpack.c.bf16 %v491, %v486
    %v527 = vpack.c.bf16 %v497, %v492
    %v528 = vpack.c.bf16 %v498, %v493
    %v529 = vpack.c.bf16 %v499, %v494
    %v530 = vpack.c.bf16 %v500, %v495
    %v531 = vpack.c.bf16 %v501, %v496
    %v532 = vpack.c.bf16 %v507, %v502
    %v533 = vpack.c.bf16 %v508, %v503
    %v534 = vpack.c.bf16 %v509, %v504
    %v535 = vpack.c.bf16 %v510, %v505
    %v536 = vpack.c.bf16 %v511, %v506
    %v537 = vpack.c.bf16 %v517, %v512
    %v538 = vpack.c.bf16 %v518, %v513
    %v539 = vpack.c.bf16 %v519, %v514
    %v540 = vpack.c.bf16 %v520, %v515
    %v541 = vpack.c.bf16 %v521, %v516
    %562 = vrot.lane.b32.xlu0 %v522, 19
    %v563 = vpop.permute.xlu0 %562
    %564 = vrot.lane.b32.xlu0 %v523, 19
    %v565 = vpop.permute.xlu0 %564
    %566 = vrot.lane.b32.xlu0 %v524, 19
    %v567 = vpop.permute.xlu0 %566
    %568 = vrot.lane.b32.xlu0 %v525, 19
    %v569 = vpop.permute.xlu0 %568
    %570 = vrot.lane.b32.xlu0 %v526, 19
    %v571 = vpop.permute.xlu0 %570
    %572 = vrot.lane.b32.xlu0 %v527, 19
    %v573 = vpop.permute.xlu0 %572
    %574 = vrot.lane.b32.xlu0 %v528, 19
    %v575 = vpop.permute.xlu0 %574
    %576 = vrot.lane.b32.xlu0 %v529, 19
    %v577 = vpop.permute.xlu0 %576
    %578 = vrot.lane.b32.xlu0 %v530, 19
    %v579 = vpop.permute.xlu0 %578
    %580 = vrot.lane.b32.xlu0 %v531, 19
    %v581 = vpop.permute.xlu0 %580
    %582 = vrot.lane.b32.xlu0 %v532, 19
    %v583 = vpop.permute.xlu0 %582
    %584 = vrot.lane.b32.xlu0 %v533, 19
    %v585 = vpop.permute.xlu0 %584
    %586 = vrot.lane.b32.xlu0 %v534, 19
    %v587 = vpop.permute.xlu0 %586
    %588 = vrot.lane.b32.xlu0 %v535, 19
    %v589 = vpop.permute.xlu0 %588
    %590 = vrot.lane.b32.xlu0 %v536, 19
    %v591 = vpop.permute.xlu0 %590
    %592 = vrot.lane.b32.xlu0 %v537, 19
    %v593 = vpop.permute.xlu0 %592
    %594 = vrot.lane.b32.xlu0 %v538, 19
    %v595 = vpop.permute.xlu0 %594
    %596 = vrot.lane.b32.xlu0 %v539, 19
    %v597 = vpop.permute.xlu0 %596
    %598 = vrot.lane.b32.xlu0 %v540, 19
    %v599 = vpop.permute.xlu0 %598
    %600 = vrot.lane.b32.xlu0 %v541, 19
    %v601 = vpop.permute.xlu0 %600
    %vm602 = vcmask 154624
    %v603 = vsel %vm602, %v563, %v565
    %v604 = vsel %vm602, %v565, %v567
    %v605 = vsel %vm602, %v567, %v569
    %v606 = vsel %vm602, %v569, %v571
    %v607 = vsel %vm602, %v573, %v575
    %v608 = vsel %vm602, %v575, %v577
    %v609 = vsel %vm602, %v577, %v579
    %v610 = vsel %vm602, %v579, %v581
    %v611 = vsel %vm602, %v583, %v585
    %v612 = vsel %vm602, %v585, %v587
    %v613 = vsel %vm602, %v587, %v589
    %v614 = vsel %vm602, %v589, %v591
    %v615 = vsel %vm602, %v593, %v595
    %v616 = vsel %vm602, %v595, %v597
    %v617 = vsel %vm602, %v597, %v599
    %v618 = vsel %vm602, %v599, %v601
    %vm639 = vcmask 1047704
    %640 = vst.msk [vmem:[#allocation2] sm:$0xff] %vm639, %v563
    %641 = vst [vmem:[#allocation2 + $0x8] sm:$0xff] %v603
    %642 = vst [vmem:[#allocation2 + $0x10] sm:$0xff] %v604
    %643 = vst [vmem:[#allocation2 + $0x18] sm:$0xff] %v605
    %vm644 = vcmask 973824
    %645 = vst.msk [vmem:[#allocation2 + $0x20] sm:$0xff] %vm644, %v606
    %646 = vst.msk [vmem:[#allocation2 + $0x30] sm:$0xff] %vm639, %v573
    %647 = vst [vmem:[#allocation2 + $0x38] sm:$0xff] %v607
    %648 = vst [vmem:[#allocation2 + $0x40] sm:$0xff] %v608
    %649 = vst [vmem:[#allocation2 + $0x48] sm:$0xff] %v609
    %650 = vst.msk [vmem:[#allocation2 + $0x50] sm:$0xff] %vm644, %v610
    %651 = vst.msk [vmem:[#allocation2 + $0x60] sm:$0xff] %vm639, %v583
    %652 = vst [vmem:[#allocation2 + $0x68] sm:$0xff] %v611
    %653 = vst [vmem:[#allocation2 + $0x70] sm:$0xff] %v612
    %654 = vst [vmem:[#allocation2 + $0x78] sm:$0xff] %v613
    %655 = vst.msk [vmem:[#allocation2 + $0x80] sm:$0xff] %vm644, %v614
    %656 = vst.msk [vmem:[#allocation2 + $0x90] sm:$0xff] %vm639, %v593
    %657 = vst [vmem:[#allocation2 + $0x98] sm:$0xff] %v615
    %658 = vst [vmem:[#allocation2 + $0xa0] sm:$0xff] %v616
    %659 = vst [vmem:[#allocation2 + $0xa8] sm:$0xff] %v617
    %660 = vst.msk [vmem:[#allocation2 + $0xb0] sm:$0xff] %vm644, %v618
    %v661 = vld [vmem:[#allocation2] sm:$0xff]
    %v662 = vld [vmem:[#allocation2 + $0x8] sm:$0xff]
    %v663 = vld [vmem:[#allocation2 + $0x10] sm:$0xff]
    %v664 = vld [vmem:[#allocation2 + $0x18] sm:$0xff]
    %v665 = vld [vmem:[#allocation2 + $0x20] sm:$0xff]
    %v666 = vld [vmem:[#allocation2 + $0x30] sm:$0xff]
    %v667 = vld [vmem:[#allocation2 + $0x38] sm:$0xff]
    %v668 = vld [vmem:[#allocation2 + $0x40] sm:$0xff]
    %v669 = vld [vmem:[#allocation2 + $0x48] sm:$0xff]
    %v670 = vld [vmem:[#allocation2 + $0x50] sm:$0xff]
    %v671 = vld [vmem:[#allocation2 + $0x60] sm:$0xff]
    %v672 = vld [vmem:[#allocation2 + $0x68] sm:$0xff]
    %v673 = vld [vmem:[#allocation2 + $0x70] sm:$0xff]
    %v674 = vld [vmem:[#allocation2 + $0x78] sm:$0xff]
    %v675 = vld [vmem:[#allocation2 + $0x80] sm:$0xff]
    %v676 = vld [vmem:[#allocation2 + $0x90] sm:$0xff]
    %v677 = vld [vmem:[#allocation2 + $0x98] sm:$0xff]
    %v678 = vld [vmem:[#allocation2 + $0xa0] sm:$0xff]
    %v679 = vld [vmem:[#allocation2 + $0xa8] sm:$0xff]
    %v680 = vld [vmem:[#allocation2 + $0xb0] sm:$0xff]
    %681 = vst [vmem:[#allocation3] sm:$0xff] %v661
    %682 = vst [vmem:[#allocation3 + $0x8] sm:$0xff] %v662
    %683 = vst [vmem:[#allocation3 + $0x10] sm:$0xff] %v663
    %684 = vst [vmem:[#allocation3 + $0x18] sm:$0xff] %v664
    %vm685 = vcmask 818176
    %686 = vst.msk [vmem:[#allocation3 + $0x20] sm:$0xff] %vm685, %v665
    %687 = vst [vmem:[#allocation3 + $0x28] sm:$0xff] %v666
    %688 = vst [vmem:[#allocation3 + $0x30] sm:$0xff] %v667
    %689 = vst [vmem:[#allocation3 + $0x38] sm:$0xff] %v668
    %690 = vst [vmem:[#allocation3 + $0x40] sm:$0xff] %v669
    %691 = vst.msk [vmem:[#allocation3 + $0x48] sm:$0xff] %vm685, %v670
    %692 = vst [vmem:[#allocation3 + $0x50] sm:$0xff] %v671
    %693 = vst [vmem:[#allocation3 + $0x58] sm:$0xff] %v672
    %694 = vst [vmem:[#allocation3 + $0x60] sm:$0xff] %v673
    %695 = vst [vmem:[#allocation3 + $0x68] sm:$0xff] %v674
    %696 = vst.msk [vmem:[#allocation3 + $0x70] sm:$0xff] %vm685, %v675
    %697 = vst [vmem:[#allocation3 + $0x78] sm:$0xff] %v676
    %698 = vst [vmem:[#allocation3 + $0x80] sm:$0xff] %v677
    %699 = vst [vmem:[#allocation3 + $0x88] sm:$0xff] %v678
    %700 = vst [vmem:[#allocation3 + $0x90] sm:$0xff] %v679
    %701 = vst.msk [vmem:[#allocation3 + $0x98] sm:$0xff] %vm685, %v680
    %v702 = vld [vmem:[#allocation2] sm:$0xff]
    %v703 = vld [vmem:[#allocation2 + $0x8] sm:$0xff]
    %v704 = vld [vmem:[#allocation2 + $0x10] sm:$0xff]
    %v705 = vld [vmem:[#allocation2 + $0x18] sm:$0xff]
    %v706 = vld [vmem:[#allocation2 + $0x20] sm:$0xff]
    %v707 = vld [vmem:[#allocation2 + $0x30] sm:$0xff]
    %v708 = vld [vmem:[#allocation2 + $0x38] sm:$0xff]
    %v709 = vld [vmem:[#allocation2 + $0x40] sm:$0xff]
    %v710 = vld [vmem:[#allocation2 + $0x48] sm:$0xff]
    %v711 = vld [vmem:[#allocation2 + $0x50] sm:$0xff]
    %v712 = vld [vmem:[#allocation2 + $0x60] sm:$0xff]
    %v713 = vld [vmem:[#allocation2 + $0x68] sm:$0xff]
    %v714 = vld [vmem:[#allocation2 + $0x70] sm:$0xff]
    %v715 = vld [vmem:[#allocation2 + $0x78] sm:$0xff]
    %v716 = vld [vmem:[#allocation2 + $0x80] sm:$0xff]
    %v717 = vld [vmem:[#allocation2 + $0x90] sm:$0xff]
    %v718 = vld [vmem:[#allocation2 + $0x98] sm:$0xff]
    %v719 = vld [vmem:[#allocation2 + $0xa0] sm:$0xff]
    %v720 = vld [vmem:[#allocation2 + $0xa8] sm:$0xff]
    %v721 = vld [vmem:[#allocation2 + $0xb0] sm:$0xff]
    %742 = vrot.lane.b32.xlu0 %v702, 127
    %v743 = vpop.permute.xlu0 %742
    %744 = vrot.lane.b32.xlu0 %v703, 127
    %v745 = vpop.permute.xlu0 %744
    %746 = vrot.lane.b32.xlu0 %v704, 127
    %v747 = vpop.permute.xlu0 %746
    %748 = vrot.lane.b32.xlu0 %v705, 127
    %v749 = vpop.permute.xlu0 %748
    %750 = vrot.lane.b32.xlu0 %v706, 127
    %v751 = vpop.permute.xlu0 %750
    %752 = vrot.lane.b32.xlu0 %v707, 127
    %v753 = vpop.permute.xlu0 %752
    %754 = vrot.lane.b32.xlu0 %v708, 127
    %v755 = vpop.permute.xlu0 %754
    %756 = vrot.lane.b32.xlu0 %v709, 127
    %v757 = vpop.permute.xlu0 %756
    %758 = vrot.lane.b32.xlu0 %v710, 127
    %v759 = vpop.permute.xlu0 %758
    %760 = vrot.lane.b32.xlu0 %v711, 127
    %v761 = vpop.permute.xlu0 %760
    %762 = vrot.lane.b32.xlu0 %v712, 127
    %v763 = vpop.permute.xlu0 %762
    %764 = vrot.lane.b32.xlu0 %v713, 127
    %v765 = vpop.permute.xlu0 %764
    %766 = vrot.lane.b32.xlu0 %v714, 127
    %v767 = vpop.permute.xlu0 %766
    %768 = vrot.lane.b32.xlu0 %v715, 127
    %v769 = vpop.permute.xlu0 %768
    %770 = vrot.lane.b32.xlu0 %v716, 127
    %v771 = vpop.permute.xlu0 %770
    %772 = vrot.lane.b32.xlu0 %v717, 127
    %v773 = vpop.permute.xlu0 %772
    %774 = vrot.lane.b32.xlu0 %v718, 127
    %v775 = vpop.permute.xlu0 %774
    %776 = vrot.lane.b32.xlu0 %v719, 127
    %v777 = vpop.permute.xlu0 %776
    %778 = vrot.lane.b32.xlu0 %v720, 127
    %v779 = vpop.permute.xlu0 %778
    %780 = vrot.lane.b32.xlu0 %v721, 127
    %v781 = vpop.permute.xlu0 %780
    %vm782 = vcmask 1039360
    %v783 = vsel %vm782, %v743, %v745
    %v784 = vsel %vm782, %v745, %v747
    %v785 = vsel %vm782, %v747, %v749
    %v786 = vsel %vm782, %v749, %v751
    %v787 = vsel %vm782, %v753, %v755
    %v788 = vsel %vm782, %v755, %v757
    %v789 = vsel %vm782, %v757, %v759
    %v790 = vsel %vm782, %v759, %v761
    %v791 = vsel %vm782, %v763, %v765
    %v792 = vsel %vm782, %v765, %v767
    %v793 = vsel %vm782, %v767, %v769
    %v794 = vsel %vm782, %v769, %v771
    %v795 = vsel %vm782, %v773, %v775
    %v796 = vsel %vm782, %v775, %v777
    %v797 = vsel %vm782, %v777, %v779
    %v798 = vsel %vm782, %v779, %v781
    %819 = vst [vmem:[#allocation3 + $0xa0] sm:$0xff] %v783
    %820 = vst [vmem:[#allocation3 + $0xa8] sm:$0xff] %v784
    %821 = vst [vmem:[#allocation3 + $0xb0] sm:$0xff] %v785
    %822 = vst [vmem:[#allocation3 + $0xb8] sm:$0xff] %v786
    %823 = vst.msk [vmem:[#allocation3 + $0xc0] sm:$0xff] %vm685, %v751
    %824 = vst [vmem:[#allocation3 + $0xc8] sm:$0xff] %v787
    %825 = vst [vmem:[#allocation3 + $0xd0] sm:$0xff] %v788
    %826 = vst [vmem:[#allocation3 + $0xd8] sm:$0xff] %v789
    %827 = vst [vmem:[#allocation3 + $0xe0] sm:$0xff] %v790
    %828 = vst.msk [vmem:[#allocation3 + $0xe8] sm:$0xff] %vm685, %v761
    %829 = vst [vmem:[#allocation3 + $0xf0] sm:$0xff] %v791
    %830 = vst [vmem:[#allocation3 + $0xf8] sm:$0xff] %v792
    %831 = vst [vmem:[#allocation3 + $0x100] sm:$0xff] %v793
    %832 = vst [vmem:[#allocation3 + $0x108] sm:$0xff] %v794
    %833 = vst.msk [vmem:[#allocation3 + $0x110] sm:$0xff] %vm685, %v771
    %834 = vst [vmem:[#allocation3 + $0x118] sm:$0xff] %v795
    %835 = vst [vmem:[#allocation3 + $0x120] sm:$0xff] %v796
    %836 = vst [vmem:[#allocation3 + $0x128] sm:$0xff] %v797
    %837 = vst [vmem:[#allocation3 + $0x130] sm:$0xff] %v798
    %838 = vst.msk [vmem:[#allocation3 + $0x138] sm:$0xff] %vm685, %v781
    %v839 = vld [vmem:[#allocation2] sm:$0xff]
    %v840 = vld [vmem:[#allocation2 + $0x8] sm:$0xff]
    %v841 = vld [vmem:[#allocation2 + $0x10] sm:$0xff]
    %v842 = vld [vmem:[#allocation2 + $0x18] sm:$0xff]
    %v843 = vld [vmem:[#allocation2 + $0x20] sm:$0xff]
    %v844 = vld [vmem:[#allocation2 + $0x30] sm:$0xff]
    %v845 = vld [vmem:[#allocation2 + $0x38] sm:$0xff]
    %v846 = vld [vmem:[#allocation2 + $0x40] sm:$0xff]
    %v847 = vld [vmem:[#allocation2 + $0x48] sm:$0xff]
    %v848 = vld [vmem:[#allocation2 + $0x50] sm:$0xff]
    %v849 = vld [vmem:[#allocation2 + $0x60] sm:$0xff]
    %v850 = vld [vmem:[#allocation2 + $0x68] sm:$0xff]
    %v851 = vld [vmem:[#allocation2 + $0x70] sm:$0xff]
    %v852 = vld [vmem:[#allocation2 + $0x78] sm:$0xff]
    %v853 = vld [vmem:[#allocation2 + $0x80] sm:$0xff]
    %v854 = vld [vmem:[#allocation2 + $0x90] sm:$0xff]
    %v855 = vld [vmem:[#allocation2 + $0x98] sm:$0xff]
    %v856 = vld [vmem:[#allocation2 + $0xa0] sm:$0xff]
    %v857 = vld [vmem:[#allocation2 + $0xa8] sm:$0xff]
    %v858 = vld [vmem:[#allocation2 + $0xb0] sm:$0xff]
    %879 = vrot.lane.b32.xlu0 %v839, 126
    %v880 = vpop.permute.xlu0 %879
    %881 = vrot.lane.b32.xlu0 %v840, 126
    %v882 = vpop.permute.xlu0 %881
    %883 = vrot.lane.b32.xlu0 %v841, 126
    %v884 = vpop.permute.xlu0 %883
    %885 = vrot.lane.b32.xlu0 %v842, 126
    %v886 = vpop.permute.xlu0 %885
    %887 = vrot.lane.b32.xlu0 %v843, 126
    %v888 = vpop.permute.xlu0 %887
    %889 = vrot.lane.b32.xlu0 %v844, 126
    %v890 = vpop.permute.xlu0 %889
    %891 = vrot.lane.b32.xlu0 %v845, 126
    %v892 = vpop.permute.xlu0 %891
    %893 = vrot.lane.b32.xlu0 %v846, 126
    %v894 = vpop.permute.xlu0 %893
    %895 = vrot.lane.b32.xlu0 %v847, 126
    %v896 = vpop.permute.xlu0 %895
    %897 = vrot.lane.b32.xlu0 %v848, 126
    %v898 = vpop.permute.xlu0 %897
    %899 = vrot.lane.b32.xlu0 %v849, 126
    %v900 = vpop.permute.xlu0 %899
    %901 = vrot.lane.b32.xlu0 %v850, 126
    %v902 = vpop.permute.xlu0 %901
    %903 = vrot.lane.b32.xlu0 %v851, 126
    %v904 = vpop.permute.xlu0 %903
    %905 = vrot.lane.b32.xlu0 %v852, 126
    %v906 = vpop.permute.xlu0 %905
    %907 = vrot.lane.b32.xlu0 %v853, 126
    %v908 = vpop.permute.xlu0 %907
    %909 = vrot.lane.b32.xlu0 %v854, 126
    %v910 = vpop.permute.xlu0 %909
    %911 = vrot.lane.b32.xlu0 %v855, 126
    %v912 = vpop.permute.xlu0 %911
    %913 = vrot.lane.b32.xlu0 %v856, 126
    %v914 = vpop.permute.xlu0 %913
    %915 = vrot.lane.b32.xlu0 %v857, 126
    %v916 = vpop.permute.xlu0 %915
    %917 = vrot.lane.b32.xlu0 %v858, 126
    %v918 = vpop.permute.xlu0 %917
    %vm919 = vcmask 1031168
    %v920 = vsel %vm919, %v880, %v882
    %v921 = vsel %vm919, %v882, %v884
    %v922 = vsel %vm919, %v884, %v886
    %v923 = vsel %vm919, %v886, %v888
    %v924 = vsel %vm919, %v890, %v892
    %v925 = vsel %vm919, %v892, %v894
    %v926 = vsel %vm919, %v894, %v896
    %v927 = vsel %vm919, %v896, %v898
    %v928 = vsel %vm919, %v900, %v902
    %v929 = vsel %vm919, %v902, %v904
    %v930 = vsel %vm919, %v904, %v906
    %v931 = vsel %vm919, %v906, %v908
    %v932 = vsel %vm919, %v910, %v912
    %v933 = vsel %vm919, %v912, %v914
    %v934 = vsel %vm919, %v914, %v916
    %v935 = vsel %vm919, %v916, %v918
    %956 = vst [vmem:[#allocation3 + $0x140] sm:$0xff] %v920
    %957 = vst [vmem:[#allocation3 + $0x148] sm:$0xff] %v921
    %958 = vst [vmem:[#allocation3 + $0x150] sm:$0xff] %v922
    %959 = vst [vmem:[#allocation3 + $0x158] sm:$0xff] %v923
    %960 = vst.msk [vmem:[#allocation3 + $0x160] sm:$0xff] %vm685, %v888
    %961 = vst [vmem:[#allocation3 + $0x168] sm:$0xff] %v924
    %962 = vst [vmem:[#allocation3 + $0x170] sm:$0xff] %v925
    %963 = vst [vmem:[#allocation3 + $0x178] sm:$0xff] %v926
    %964 = vst [vmem:[#allocation3 + $0x180] sm:$0xff] %v927
    %965 = vst.msk [vmem:[#allocation3 + $0x188] sm:$0xff] %vm685, %v898
    %966 = vst [vmem:[#allocation3 + $0x190] sm:$0xff] %v928
    %967 = vst [vmem:[#allocation3 + $0x198] sm:$0xff] %v929
    %968 = vst [vmem:[#allocation3 + $0x1a0] sm:$0xff] %v930
    %969 = vst [vmem:[#allocation3 + $0x1a8] sm:$0xff] %v931
    %970 = vst.msk [vmem:[#allocation3 + $0x1b0] sm:$0xff] %vm685, %v908
    %971 = vst [vmem:[#allocation3 + $0x1b8] sm:$0xff] %v932
    %972 = vst [vmem:[#allocation3 + $0x1c0] sm:$0xff] %v933
    %973 = vst [vmem:[#allocation3 + $0x1c8] sm:$0xff] %v934
    %974 = vst [vmem:[#allocation3 + $0x1d0] sm:$0xff] %v935
    %975 = vst.msk [vmem:[#allocation3 + $0x1d8] sm:$0xff] %vm685, %v918
    %v976 = vld [vmem:[#allocation2] sm:$0xff]
    %v977 = vld [vmem:[#allocation2 + $0x8] sm:$0xff]
    %v978 = vld [vmem:[#allocation2 + $0x10] sm:$0xff]
    %v979 = vld [vmem:[#allocation2 + $0x18] sm:$0xff]
    %v980 = vld [vmem:[#allocation2 + $0x20] sm:$0xff]
    %v981 = vld [vmem:[#allocation2 + $0x30] sm:$0xff]
    %v982 = vld [vmem:[#allocation2 + $0x38] sm:$0xff]
    %v983 = vld [vmem:[#allocation2 + $0x40] sm:$0xff]
    %v984 = vld [vmem:[#allocation2 + $0x48] sm:$0xff]
    %v985 = vld [vmem:[#allocation2 + $0x50] sm:$0xff]
    %v986 = vld [vmem:[#allocation2 + $0x60] sm:$0xff]
    %v987 = vld [vmem:[#allocation2 + $0x68] sm:$0xff]
    %v988 = vld [vmem:[#allocation2 + $0x70] sm:$0xff]
    %v989 = vld [vmem:[#allocation2 + $0x78] sm:$0xff]
    %v990 = vld [vmem:[#allocation2 + $0x80] sm:$0xff]
    %v991 = vld [vmem:[#allocation2 + $0x90] sm:$0xff]
    %v992 = vld [vmem:[#allocation2 + $0x98] sm:$0xff]
    %v993 = vld [vmem:[#allocation2 + $0xa0] sm:$0xff]
    %v994 = vld [vmem:[#allocation2 + $0xa8] sm:$0xff]
    %v995 = vld [vmem:[#allocation2 + $0xb0] sm:$0xff]
    %1016 = vrot.lane.b32.xlu0 %v976, 110
    %v1017 = vpop.permute.xlu0 %1016
    %1018 = vrot.lane.b32.xlu0 %v977, 110
    %v1019 = vpop.permute.xlu0 %1018
    %1020 = vrot.lane.b32.xlu0 %v978, 110
    %v1021 = vpop.permute.xlu0 %1020
    %1022 = vrot.lane.b32.xlu0 %v979, 110
    %v1023 = vpop.permute.xlu0 %1022
    %1024 = vrot.lane.b32.xlu0 %v980, 110
    %v1025 = vpop.permute.xlu0 %1024
    %1026 = vrot.lane.b32.xlu0 %v981, 110
    %v1027 = vpop.permute.xlu0 %1026
    %1028 = vrot.lane.b32.xlu0 %v982, 110
    %v1029 = vpop.permute.xlu0 %1028
    %1030 = vrot.lane.b32.xlu0 %v983, 110
    %v1031 = vpop.permute.xlu0 %1030
    %1032 = vrot.lane.b32.xlu0 %v984, 110
    %v1033 = vpop.permute.xlu0 %1032
    %1034 = vrot.lane.b32.xlu0 %v985, 110
    %v1035 = vpop.permute.xlu0 %1034
    %1036 = vrot.lane.b32.xlu0 %v986, 110
    %v1037 = vpop.permute.xlu0 %1036
    %1038 = vrot.lane.b32.xlu0 %v987, 110
    %v1039 = vpop.permute.xlu0 %1038
    %1040 = vrot.lane.b32.xlu0 %v988, 110
    %v1041 = vpop.permute.xlu0 %1040
    %1042 = vrot.lane.b32.xlu0 %v989, 110
    %v1043 = vpop.permute.xlu0 %1042
    %1044 = vrot.lane.b32.xlu0 %v990, 110
    %v1045 = vpop.permute.xlu0 %1044
    %1046 = vrot.lane.b32.xlu0 %v991, 110
    %v1047 = vpop.permute.xlu0 %1046
    %1048 = vrot.lane.b32.xlu0 %v992, 110
    %v1049 = vpop.permute.xlu0 %1048
    %1050 = vrot.lane.b32.xlu0 %v993, 110
    %v1051 = vpop.permute.xlu0 %1050
    %1052 = vrot.lane.b32.xlu0 %v994, 110
    %v1053 = vpop.permute.xlu0 %1052
    %1054 = vrot.lane.b32.xlu0 %v995, 110
    %v1055 = vpop.permute.xlu0 %1054
    %vm1056 = vcmask 900096
    %v1057 = vsel %vm1056, %v1017, %v1019
    %v1058 = vsel %vm1056, %v1019, %v1021
    %v1059 = vsel %vm1056, %v1021, %v1023
    %v1060 = vsel %vm1056, %v1023, %v1025
    %v1061 = vsel %vm1056, %v1027, %v1029
    %v1062 = vsel %vm1056, %v1029, %v1031
    %v1063 = vsel %vm1056, %v1031, %v1033
    %v1064 = vsel %vm1056, %v1033, %v1035
    %v1065 = vsel %vm1056, %v1037, %v1039
    %v1066 = vsel %vm1056, %v1039, %v1041
    %v1067 = vsel %vm1056, %v1041, %v1043
    %v1068 = vsel %vm1056, %v1043, %v1045
    %v1069 = vsel %vm1056, %v1047, %v1049
    %v1070 = vsel %vm1056, %v1049, %v1051
    %v1071 = vsel %vm1056, %v1051, %v1053
    %v1072 = vsel %vm1056, %v1053, %v1055
    %1093 = vst [vmem:[#allocation3 + $0x1e0] sm:$0xff] %v1057
    %1094 = vst [vmem:[#allocation3 + $0x1e8] sm:$0xff] %v1058
    %1095 = vst [vmem:[#allocation3 + $0x1f0] sm:$0xff] %v1059
    %1096 = vst [vmem:[#allocation3 + $0x1f8] sm:$0xff] %v1060
    %1097 = vst.msk [vmem:[#allocation3 + $0x200] sm:$0xff] %vm685, %v1025
    %1098 = vst [vmem:[#allocation3 + $0x208] sm:$0xff] %v1061
    %1099 = vst [vmem:[#allocation3 + $0x210] sm:$0xff] %v1062
    %1100 = vst [vmem:[#allocation3 + $0x218] sm:$0xff] %v1063
    %1101 = vst [vmem:[#allocation3 + $0x220] sm:$0xff] %v1064
    %1102 = vst.msk [vmem:[#allocation3 + $0x228] sm:$0xff] %vm685, %v1035
    %1103 = vst [vmem:[#allocation3 + $0x230] sm:$0xff] %v1065
    %1104 = vst [vmem:[#allocation3 + $0x238] sm:$0xff] %v1066
    %1105 = vst [vmem:[#allocation3 + $0x240] sm:$0xff] %v1067
    %1106 = vst [vmem:[#allocation3 + $0x248] sm:$0xff] %v1068
    %1107 = vst.msk [vmem:[#allocation3 + $0x250] sm:$0xff] %vm685, %v1045
    %1108 = vst [vmem:[#allocation3 + $0x258] sm:$0xff] %v1069
    %1109 = vst [vmem:[#allocation3 + $0x260] sm:$0xff] %v1070
    %1110 = vst [vmem:[#allocation3 + $0x268] sm:$0xff] %v1071
    %1111 = vst [vmem:[#allocation3 + $0x270] sm:$0xff] %v1072
    %1112 = vst.msk [vmem:[#allocation3 + $0x278] sm:$0xff] %vm685, %v1055
    %v1113 = vld [vmem:[#allocation2] sm:$0xff]
    %v1114 = vld [vmem:[#allocation2 + $0x8] sm:$0xff]
    %v1115 = vld [vmem:[#allocation2 + $0x10] sm:$0xff]
    %v1116 = vld [vmem:[#allocation2 + $0x18] sm:$0xff]
    %v1117 = vld [vmem:[#allocation2 + $0x20] sm:$0xff]
    %v1118 = vld [vmem:[#allocation2 + $0x30] sm:$0xff]
    %v1119 = vld [vmem:[#allocation2 + $0x38] sm:$0xff]
    %v1120 = vld [vmem:[#allocation2 + $0x40] sm:$0xff]
    %v1121 = vld [vmem:[#allocation2 + $0x48] sm:$0xff]
    %v1122 = vld [vmem:[#allocation2 + $0x50] sm:$0xff]
    %v1123 = vld [vmem:[#allocation2 + $0x60] sm:$0xff]
    %v1124 = vld [vmem:[#allocation2 + $0x68] sm:$0xff]
    %v1125 = vld [vmem:[#allocation2 + $0x70] sm:$0xff]
    %v1126 = vld [vmem:[#allocation2 + $0x78] sm:$0xff]
    %v1127 = vld [vmem:[#allocation2 + $0x80] sm:$0xff]
    %v1128 = vld [vmem:[#allocation2 + $0x90] sm:$0xff]
    %v1129 = vld [vmem:[#allocation2 + $0x98] sm:$0xff]
    %v1130 = vld [vmem:[#allocation2 + $0xa0] sm:$0xff]
    %v1131 = vld [vmem:[#allocation2 + $0xa8] sm:$0xff]
    %v1132 = vld [vmem:[#allocation2 + $0xb0] sm:$0xff]
    %1153 = vrot.lane.b32.xlu0 %v1113, 109
    %v1154 = vpop.permute.xlu0 %1153
    %1155 = vrot.lane.b32.xlu0 %v1114, 109
    %v1156 = vpop.permute.xlu0 %1155
    %1157 = vrot.lane.b32.xlu0 %v1115, 109
    %v1158 = vpop.permute.xlu0 %1157
    %1159 = vrot.lane.b32.xlu0 %v1116, 109
    %v1160 = vpop.permute.xlu0 %1159
    %1161 = vrot.lane.b32.xlu0 %v1117, 109
    %v1162 = vpop.permute.xlu0 %1161
    %1163 = vrot.lane.b32.xlu0 %v1118, 109
    %v1164 = vpop.permute.xlu0 %1163
    %1165 = vrot.lane.b32.xlu0 %v1119, 109
    %v1166 = vpop.permute.xlu0 %1165
    %1167 = vrot.lane.b32.xlu0 %v1120, 109
    %v1168 = vpop.permute.xlu0 %1167
    %1169 = vrot.lane.b32.xlu0 %v1121, 109
    %v1170 = vpop.permute.xlu0 %1169
    %1171 = vrot.lane.b32.xlu0 %v1122, 109
    %v1172 = vpop.permute.xlu0 %1171
    %1173 = vrot.lane.b32.xlu0 %v1123, 109
    %v1174 = vpop.permute.xlu0 %1173
    %1175 = vrot.lane.b32.xlu0 %v1124, 109
    %v1176 = vpop.permute.xlu0 %1175
    %1177 = vrot.lane.b32.xlu0 %v1125, 109
    %v1178 = vpop.permute.xlu0 %1177
    %1179 = vrot.lane.b32.xlu0 %v1126, 109
    %v1180 = vpop.permute.xlu0 %1179
    %1181 = vrot.lane.b32.xlu0 %v1127, 109
    %v1182 = vpop.permute.xlu0 %1181
    %1183 = vrot.lane.b32.xlu0 %v1128, 109
    %v1184 = vpop.permute.xlu0 %1183
    %1185 = vrot.lane.b32.xlu0 %v1129, 109
    %v1186 = vpop.permute.xlu0 %1185
    %1187 = vrot.lane.b32.xlu0 %v1130, 109
    %v1188 = vpop.permute.xlu0 %1187
    %1189 = vrot.lane.b32.xlu0 %v1131, 109
    %v1190 = vpop.permute.xlu0 %1189
    %1191 = vrot.lane.b32.xlu0 %v1132, 109
    %v1192 = vpop.permute.xlu0 %1191
    %vm1193 = vcmask 891904
    %v1194 = vsel %vm1193, %v1154, %v1156
    %v1195 = vsel %vm1193, %v1156, %v1158
    %v1196 = vsel %vm1193, %v1158, %v1160
    %v1197 = vsel %vm1193, %v1160, %v1162
    %v1198 = vsel %vm1193, %v1164, %v1166
    %v1199 = vsel %vm1193, %v1166, %v1168
    %v1200 = vsel %vm1193, %v1168, %v1170
    %v1201 = vsel %vm1193, %v1170, %v1172
    %v1202 = vsel %vm1193, %v1174, %v1176
    %v1203 = vsel %vm1193, %v1176, %v1178
    %v1204 = vsel %vm1193, %v1178, %v1180
    %v1205 = vsel %vm1193, %v1180, %v1182
    %v1206 = vsel %vm1193, %v1184, %v1186
    %v1207 = vsel %vm1193, %v1186, %v1188
    %v1208 = vsel %vm1193, %v1188, %v1190
    %v1209 = vsel %vm1193, %v1190, %v1192
    %1230 = vst [vmem:[#allocation3 + $0x280] sm:$0xff] %v1194
    %1231 = vst [vmem:[#allocation3 + $0x288] sm:$0xff] %v1195
    %1232 = vst [vmem:[#allocation3 + $0x290] sm:$0xff] %v1196
    %1233 = vst [vmem:[#allocation3 + $0x298] sm:$0xff] %v1197
    %1234 = vst.msk [vmem:[#allocation3 + $0x2a0] sm:$0xff] %vm685, %v1162
    %1235 = vst [vmem:[#allocation3 + $0x2a8] sm:$0xff] %v1198
    %1236 = vst [vmem:[#allocation3 + $0x2b0] sm:$0xff] %v1199
    %1237 = vst [vmem:[#allocation3 + $0x2b8] sm:$0xff] %v1200
    %1238 = vst [vmem:[#allocation3 + $0x2c0] sm:$0xff] %v1201
    %1239 = vst.msk [vmem:[#allocation3 + $0x2c8] sm:$0xff] %vm685, %v1172
    %1240 = vst [vmem:[#allocation3 + $0x2d0] sm:$0xff] %v1202
    %1241 = vst [vmem:[#allocation3 + $0x2d8] sm:$0xff] %v1203
    %1242 = vst [vmem:[#allocation3 + $0x2e0] sm:$0xff] %v1204
    %1243 = vst [vmem:[#allocation3 + $0x2e8] sm:$0xff] %v1205
    %1244 = vst.msk [vmem:[#allocation3 + $0x2f0] sm:$0xff] %vm685, %v1182
    %1245 = vst [vmem:[#allocation3 + $0x2f8] sm:$0xff] %v1206
    %1246 = vst [vmem:[#allocation3 + $0x300] sm:$0xff] %v1207
    %1247 = vst [vmem:[#allocation3 + $0x308] sm:$0xff] %v1208
    %1248 = vst [vmem:[#allocation3 + $0x310] sm:$0xff] %v1209
    %1249 = vst.msk [vmem:[#allocation3 + $0x318] sm:$0xff] %vm685, %v1192
    %v1250 = vld [vmem:[#allocation2] sm:$0xff]
    %v1251 = vld [vmem:[#allocation2 + $0x8] sm:$0xff]
    %v1252 = vld [vmem:[#allocation2 + $0x10] sm:$0xff]
    %v1253 = vld [vmem:[#allocation2 + $0x18] sm:$0xff]
    %v1254 = vld [vmem:[#allocation2 + $0x20] sm:$0xff]
    %v1255 = vld [vmem:[#allocation2 + $0x30] sm:$0xff]
    %v1256 = vld [vmem:[#allocation2 + $0x38] sm:$0xff]
    %v1257 = vld [vmem:[#allocation2 + $0x40] sm:$0xff]
    %v1258 = vld [vmem:[#allocation2 + $0x48] sm:$0xff]
    %v1259 = vld [vmem:[#allocation2 + $0x50] sm:$0xff]
    %v1260 = vld [vmem:[#allocation2 + $0x60] sm:$0xff]
    %v1261 = vld [vmem:[#allocation2 + $0x68] sm:$0xff]
    %v1262 = vld [vmem:[#allocation2 + $0x70] sm:$0xff]
    %v1263 = vld [vmem:[#allocation2 + $0x78] sm:$0xff]
    %v1264 = vld [vmem:[#allocation2 + $0x80] sm:$0xff]
    %v1265 = vld [vmem:[#allocation2 + $0x90] sm:$0xff]
    %v1266 = vld [vmem:[#allocation2 + $0x98] sm:$0xff]
    %v1267 = vld [vmem:[#allocation2 + $0xa0] sm:$0xff]
    %v1268 = vld [vmem:[#allocation2 + $0xa8] sm:$0xff]
    %v1269 = vld [vmem:[#allocation2 + $0xb0] sm:$0xff]
    %1290 = vrot.lane.b32.xlu0 %v1250, 108
    %v1291 = vpop.permute.xlu0 %1290
    %1292 = vrot.lane.b32.xlu0 %v1251, 108
    %v1293 = vpop.permute.xlu0 %1292
    %1294 = vrot.lane.b32.xlu0 %v1252, 108
    %v1295 = vpop.permute.xlu0 %1294
    %1296 = vrot.lane.b32.xlu0 %v1253, 108
    %v1297 = vpop.permute.xlu0 %1296
    %1298 = vrot.lane.b32.xlu0 %v1254, 108
    %v1299 = vpop.permute.xlu0 %1298
    %1300 = vrot.lane.b32.xlu0 %v1255, 108
    %v1301 = vpop.permute.xlu0 %1300
    %1302 = vrot.lane.b32.xlu0 %v1256, 108
    %v1303 = vpop.permute.xlu0 %1302
    %1304 = vrot.lane.b32.xlu0 %v1257, 108
    %v1305 = vpop.permute.xlu0 %1304
    %1306 = vrot.lane.b32.xlu0 %v1258, 108
    %v1307 = vpop.permute.xlu0 %1306
    %1308 = vrot.lane.b32.xlu0 %v1259, 108
    %v1309 = vpop.permute.xlu0 %1308
    %1310 = vrot.lane.b32.xlu0 %v1260, 108
    %v1311 = vpop.permute.xlu0 %1310
    %1312 = vrot.lane.b32.xlu0 %v1261, 108
    %v1313 = vpop.permute.xlu0 %1312
    %1314 = vrot.lane.b32.xlu0 %v1262, 108
    %v1315 = vpop.permute.xlu0 %1314
    %1316 = vrot.lane.b32.xlu0 %v1263, 108
    %v1317 = vpop.permute.xlu0 %1316
    %1318 = vrot.lane.b32.xlu0 %v1264, 108
    %v1319 = vpop.permute.xlu0 %1318
    %1320 = vrot.lane.b32.xlu0 %v1265, 108
    %v1321 = vpop.permute.xlu0 %1320
    %1322 = vrot.lane.b32.xlu0 %v1266, 108
    %v1323 = vpop.permute.xlu0 %1322
    %1324 = vrot.lane.b32.xlu0 %v1267, 108
    %v1325 = vpop.permute.xlu0 %1324
    %1326 = vrot.lane.b32.xlu0 %v1268, 108
    %v1327 = vpop.permute.xlu0 %1326
    %1328 = vrot.lane.b32.xlu0 %v1269, 108
    %v1329 = vpop.permute.xlu0 %1328
    %vm1330 = vcmask 883712
    %v1331 = vsel %vm1330, %v1291, %v1293
    %v1332 = vsel %vm1330, %v1293, %v1295
    %v1333 = vsel %vm1330, %v1295, %v1297
    %v1334 = vsel %vm1330, %v1297, %v1299
    %v1335 = vsel %vm1330, %v1301, %v1303
    %v1336 = vsel %vm1330, %v1303, %v1305
    %v1337 = vsel %vm1330, %v1305, %v1307
    %v1338 = vsel %vm1330, %v1307, %v1309
    %v1339 = vsel %vm1330, %v1311, %v1313
    %v1340 = vsel %vm1330, %v1313, %v1315
    %v1341 = vsel %vm1330, %v1315, %v1317
    %v1342 = vsel %vm1330, %v1317, %v1319
    %v1343 = vsel %vm1330, %v1321, %v1323
    %v1344 = vsel %vm1330, %v1323, %v1325
    %v1345 = vsel %vm1330, %v1325, %v1327
    %v1346 = vsel %vm1330, %v1327, %v1329
    %1367 = vst [vmem:[#allocation3 + $0x320] sm:$0xff] %v1331
    %1368 = vst [vmem:[#allocation3 + $0x328] sm:$0xff] %v1332
    %1369 = vst [vmem:[#allocation3 + $0x330] sm:$0xff] %v1333
    %1370 = vst [vmem:[#allocation3 + $0x338] sm:$0xff] %v1334
    %1371 = vst.msk [vmem:[#allocation3 + $0x340] sm:$0xff] %vm685, %v1299
    %1372 = vst [vmem:[#allocation3 + $0x348] sm:$0xff] %v1335
    %1373 = vst [vmem:[#allocation3 + $0x350] sm:$0xff] %v1336
    %1374 = vst [vmem:[#allocation3 + $0x358] sm:$0xff] %v1337
    %1375 = vst [vmem:[#allocation3 + $0x360] sm:$0xff] %v1338
    %1376 = vst.msk [vmem:[#allocation3 + $0x368] sm:$0xff] %vm685, %v1309
    %1377 = vst [vmem:[#allocation3 + $0x370] sm:$0xff] %v1339
    %1378 = vst [vmem:[#allocation3 + $0x378] sm:$0xff] %v1340
    %1379 = vst [vmem:[#allocation3 + $0x380] sm:$0xff] %v1341
    %1380 = vst [vmem:[#allocation3 + $0x388] sm:$0xff] %v1342
    %1381 = vst.msk [vmem:[#allocation3 + $0x390] sm:$0xff] %vm685, %v1319
    %1382 = vst [vmem:[#allocation3 + $0x398] sm:$0xff] %v1343
    %1383 = vst [vmem:[#allocation3 + $0x3a0] sm:$0xff] %v1344
    %1384 = vst [vmem:[#allocation3 + $0x3a8] sm:$0xff] %v1345
    %1385 = vst [vmem:[#allocation3 + $0x3b0] sm:$0xff] %v1346
    %1386 = vst.msk [vmem:[#allocation3 + $0x3b8] sm:$0xff] %vm685, %v1329
    %v1387 = vld [vmem:[#allocation2] sm:$0xff]
    %v1388 = vld [vmem:[#allocation2 + $0x8] sm:$0xff]
    %v1389 = vld [vmem:[#allocation2 + $0x10] sm:$0xff]
    %v1390 = vld [vmem:[#allocation2 + $0x18] sm:$0xff]
    %v1391 = vld [vmem:[#allocation2 + $0x20] sm:$0xff]
    %v1392 = vld [vmem:[#allocation2 + $0x28] sm:$0xff]
    %v1393 = vld [vmem:[#allocation2 + $0x30] sm:$0xff]
    %v1394 = vld [vmem:[#allocation2 + $0x38] sm:$0xff]
    %v1395 = vld [vmem:[#allocation2 + $0x40] sm:$0xff]
    %v1396 = vld [vmem:[#allocation2 + $0x48] sm:$0xff]
    %v1397 = vld [vmem:[#allocation2 + $0x50] sm:$0xff]
    %v1398 = vld [vmem:[#allocation2 + $0x58] sm:$0xff]
    %v1399 = vld [vmem:[#allocation2 + $0x60] sm:$0xff]
    %v1400 = vld [vmem:[#allocation2 + $0x68] sm:$0xff]
    %v1401 = vld [vmem:[#allocation2 + $0x70] sm:$0xff]
    %v1402 = vld [vmem:[#allocation2 + $0x78] sm:$0xff]
    %v1403 = vld [vmem:[#allocation2 + $0x80] sm:$0xff]
    %v1404 = vld [vmem:[#allocation2 + $0x88] sm:$0xff]
    %v1405 = vld [vmem:[#allocation2 + $0x90] sm:$0xff]
    %v1406 = vld [vmem:[#allocation2 + $0x98] sm:$0xff]
    %v1407 = vld [vmem:[#allocation2 + $0xa0] sm:$0xff]
    %v1408 = vld [vmem:[#allocation2 + $0xa8] sm:$0xff]
    %v1409 = vld [vmem:[#allocation2 + $0xb0] sm:$0xff]
    %v1410 = vld [vmem:[#allocation2 + $0xb8] sm:$0xff]
    %1435 = vrot.lane.b32.xlu0 %v1387, 92
    %v1436 = vpop.permute.xlu0 %1435
    %1437 = vrot.lane.b32.xlu0 %v1388, 92
    %v1438 = vpop.permute.xlu0 %1437
    %1439 = vrot.lane.b32.xlu0 %v1389, 92
    %v1440 = vpop.permute.xlu0 %1439
    %1441 = vrot.lane.b32.xlu0 %v1390, 92
    %v1442 = vpop.permute.xlu0 %1441
    %1443 = vrot.lane.b32.xlu0 %v1391, 92
    %v1444 = vpop.permute.xlu0 %1443
    %1445 = vrot.lane.b32.xlu0 %v1392, 92
    %v1446 = vpop.permute.xlu0 %1445
    %1447 = vrot.lane.b32.xlu0 %v1393, 92
    %v1448 = vpop.permute.xlu0 %1447
    %1449 = vrot.lane.b32.xlu0 %v1394, 92
    %v1450 = vpop.permute.xlu0 %1449
    %1451 = vrot.lane.b32.xlu0 %v1395, 92
    %v1452 = vpop.permute.xlu0 %1451
    %1453 = vrot.lane.b32.xlu0 %v1396, 92
    %v1454 = vpop.permute.xlu0 %1453
    %1455 = vrot.lane.b32.xlu0 %v1397, 92
    %v1456 = vpop.permute.xlu0 %1455
    %1457 = vrot.lane.b32.xlu0 %v1398, 92
    %v1458 = vpop.permute.xlu0 %1457
    %1459 = vrot.lane.b32.xlu0 %v1399, 92
    %v1460 = vpop.permute.xlu0 %1459
    %1461 = vrot.lane.b32.xlu0 %v1400, 92
    %v1462 = vpop.permute.xlu0 %1461
    %1463 = vrot.lane.b32.xlu0 %v1401, 92
    %v1464 = vpop.permute.xlu0 %1463
    %1465 = vrot.lane.b32.xlu0 %v1402, 92
    %v1466 = vpop.permute.xlu0 %1465
    %1467 = vrot.lane.b32.xlu0 %v1403, 92
    %v1468 = vpop.permute.xlu0 %1467
    %1469 = vrot.lane.b32.xlu0 %v1404, 92
    %v1470 = vpop.permute.xlu0 %1469
    %1471 = vrot.lane.b32.xlu0 %v1405, 92
    %v1472 = vpop.permute.xlu0 %1471
    %1473 = vrot.lane.b32.xlu0 %v1406, 92
    %v1474 = vpop.permute.xlu0 %1473
    %1475 = vrot.lane.b32.xlu0 %v1407, 92
    %v1476 = vpop.permute.xlu0 %1475
    %1477 = vrot.lane.b32.xlu0 %v1408, 92
    %v1478 = vpop.permute.xlu0 %1477
    %1479 = vrot.lane.b32.xlu0 %v1409, 92
    %v1480 = vpop.permute.xlu0 %1479
    %1481 = vrot.lane.b32.xlu0 %v1410, 92
    %v1482 = vpop.permute.xlu0 %1481
    %vm1483 = vcmask 752640
    %v1484 = vsel %vm1483, %v1436, %v1438
    %v1485 = vsel %vm1483, %v1438, %v1440
    %v1486 = vsel %vm1483, %v1440, %v1442
    %v1487 = vsel %vm1483, %v1442, %v1444
    %v1488 = vsel %vm1483, %v1444, %v1446
    %v1489 = vsel %vm1483, %v1448, %v1450
    %v1490 = vsel %vm1483, %v1450, %v1452
    %v1491 = vsel %vm1483, %v1452, %v1454
    %v1492 = vsel %vm1483, %v1454, %v1456
    %v1493 = vsel %vm1483, %v1456, %v1458
    %v1494 = vsel %vm1483, %v1460, %v1462
    %v1495 = vsel %vm1483, %v1462, %v1464
    %v1496 = vsel %vm1483, %v1464, %v1466
    %v1497 = vsel %vm1483, %v1466, %v1468
    %v1498 = vsel %vm1483, %v1468, %v1470
    %v1499 = vsel %vm1483, %v1472, %v1474
    %v1500 = vsel %vm1483, %v1474, %v1476
    %v1501 = vsel %vm1483, %v1476, %v1478
    %v1502 = vsel %vm1483, %v1478, %v1480
    %v1503 = vsel %vm1483, %v1480, %v1482
    %1524 = vst [vmem:[#allocation3 + $0x3c0] sm:$0xff] %v1484
    %1525 = vst [vmem:[#allocation3 + $0x3c8] sm:$0xff] %v1485
    %1526 = vst [vmem:[#allocation3 + $0x3d0] sm:$0xff] %v1486
    %1527 = vst [vmem:[#allocation3 + $0x3d8] sm:$0xff] %v1487
    %1528 = vst.msk [vmem:[#allocation3 + $0x3e0] sm:$0xff] %vm685, %v1488
    %1529 = vst [vmem:[#allocation3 + $0x3e8] sm:$0xff] %v1489
    %1530 = vst [vmem:[#allocation3 + $0x3f0] sm:$0xff] %v1490
    %1531 = vst [vmem:[#allocation3 + $0x3f8] sm:$0xff] %v1491
    %1532 = vst [vmem:[#allocation3 + $0x400] sm:$0xff] %v1492
    %1533 = vst.msk [vmem:[#allocation3 + $0x408] sm:$0xff] %vm685, %v1493
    %1534 = vst [vmem:[#allocation3 + $0x410] sm:$0xff] %v1494
    %1535 = vst [vmem:[#allocation3 + $0x418] sm:$0xff] %v1495
    %1536 = vst [vmem:[#allocation3 + $0x420] sm:$0xff] %v1496
    %1537 = vst [vmem:[#allocation3 + $0x428] sm:$0xff] %v1497
    %1538 = vst.msk [vmem:[#allocation3 + $0x430] sm:$0xff] %vm685, %v1498
    %1539 = vst [vmem:[#allocation3 + $0x438] sm:$0xff] %v1499
    %1540 = vst [vmem:[#allocation3 + $0x440] sm:$0xff] %v1500
    %1541 = vst [vmem:[#allocation3 + $0x448] sm:$0xff] %v1501
    %1542 = vst [vmem:[#allocation3 + $0x450] sm:$0xff] %v1502
    %1543 = vst.msk [vmem:[#allocation3 + $0x458] sm:$0xff] %vm685, %v1503
    %v1544 = vld [vmem:[#allocation2] sm:$0xff]
    %v1545 = vld [vmem:[#allocation2 + $0x8] sm:$0xff]
    %v1546 = vld [vmem:[#allocation2 + $0x10] sm:$0xff]
    %v1547 = vld [vmem:[#allocation2 + $0x18] sm:$0xff]
    %v1548 = vld [vmem:[#allocation2 + $0x20] sm:$0xff]
    %v1549 = vld [vmem:[#allocation2 + $0x28] sm:$0xff]
    %v1550 = vld [vmem:[#allocation2 + $0x30] sm:$0xff]
    %v1551 = vld [vmem:[#allocation2 + $0x38] sm:$0xff]
    %v1552 = vld [vmem:[#allocation2 + $0x40] sm:$0xff]
    %v1553 = vld [vmem:[#allocation2 + $0x48] sm:$0xff]
    %v1554 = vld [vmem:[#allocation2 + $0x50] sm:$0xff]
    %v1555 = vld [vmem:[#allocation2 + $0x58] sm:$0xff]
    %v1556 = vld [vmem:[#allocation2 + $0x60] sm:$0xff]
    %v1557 = vld [vmem:[#allocation2 + $0x68] sm:$0xff]
    %v1558 = vld [vmem:[#allocation2 + $0x70] sm:$0xff]
    %v1559 = vld [vmem:[#allocation2 + $0x78] sm:$0xff]
    %v1560 = vld [vmem:[#allocation2 + $0x80] sm:$0xff]
    %v1561 = vld [vmem:[#allocation2 + $0x88] sm:$0xff]
    %v1562 = vld [vmem:[#allocation2 + $0x90] sm:$0xff]
    %v1563 = vld [vmem:[#allocation2 + $0x98] sm:$0xff]
    %v1564 = vld [vmem:[#allocation2 + $0xa0] sm:$0xff]
    %v1565 = vld [vmem:[#allocation2 + $0xa8] sm:$0xff]
    %v1566 = vld [vmem:[#allocation2 + $0xb0] sm:$0xff]
    %v1567 = vld [vmem:[#allocation2 + $0xb8] sm:$0xff]
    %1592 = vrot.lane.b32.xlu0 %v1544, 91
    %v1593 = vpop.permute.xlu0 %1592
    %1594 = vrot.lane.b32.xlu0 %v1545, 91
    %v1595 = vpop.permute.xlu0 %1594
    %1596 = vrot.lane.b32.xlu0 %v1546, 91
    %v1597 = vpop.permute.xlu0 %1596
    %1598 = vrot.lane.b32.xlu0 %v1547, 91
    %v1599 = vpop.permute.xlu0 %1598
    %1600 = vrot.lane.b32.xlu0 %v1548, 91
    %v1601 = vpop.permute.xlu0 %1600
    %1602 = vrot.lane.b32.xlu0 %v1549, 91
    %v1603 = vpop.permute.xlu0 %1602
    %1604 = vrot.lane.b32.xlu0 %v1550, 91
    %v1605 = vpop.permute.xlu0 %1604
    %1606 = vrot.lane.b32.xlu0 %v1551, 91
    %v1607 = vpop.permute.xlu0 %1606
    %1608 = vrot.lane.b32.xlu0 %v1552, 91
    %v1609 = vpop.permute.xlu0 %1608
    %1610 = vrot.lane.b32.xlu0 %v1553, 91
    %v1611 = vpop.permute.xlu0 %1610
    %1612 = vrot.lane.b32.xlu0 %v1554, 91
    %v1613 = vpop.permute.xlu0 %1612
    %1614 = vrot.lane.b32.xlu0 %v1555, 91
    %v1615 = vpop.permute.xlu0 %1614
    %1616 = vrot.lane.b32.xlu0 %v1556, 91
    %v1617 = vpop.permute.xlu0 %1616
    %1618 = vrot.lane.b32.xlu0 %v1557, 91
    %v1619 = vpop.permute.xlu0 %1618
    %1620 = vrot.lane.b32.xlu0 %v1558, 91
    %v1621 = vpop.permute.xlu0 %1620
    %1622 = vrot.lane.b32.xlu0 %v1559, 91
    %v1623 = vpop.permute.xlu0 %1622
    %1624 = vrot.lane.b32.xlu0 %v1560, 91
    %v1625 = vpop.permute.xlu0 %1624
    %1626 = vrot.lane.b32.xlu0 %v1561, 91
    %v1627 = vpop.permute.xlu0 %1626
    %1628 = vrot.lane.b32.xlu0 %v1562, 91
    %v1629 = vpop.permute.xlu0 %1628
    %1630 = vrot.lane.b32.xlu0 %v1563, 91
    %v1631 = vpop.permute.xlu0 %1630
    %1632 = vrot.lane.b32.xlu0 %v1564, 91
    %v1633 = vpop.permute.xlu0 %1632
    %1634 = vrot.lane.b32.xlu0 %v1565, 91
    %v1635 = vpop.permute.xlu0 %1634
    %1636 = vrot.lane.b32.xlu0 %v1566, 91
    %v1637 = vpop.permute.xlu0 %1636
    %1638 = vrot.lane.b32.xlu0 %v1567, 91
    %v1639 = vpop.permute.xlu0 %1638
    %vm1640 = vcmask 744448
    %v1641 = vsel %vm1640, %v1593, %v1595
    %v1642 = vsel %vm1640, %v1595, %v1597
    %v1643 = vsel %vm1640, %v1597, %v1599
    %v1644 = vsel %vm1640, %v1599, %v1601
    %v1645 = vsel %vm1640, %v1601, %v1603
    %v1646 = vsel %vm1640, %v1605, %v1607
    %v1647 = vsel %vm1640, %v1607, %v1609
    %v1648 = vsel %vm1640, %v1609, %v1611
    %v1649 = vsel %vm1640, %v1611, %v1613
    %v1650 = vsel %vm1640, %v1613, %v1615
    %v1651 = vsel %vm1640, %v1617, %v1619
    %v1652 = vsel %vm1640, %v1619, %v1621
    %v1653 = vsel %vm1640, %v1621, %v1623
    %v1654 = vsel %vm1640, %v1623, %v1625
    %v1655 = vsel %vm1640, %v1625, %v1627
    %v1656 = vsel %vm1640, %v1629, %v1631
    %v1657 = vsel %vm1640, %v1631, %v1633
    %v1658 = vsel %vm1640, %v1633, %v1635
    %v1659 = vsel %vm1640, %v1635, %v1637
    %v1660 = vsel %vm1640, %v1637, %v1639
    %1681 = vst [vmem:[#allocation3 + $0x460] sm:$0xff] %v1641
    %1682 = vst [vmem:[#allocation3 + $0x468] sm:$0xff] %v1642
    %1683 = vst [vmem:[#allocation3 + $0x470] sm:$0xff] %v1643
    %1684 = vst [vmem:[#allocation3 + $0x478] sm:$0xff] %v1644
    %1685 = vst.msk [vmem:[#allocation3 + $0x480] sm:$0xff] %vm685, %v1645
    %1686 = vst [vmem:[#allocation3 + $0x488] sm:$0xff] %v1646
    %1687 = vst [vmem:[#allocation3 + $0x490] sm:$0xff] %v1647
    %1688 = vst [vmem:[#allocation3 + $0x498] sm:$0xff] %v1648
    %1689 = vst [vmem:[#allocation3 + $0x4a0] sm:$0xff] %v1649
    %1690 = vst.msk [vmem:[#allocation3 + $0x4a8] sm:$0xff] %vm685, %v1650
    %1691 = vst [vmem:[#allocation3 + $0x4b0] sm:$0xff] %v1651
    %1692 = vst [vmem:[#allocation3 + $0x4b8] sm:$0xff] %v1652
    %1693 = vst [vmem:[#allocation3 + $0x4c0] sm:$0xff] %v1653
    %1694 = vst [vmem:[#allocation3 + $0x4c8] sm:$0xff] %v1654
    %1695 = vst.msk [vmem:[#allocation3 + $0x4d0] sm:$0xff] %vm685, %v1655
    %1696 = vst [vmem:[#allocation3 + $0x4d8] sm:$0xff] %v1656
    %1697 = vst [vmem:[#allocation3 + $0x4e0] sm:$0xff] %v1657
    %1698 = vst [vmem:[#allocation3 + $0x4e8] sm:$0xff] %v1658
    %1699 = vst [vmem:[#allocation3 + $0x4f0] sm:$0xff] %v1659
    %1700 = vst.msk [vmem:[#allocation3 + $0x4f8] sm:$0xff] %vm685, %v1660
    %v1701 = vld [vmem:[#allocation2] sm:$0xff]
    %v1702 = vld [vmem:[#allocation2 + $0x8] sm:$0xff]
    %v1703 = vld [vmem:[#allocation2 + $0x10] sm:$0xff]
    %v1704 = vld [vmem:[#allocation2 + $0x18] sm:$0xff]
    %v1705 = vld [vmem:[#allocation2 + $0x20] sm:$0xff]
    %v1706 = vld [vmem:[#allocation2 + $0x28] sm:$0xff]
    %v1707 = vld [vmem:[#allocation2 + $0x30] sm:$0xff]
    %v1708 = vld [vmem:[#allocation2 + $0x38] sm:$0xff]
    %v1709 = vld [vmem:[#allocation2 + $0x40] sm:$0xff]
    %v1710 = vld [vmem:[#allocation2 + $0x48] sm:$0xff]
    %v1711 = vld [vmem:[#allocation2 + $0x50] sm:$0xff]
    %v1712 = vld [vmem:[#allocation2 + $0x58] sm:$0xff]
    %v1713 = vld [vmem:[#allocation2 + $0x60] sm:$0xff]
    %v1714 = vld [vmem:[#allocation2 + $0x68] sm:$0xff]
    %v1715 = vld [vmem:[#allocation2 + $0x70] sm:$0xff]
    %v1716 = vld [vmem:[#allocation2 + $0x78] sm:$0xff]
    %v1717 = vld [vmem:[#allocation2 + $0x80] sm:$0xff]
    %v1718 = vld [vmem:[#allocation2 + $0x88] sm:$0xff]
    %v1719 = vld [vmem:[#allocation2 + $0x90] sm:$0xff]
    %v1720 = vld [vmem:[#allocation2 + $0x98] sm:$0xff]
    %v1721 = vld [vmem:[#allocation2 + $0xa0] sm:$0xff]
    %v1722 = vld [vmem:[#allocation2 + $0xa8] sm:$0xff]
    %v1723 = vld [vmem:[#allocation2 + $0xb0] sm:$0xff]
    %v1724 = vld [vmem:[#allocation2 + $0xb8] sm:$0xff]
    %1749 = vrot.lane.b32.xlu0 %v1701, 90
    %v1750 = vpop.permute.xlu0 %1749
    %1751 = vrot.lane.b32.xlu0 %v1702, 90
    %v1752 = vpop.permute.xlu0 %1751
    %1753 = vrot.lane.b32.xlu0 %v1703, 90
    %v1754 = vpop.permute.xlu0 %1753
    %1755 = vrot.lane.b32.xlu0 %v1704, 90
    %v1756 = vpop.permute.xlu0 %1755
    %1757 = vrot.lane.b32.xlu0 %v1705, 90
    %v1758 = vpop.permute.xlu0 %1757
    %1759 = vrot.lane.b32.xlu0 %v1706, 90
    %v1760 = vpop.permute.xlu0 %1759
    %1761 = vrot.lane.b32.xlu0 %v1707, 90
    %v1762 = vpop.permute.xlu0 %1761
    %1763 = vrot.lane.b32.xlu0 %v1708, 90
    %v1764 = vpop.permute.xlu0 %1763
    %1765 = vrot.lane.b32.xlu0 %v1709, 90
    %v1766 = vpop.permute.xlu0 %1765
    %1767 = vrot.lane.b32.xlu0 %v1710, 90
    %v1768 = vpop.permute.xlu0 %1767
    %1769 = vrot.lane.b32.xlu0 %v1711, 90
    %v1770 = vpop.permute.xlu0 %1769
    %1771 = vrot.lane.b32.xlu0 %v1712, 90
    %v1772 = vpop.permute.xlu0 %1771
    %1773 = vrot.lane.b32.xlu0 %v1713, 90
    %v1774 = vpop.permute.xlu0 %1773
    %1775 = vrot.lane.b32.xlu0 %v1714, 90
    %v1776 = vpop.permute.xlu0 %1775
    %1777 = vrot.lane.b32.xlu0 %v1715, 90
    %v1778 = vpop.permute.xlu0 %1777
    %1779 = vrot.lane.b32.xlu0 %v1716, 90
    %v1780 = vpop.permute.xlu0 %1779
    %1781 = vrot.lane.b32.xlu0 %v1717, 90
    %v1782 = vpop.permute.xlu0 %1781
    %1783 = vrot.lane.b32.xlu0 %v1718, 90
    %v1784 = vpop.permute.xlu0 %1783
    %1785 = vrot.lane.b32.xlu0 %v1719, 90
    %v1786 = vpop.permute.xlu0 %1785
    %1787 = vrot.lane.b32.xlu0 %v1720, 90
    %v1788 = vpop.permute.xlu0 %1787
    %1789 = vrot.lane.b32.xlu0 %v1721, 90
    %v1790 = vpop.permute.xlu0 %1789
    %1791 = vrot.lane.b32.xlu0 %v1722, 90
    %v1792 = vpop.permute.xlu0 %1791
    %1793 = vrot.lane.b32.xlu0 %v1723, 90
    %v1794 = vpop.permute.xlu0 %1793
    %1795 = vrot.lane.b32.xlu0 %v1724, 90
    %v1796 = vpop.permute.xlu0 %1795
    %vm1797 = vcmask 736256
    %v1798 = vsel %vm1797, %v1750, %v1752
    %v1799 = vsel %vm1797, %v1752, %v1754
    %v1800 = vsel %vm1797, %v1754, %v1756
    %v1801 = vsel %vm1797, %v1756, %v1758
    %v1802 = vsel %vm1797, %v1758, %v1760
    %v1803 = vsel %vm1797, %v1762, %v1764
    %v1804 = vsel %vm1797, %v1764, %v1766
    %v1805 = vsel %vm1797, %v1766, %v1768
    %v1806 = vsel %vm1797, %v1768, %v1770
    %v1807 = vsel %vm1797, %v1770, %v1772
    %v1808 = vsel %vm1797, %v1774, %v1776
    %v1809 = vsel %vm1797, %v1776, %v1778
    %v1810 = vsel %vm1797, %v1778, %v1780
    %v1811 = vsel %vm1797, %v1780, %v1782
    %v1812 = vsel %vm1797, %v1782, %v1784
    %v1813 = vsel %vm1797, %v1786, %v1788
    %v1814 = vsel %vm1797, %v1788, %v1790
    %v1815 = vsel %vm1797, %v1790, %v1792
    %v1816 = vsel %vm1797, %v1792, %v1794
    %v1817 = vsel %vm1797, %v1794, %v1796
    %1838 = vst [vmem:[#allocation3 + $0x500] sm:$0xff] %v1798
    %1839 = vst [vmem:[#allocation3 + $0x508] sm:$0xff] %v1799
    %1840 = vst [vmem:[#allocation3 + $0x510] sm:$0xff] %v1800
    %1841 = vst [vmem:[#allocation3 + $0x518] sm:$0xff] %v1801
    %1842 = vst.msk [vmem:[#allocation3 + $0x520] sm:$0xff] %vm685, %v1802
    %1843 = vst [vmem:[#allocation3 + $0x528] sm:$0xff] %v1803
    %1844 = vst [vmem:[#allocation3 + $0x530] sm:$0xff] %v1804
    %1845 = vst [vmem:[#allocation3 + $0x538] sm:$0xff] %v1805
    %1846 = vst [vmem:[#allocation3 + $0x540] sm:$0xff] %v1806
    %1847 = vst.msk [vmem:[#allocation3 + $0x548] sm:$0xff] %vm685, %v1807
    %1848 = vst [vmem:[#allocation3 + $0x550] sm:$0xff] %v1808
    %1849 = vst [vmem:[#allocation3 + $0x558] sm:$0xff] %v1809
    %1850 = vst [vmem:[#allocation3 + $0x560] sm:$0xff] %v1810
    %1851 = vst [vmem:[#allocation3 + $0x568] sm:$0xff] %v1811
    %1852 = vst.msk [vmem:[#allocation3 + $0x570] sm:$0xff] %vm685, %v1812
    %1853 = vst [vmem:[#allocation3 + $0x578] sm:$0xff] %v1813
    %1854 = vst [vmem:[#allocation3 + $0x580] sm:$0xff] %v1814
    %1855 = vst [vmem:[#allocation3 + $0x588] sm:$0xff] %v1815
    %1856 = vst [vmem:[#allocation3 + $0x590] sm:$0xff] %v1816
    %1857 = vst.msk [vmem:[#allocation3 + $0x598] sm:$0xff] %vm685, %v1817
    %v1858 = vld [vmem:[%s2] sm:$0xff]
    %v1859 = vld [vmem:[%s2 + $0x8] sm:$0xff]
    %v1860 = vld [vmem:[%s2 + $0x10] sm:$0xf]
    %v1861 = vld [vmem:[%s2 + $0x14] sm:$0xff]
    %v1862 = vld [vmem:[%s2 + $0x1c] sm:$0xff]
    %v1863 = vld [vmem:[%s2 + $0x24] sm:$0xf]
    %v1864 = vld [vmem:[%s2 + $0x28] sm:$0xff]
    %v1865 = vld [vmem:[%s2 + $0x30] sm:$0xff]
    %v1866 = vld [vmem:[%s2 + $0x38] sm:$0xf]
    %v1867 = vld [vmem:[%s2 + $0x3c] sm:$0xff]
    %v1868 = vld [vmem:[%s2 + $0x44] sm:$0xff]
    %v1869 = vld [vmem:[%s2 + $0x4c] sm:$0xf]
    %v1870 = vld [vmem:[%s2 + $0x50] sm:$0xff]
    %v1871 = vld [vmem:[%s2 + $0x58] sm:$0xff]
    %v1872 = vld [vmem:[%s2 + $0x60] sm:$0xf]
    %v1873 = vld [vmem:[%s2 + $0x64] sm:$0xff]
    %v1874 = vld [vmem:[%s2 + $0x6c] sm:$0xff]
    %v1875 = vld [vmem:[%s2 + $0x74] sm:$0xf]
    %v1876 = vld [vmem:[%s2 + $0x78] sm:$0xff]
    %v1877 = vld [vmem:[%s2 + $0x80] sm:$0xff]
    %v1878 = vld [vmem:[%s2 + $0x88] sm:$0xf]
    %v1879 = vld [vmem:[%s2 + $0x8c] sm:$0xff]
    %v1880 = vld [vmem:[%s2 + $0x94] sm:$0xff]
    %v1881 = vld [vmem:[%s2 + $0x9c] sm:$0xf]
    %v1882 = vld [vmem:[#allocation3] sm:$0xff]
    %v1883 = vld [vmem:[#allocation3 + $0x8] sm:$0xff]
    %v1884 = vld [vmem:[#allocation3 + $0x10] sm:$0xff]
    %v1885 = vld [vmem:[#allocation3 + $0x18] sm:$0xff]
    %v1886 = vld [vmem:[#allocation3 + $0x20] sm:$0xff]
    %v1887 = vld [vmem:[#allocation3 + $0x28] sm:$0xff]
    %v1888 = vld [vmem:[#allocation3 + $0x30] sm:$0xff]
    %v1889 = vld [vmem:[#allocation3 + $0x38] sm:$0xff]
    %v1890 = vld [vmem:[#allocation3 + $0x40] sm:$0xff]
    %v1891 = vld [vmem:[#allocation3 + $0x48] sm:$0xff]
    %v1892 = vld [vmem:[#allocation3 + $0x50] sm:$0xff]
    %v1893 = vld [vmem:[#allocation3 + $0x58] sm:$0xff]
    %v1894 = vld [vmem:[#allocation3 + $0x60] sm:$0xff]
    %v1895 = vld [vmem:[#allocation3 + $0x68] sm:$0xff]
    %v1896 = vld [vmem:[#allocation3 + $0x70] sm:$0xff]
    %v1897 = vld [vmem:[#allocation3 + $0x78] sm:$0xff]
    %v1898 = vld [vmem:[#allocation3 + $0x80] sm:$0xff]
    %v1899 = vld [vmem:[#allocation3 + $0x88] sm:$0xff]
    %v1900 = vld [vmem:[#allocation3 + $0x90] sm:$0xff]
    %v1901 = vld [vmem:[#allocation3 + $0x98] sm:$0xff]
    %v1902 = vld [vmem:[#allocation3 + $0xa0] sm:$0xff]
    %v1903 = vld [vmem:[#allocation3 + $0xa8] sm:$0xff]
    %v1904 = vld [vmem:[#allocation3 + $0xb0] sm:$0xff]
    %v1905 = vld [vmem:[#allocation3 + $0xb8] sm:$0xff]
    %v1906 = vld [vmem:[#allocation3 + $0xc0] sm:$0xff]
    %v1907 = vld [vmem:[#allocation3 + $0xc8] sm:$0xff]
    %v1908 = vld [vmem:[#allocation3 + $0xd0] sm:$0xff]
    %v1909 = vld [vmem:[#allocation3 + $0xd8] sm:$0xff]
    %v1910 = vld [vmem:[#allocation3 + $0xe0] sm:$0xff]
    %v1911 = vld [vmem:[#allocation3 + $0xe8] sm:$0xff]
    %v1912 = vld [vmem:[#allocation3 + $0xf0] sm:$0xff]
    %v1913 = vld [vmem:[#allocation3 + $0xf8] sm:$0xff]
    %v1914 = vld [vmem:[#allocation3 + $0x100] sm:$0xff]
    %v1915 = vld [vmem:[#allocation3 + $0x108] sm:$0xff]
    %v1916 = vld [vmem:[#allocation3 + $0x110] sm:$0xff]
    %v1917 = vld [vmem:[#allocation3 + $0x118] sm:$0xff]
    %v1918 = vld [vmem:[#allocation3 + $0x120] sm:$0xff]
    %v1919 = vld [vmem:[#allocation3 + $0x128] sm:$0xff]
    %v1920 = vld [vmem:[#allocation3 + $0x130] sm:$0xff]
    %v1921 = vld [vmem:[#allocation3 + $0x138] sm:$0xff]
    %v1922 = vld [vmem:[#allocation3 + $0x140] sm:$0xff]
    %v1923 = vld [vmem:[#allocation3 + $0x148] sm:$0xff]
    %v1924 = vld [vmem:[#allocation3 + $0x150] sm:$0xff]
    %v1925 = vld [vmem:[#allocation3 + $0x158] sm:$0xff]
    %v1926 = vld [vmem:[#allocation3 + $0x160] sm:$0xff]
    %v1927 = vld [vmem:[#allocation3 + $0x168] sm:$0xff]
    %v1928 = vld [vmem:[#allocation3 + $0x170] sm:$0xff]
    %v1929 = vld [vmem:[#allocation3 + $0x178] sm:$0xff]
    %v1930 = vld [vmem:[#allocation3 + $0x180] sm:$0xff]
    %v1931 = vld [vmem:[#allocation3 + $0x188] sm:$0xff]
    %v1932 = vld [vmem:[#allocation3 + $0x190] sm:$0xff]
    %v1933 = vld [vmem:[#allocation3 + $0x198] sm:$0xff]
    %v1934 = vld [vmem:[#allocation3 + $0x1a0] sm:$0xff]
    %v1935 = vld [vmem:[#allocation3 + $0x1a8] sm:$0xff]
    %v1936 = vld [vmem:[#allocation3 + $0x1b0] sm:$0xff]
    %v1937 = vld [vmem:[#allocation3 + $0x1b8] sm:$0xff]
    %v1938 = vld [vmem:[#allocation3 + $0x1c0] sm:$0xff]
    %v1939 = vld [vmem:[#allocation3 + $0x1c8] sm:$0xff]
    %v1940 = vld [vmem:[#allocation3 + $0x1d0] sm:$0xff]
    %v1941 = vld [vmem:[#allocation3 + $0x1d8] sm:$0xff]
    %v1942 = vld [vmem:[#allocation3 + $0x1e0] sm:$0xff]
    %v1943 = vld [vmem:[#allocation3 + $0x1e8] sm:$0xff]
    %v1944 = vld [vmem:[#allocation3 + $0x1f0] sm:$0xff]
    %v1945 = vld [vmem:[#allocation3 + $0x1f8] sm:$0xff]
    %v1946 = vld [vmem:[#allocation3 + $0x200] sm:$0xff]
    %v1947 = vld [vmem:[#allocation3 + $0x208] sm:$0xff]
    %v1948 = vld [vmem:[#allocation3 + $0x210] sm:$0xff]
    %v1949 = vld [vmem:[#allocation3 + $0x218] sm:$0xff]
    %v1950 = vld [vmem:[#allocation3 + $0x220] sm:$0xff]
    %v1951 = vld [vmem:[#allocation3 + $0x228] sm:$0xff]
    %v1952 = vld [vmem:[#allocation3 + $0x230] sm:$0xff]
    %v1953 = vld [vmem:[#allocation3 + $0x238] sm:$0xff]
    %v1954 = vld [vmem:[#allocation3 + $0x240] sm:$0xff]
    %v1955 = vld [vmem:[#allocation3 + $0x248] sm:$0xff]
    %v1956 = vld [vmem:[#allocation3 + $0x250] sm:$0xff]
    %v1957 = vld [vmem:[#allocation3 + $0x258] sm:$0xff]
    %v1958 = vld [vmem:[#allocation3 + $0x260] sm:$0xff]
    %v1959 = vld [vmem:[#allocation3 + $0x268] sm:$0xff]
    %v1960 = vld [vmem:[#allocation3 + $0x270] sm:$0xff]
    %v1961 = vld [vmem:[#allocation3 + $0x278] sm:$0xff]
    %v1962 = vld [vmem:[#allocation3 + $0x280] sm:$0xff]
    %v1963 = vld [vmem:[#allocation3 + $0x288] sm:$0xff]
    %v1964 = vld [vmem:[#allocation3 + $0x290] sm:$0xff]
    %v1965 = vld [vmem:[#allocation3 + $0x298] sm:$0xff]
    %v1966 = vld [vmem:[#allocation3 + $0x2a0] sm:$0xff]
    %v1967 = vld [vmem:[#allocation3 + $0x2a8] sm:$0xff]
    %v1968 = vld [vmem:[#allocation3 + $0x2b0] sm:$0xff]
    %v1969 = vld [vmem:[#allocation3 + $0x2b8] sm:$0xff]
    %v1970 = vld [vmem:[#allocation3 + $0x2c0] sm:$0xff]
    %v1971 = vld [vmem:[#allocation3 + $0x2c8] sm:$0xff]
    %v1972 = vld [vmem:[#allocation3 + $0x2d0] sm:$0xff]
    %v1973 = vld [vmem:[#allocation3 + $0x2d8] sm:$0xff]
    %v1974 = vld [vmem:[#allocation3 + $0x2e0] sm:$0xff]
    %v1975 = vld [vmem:[#allocation3 + $0x2e8] sm:$0xff]
    %v1976 = vld [vmem:[#allocation3 + $0x2f0] sm:$0xff]
    %v1977 = vld [vmem:[#allocation3 + $0x2f8] sm:$0xff]
    %v1978 = vld [vmem:[#allocation3 + $0x300] sm:$0xff]
    %v1979 = vld [vmem:[#allocation3 + $0x308] sm:$0xff]
    %v1980 = vld [vmem:[#allocation3 + $0x310] sm:$0xff]
    %v1981 = vld [vmem:[#allocation3 + $0x318] sm:$0xff]
    %v1982 = vld [vmem:[#allocation3 + $0x320] sm:$0xff]
    %v1983 = vld [vmem:[#allocation3 + $0x328] sm:$0xff]
    %v1984 = vld [vmem:[#allocation3 + $0x330] sm:$0xff]
    %v1985 = vld [vmem:[#allocation3 + $0x338] sm:$0xff]
    %v1986 = vld [vmem:[#allocation3 + $0x340] sm:$0xff]
    %v1987 = vld [vmem:[#allocation3 + $0x348] sm:$0xff]
    %v1988 = vld [vmem:[#allocation3 + $0x350] sm:$0xff]
    %v1989 = vld [vmem:[#allocation3 + $0x358] sm:$0xff]
    %v1990 = vld [vmem:[#allocation3 + $0x360] sm:$0xff]
    %v1991 = vld [vmem:[#allocation3 + $0x368] sm:$0xff]
    %v1992 = vld [vmem:[#allocation3 + $0x370] sm:$0xff]
    %v1993 = vld [vmem:[#allocation3 + $0x378] sm:$0xff]
    %v1994 = vld [vmem:[#allocation3 + $0x380] sm:$0xff]
    %v1995 = vld [vmem:[#allocation3 + $0x388] sm:$0xff]
    %v1996 = vld [vmem:[#allocation3 + $0x390] sm:$0xff]
    %v1997 = vld [vmem:[#allocation3 + $0x398] sm:$0xff]
    %v1998 = vld [vmem:[#allocation3 + $0x3a0] sm:$0xff]
    %v1999 = vld [vmem:[#allocation3 + $0x3a8] sm:$0xff]
    %v2000 = vld [vmem:[#allocation3 + $0x3b0] sm:$0xff]
    %v2001 = vld [vmem:[#allocation3 + $0x3b8] sm:$0xff]
    %v2002 = vld [vmem:[#allocation3 + $0x3c0] sm:$0xff]
    %v2003 = vld [vmem:[#allocation3 + $0x3c8] sm:$0xff]
    %v2004 = vld [vmem:[#allocation3 + $0x3d0] sm:$0xff]
    %v2005 = vld [vmem:[#allocation3 + $0x3d8] sm:$0xff]
    %v2006 = vld [vmem:[#allocation3 + $0x3e0] sm:$0xff]
    %v2007 = vld [vmem:[#allocation3 + $0x3e8] sm:$0xff]
    %v2008 = vld [vmem:[#allocation3 + $0x3f0] sm:$0xff]
    %v2009 = vld [vmem:[#allocation3 + $0x3f8] sm:$0xff]
    %v2010 = vld [vmem:[#allocation3 + $0x400] sm:$0xff]
    %v2011 = vld [vmem:[#allocation3 + $0x408] sm:$0xff]
    %v2012 = vld [vmem:[#allocation3 + $0x410] sm:$0xff]
    %v2013 = vld [vmem:[#allocation3 + $0x418] sm:$0xff]
    %v2014 = vld [vmem:[#allocation3 + $0x420] sm:$0xff]
    %v2015 = vld [vmem:[#allocation3 + $0x428] sm:$0xff]
    %v2016 = vld [vmem:[#allocation3 + $0x430] sm:$0xff]
    %v2017 = vld [vmem:[#allocation3 + $0x438] sm:$0xff]
    %v2018 = vld [vmem:[#allocation3 + $0x440] sm:$0xff]
    %v2019 = vld [vmem:[#allocation3 + $0x448] sm:$0xff]
    %v2020 = vld [vmem:[#allocation3 + $0x450] sm:$0xff]
    %v2021 = vld [vmem:[#allocation3 + $0x458] sm:$0xff]
    %v2022 = vld [vmem:[#allocation3 + $0x460] sm:$0xff]
    %v2023 = vld [vmem:[#allocation3 + $0x468] sm:$0xff]
    %v2024 = vld [vmem:[#allocation3 + $0x470] sm:$0xff]
    %v2025 = vld [vmem:[#allocation3 + $0x478] sm:$0xff]
    %v2026 = vld [vmem:[#allocation3 + $0x480] sm:$0xff]
    %v2027 = vld [vmem:[#allocation3 + $0x488] sm:$0xff]
    %v2028 = vld [vmem:[#allocation3 + $0x490] sm:$0xff]
    %v2029 = vld [vmem:[#allocation3 + $0x498] sm:$0xff]
    %v2030 = vld [vmem:[#allocation3 + $0x4a0] sm:$0xff]
    %v2031 = vld [vmem:[#allocation3 + $0x4a8] sm:$0xff]
    %v2032 = vld [vmem:[#allocation3 + $0x4b0] sm:$0xff]
    %v2033 = vld [vmem:[#allocation3 + $0x4b8] sm:$0xff]
    %v2034 = vld [vmem:[#allocation3 + $0x4c0] sm:$0xff]
    %v2035 = vld [vmem:[#allocation3 + $0x4c8] sm:$0xff]
    %v2036 = vld [vmem:[#allocation3 + $0x4d0] sm:$0xff]
    %v2037 = vld [vmem:[#allocation3 + $0x4d8] sm:$0xff]
    %v2038 = vld [vmem:[#allocation3 + $0x4e0] sm:$0xff]
    %v2039 = vld [vmem:[#allocation3 + $0x4e8] sm:$0xff]
    %v2040 = vld [vmem:[#allocation3 + $0x4f0] sm:$0xff]
    %v2041 = vld [vmem:[#allocation3 + $0x4f8] sm:$0xff]
    %v2042 = vld [vmem:[#allocation3 + $0x500] sm:$0xff]
    %v2043 = vld [vmem:[#allocation3 + $0x508] sm:$0xff]
    %v2044 = vld [vmem:[#allocation3 + $0x510] sm:$0xff]
    %v2045 = vld [vmem:[#allocation3 + $0x518] sm:$0xff]
    %v2046 = vld [vmem:[#allocation3 + $0x520] sm:$0xff]
    %v2047 = vld [vmem:[#allocation3 + $0x528] sm:$0xff]
    %v2048 = vld [vmem:[#allocation3 + $0x530] sm:$0xff]
    %v2049 = vld [vmem:[#allocation3 + $0x538] sm:$0xff]
    %v2050 = vld [vmem:[#allocation3 + $0x540] sm:$0xff]
    %v2051 = vld [vmem:[#allocation3 + $0x548] sm:$0xff]
    %v2052 = vld [vmem:[#allocation3 + $0x550] sm:$0xff]
    %v2053 = vld [vmem:[#allocation3 + $0x558] sm:$0xff]
    %v2054 = vld [vmem:[#allocation3 + $0x560] sm:$0xff]
    %v2055 = vld [vmem:[#allocation3 + $0x568] sm:$0xff]
    %v2056 = vld [vmem:[#allocation3 + $0x570] sm:$0xff]
    %v2057 = vld [vmem:[#allocation3 + $0x578] sm:$0xff]
    %v2058 = vld [vmem:[#allocation3 + $0x580] sm:$0xff]
    %v2059 = vld [vmem:[#allocation3 + $0x588] sm:$0xff]
    %v2060 = vld [vmem:[#allocation3 + $0x590] sm:$0xff]
    %v2061 = vld [vmem:[#allocation3 + $0x598] sm:$0xff]
    %v2086 = vunpack.c.l.b16 %v1858
    %v2087 = vunpack.c.h.b16 %v1858
    %v2088 = vunpack.c.l.b16 %v1859
    %v2089 = vunpack.c.h.b16 %v1859
    %v2090 = vunpack.c.l.b16 %v1860
    %v2091 = vunpack.c.l.b16 %v1861
    %v2092 = vunpack.c.h.b16 %v1861
    %v2093 = vunpack.c.l.b16 %v1862
    %v2094 = vunpack.c.h.b16 %v1862
    %v2095 = vunpack.c.l.b16 %v1863
    %v2096 = vunpack.c.l.b16 %v1864
    %v2097 = vunpack.c.h.b16 %v1864
    %v2098 = vunpack.c.l.b16 %v1865
    %v2099 = vunpack.c.h.b16 %v1865
    %v2100 = vunpack.c.l.b16 %v1866
    %v2101 = vunpack.c.l.b16 %v1867
    %v2102 = vunpack.c.h.b16 %v1867
    %v2103 = vunpack.c.l.b16 %v1868
    %v2104 = vunpack.c.h.b16 %v1868
    %v2105 = vunpack.c.l.b16 %v1869
    %v2106 = vunpack.c.l.b16 %v1870
    %v2107 = vunpack.c.h.b16 %v1870
    %v2108 = vunpack.c.l.b16 %v1871
    %v2109 = vunpack.c.h.b16 %v1871
    %v2110 = vunpack.c.l.b16 %v1872
    %v2111 = vunpack.c.l.b16 %v1873
    %v2112 = vunpack.c.h.b16 %v1873
    %v2113 = vunpack.c.l.b16 %v1874
    %v2114 = vunpack.c.h.b16 %v1874
    %v2115 = vunpack.c.l.b16 %v1875
    %v2116 = vunpack.c.l.b16 %v1876
    %v2117 = vunpack.c.h.b16 %v1876
    %v2118 = vunpack.c.l.b16 %v1877
    %v2119 = vunpack.c.h.b16 %v1877
    %v2120 = vunpack.c.l.b16 %v1878
    %v2121 = vunpack.c.l.b16 %v1879
    %v2122 = vunpack.c.h.b16 %v1879
    %v2123 = vunpack.c.l.b16 %v1880
    %v2124 = vunpack.c.h.b16 %v1880
    %v2125 = vunpack.c.l.b16 %v1881
    %v2126 = vpack.c.b16 %v2091, %v2086
    %v2127 = vpack.c.b16 %v2092, %v2087
    %v2128 = vpack.c.b16 %v2093, %v2088
    %v2129 = vpack.c.b16 %v2094, %v2089
    %v2130 = vpack.c.b16 %v2095, %v2090
    %v2131 = vpack.c.b16 %v2101, %v2096
    %v2132 = vpack.c.b16 %v2102, %v2097
    %v2133 = vpack.c.b16 %v2103, %v2098
    %v2134 = vpack.c.b16 %v2104, %v2099
    %v2135 = vpack.c.b16 %v2105, %v2100
    %v2136 = vpack.c.b16 %v2111, %v2106
    %v2137 = vpack.c.b16 %v2112, %v2107
    %v2138 = vpack.c.b16 %v2113, %v2108
    %v2139 = vpack.c.b16 %v2114, %v2109
    %v2140 = vpack.c.b16 %v2115, %v2110
    %v2141 = vpack.c.b16 %v2121, %v2116
    %v2142 = vpack.c.b16 %v2122, %v2117
    %v2143 = vpack.c.b16 %v2123, %v2118
    %v2144 = vpack.c.b16 %v2124, %v2119
    %v2145 = vpack.c.b16 %v2125, %v2120
    %vm2162 = vcmask 523264
    %v2164 = vsel %vm2162, %v2130, 0
    %v2167 = vsel %vm2162, %v2135, 0
    %v2170 = vsel %vm2162, %v2140, 0
    %v2173 = vsel %vm2162, %v2145, 0
    %2175 = vmatprep.subr.bf16.mxu0 %v1883
    %2176 = vmatpush1.bf16.msra.mxu0 %v1882
    %2177 = vmatprep.subr.bf16.mxu0 %v1888
    %2178 = vmatpush1.bf16.msra.mxu0 %v1887
    %2179 = vmatprep.subr.bf16.mxu0 %v1893
    %2180 = vmatpush1.bf16.msra.mxu0 %v1892
    %2181 = vmatprep.subr.bf16.mxu0 %v1898
    %2182 = vmatpush1.bf16.msra.mxu0 %v1897
    %2183 = vmatprep.subr.bf16.mxu0 %v1903
    %2184 = vmatpush1.bf16.msra.mxu0 %v1902
    %2185 = vmatprep.subr.bf16.mxu0 %v1908
    %2186 = vmatpush1.bf16.msra.mxu0 %v1907
    %2187 = vmatprep.subr.bf16.mxu0 %v1913
    %2188 = vmatpush1.bf16.msra.mxu0 %v1912
    %2189 = vmatprep.subr.bf16.mxu0 %v1918
    %2190 = vmatpush1.bf16.msra.mxu0 %v1917
    %2191 = vmatprep.subr.bf16.mxu0 %v1923
    %2192 = vmatpush1.bf16.msra.mxu0 %v1922
    %2193 = vmatprep.subr.bf16.mxu0 %v1928
    %2194 = vmatpush1.bf16.msra.mxu0 %v1927
    %2195 = vmatprep.subr.bf16.mxu0 %v1933
    %2196 = vmatpush1.bf16.msra.mxu0 %v1932
    %2197 = vmatprep.subr.bf16.mxu0 %v1938
    %2198 = vmatpush1.bf16.msra.mxu0 %v1937
    %2199 = vmatprep.subr.bf16.mxu0 %v1943
    %2200 = vmatpush1.bf16.msra.mxu0 %v1942
    %2201 = vmatprep.subr.bf16.mxu0 %v1948
    %2202 = vmatpush1.bf16.msra.mxu0 %v1947
    %2203 = vmatprep.subr.bf16.mxu0 %v1953
    %2204 = vmatpush1.bf16.msra.mxu0 %v1952
    %2205 = vmatprep.subr.bf16.mxu0 %v1958
    %2206 = vmatpush1.bf16.msra.mxu0 %v1957
    %2207 = vmatprep.mubr.bf16.mxu0 %v2127
    %2208 = vmatmul.mubr.bf16.gmra.mrb[0].mxu0 %v2126
    %v2209 = vpop.f32.mrb[0].mxu0
    %v2210 = vadd.f32 0.0, %v2209
    %v2211 = vpop.f32.mrb[0].mxu0
    %v2212 = vadd.f32 0.0, %v2211
    %v2213 = vpop.f32.mrb[0].mxu0
    %v2214 = vadd.f32 0.0, %v2213
    %v2215 = vpop.f32.mrb[0].mxu0
    %v2216 = vadd.f32 0.0, %v2215
    %2217 = vmatprep.mubr.bf16.mxu0 %v2132
    %2218 = vmatmul.mubr.bf16.gmra.mrb[0].mxu0 %v2131
    %v2219 = vpop.f32.mrb[0].mxu0
    %v2220 = vadd.f32 0.0, %v2219
    %v2221 = vpop.f32.mrb[0].mxu0
    %v2222 = vadd.f32 0.0, %v2221
    %v2223 = vpop.f32.mrb[0].mxu0
    %v2224 = vadd.f32 0.0, %v2223
    %v2225 = vpop.f32.mrb[0].mxu0
    %v2226 = vadd.f32 0.0, %v2225
    %2227 = vmatprep.mubr.bf16.mxu0 %v2137
    %2228 = vmatmul.mubr.bf16.gmra.mrb[0].mxu0 %v2136
    %v2229 = vpop.f32.mrb[0].mxu0
    %v2230 = vadd.f32 0.0, %v2229
    %v2231 = vpop.f32.mrb[0].mxu0
    %v2232 = vadd.f32 0.0, %v2231
    %v2233 = vpop.f32.mrb[0].mxu0
    %v2234 = vadd.f32 0.0, %v2233
    %v2235 = vpop.f32.mrb[0].mxu0
    %v2236 = vadd.f32 0.0, %v2235
    %2237 = vmatprep.mubr.bf16.mxu0 %v2142
    %2238 = vmatmul.mubr.bf16.gmra.mrb[0].mxu0 %v2141
    %v2239 = vpop.f32.mrb[0].mxu0
    %v2240 = vadd.f32 0.0, %v2239
    %v2241 = vpop.f32.mrb[0].mxu0
    %v2242 = vadd.f32 0.0, %v2241
    %v2243 = vpop.f32.mrb[0].mxu0
    %v2244 = vadd.f32 0.0, %v2243
    %v2245 = vpop.f32.mrb[0].mxu0
    %v2246 = vadd.f32 0.0, %v2245
    %2247 = vdwg.mxu0
    %2248 = vmatprep.subr.bf16.mxu0 %v1963
    %2249 = vmatpush1.bf16.msra.mxu0 %v1962
    %2250 = vmatprep.subr.bf16.mxu0 %v1968
    %2251 = vmatpush1.bf16.msra.mxu0 %v1967
    %2252 = vmatprep.subr.bf16.mxu0 %v1973
    %2253 = vmatpush1.bf16.msra.mxu0 %v1972
    %2254 = vmatprep.subr.bf16.mxu0 %v1978
    %2255 = vmatpush1.bf16.msra.mxu0 %v1977
    %2256 = vmatprep.subr.bf16.mxu0 %v1983
    %2257 = vmatpush1.bf16.msra.mxu0 %v1982
    %2258 = vmatprep.subr.bf16.mxu0 %v1988
    %2259 = vmatpush1.bf16.msra.mxu0 %v1987
    %2260 = vmatprep.subr.bf16.mxu0 %v1993
    %2261 = vmatpush1.bf16.msra.mxu0 %v1992
    %2262 = vmatprep.subr.bf16.mxu0 %v1998
    %2263 = vmatpush1.bf16.msra.mxu0 %v1997
    %2264 = vmatprep.subr.bf16.mxu0 %v2003
    %2265 = vmatpush1.bf16.msra.mxu0 %v2002
    %2266 = vmatprep.subr.bf16.mxu0 %v2008
    %2267 = vmatpush1.bf16.msra.mxu0 %v2007
    %2268 = vmatprep.subr.bf16.mxu0 %v2013
    %2269 = vmatpush1.bf16.msra.mxu0 %v2012
    %2270 = vmatprep.subr.bf16.mxu0 %v2018
    %2271 = vmatpush1.bf16.msra.mxu0 %v2017
    %2272 = vmatprep.subr.bf16.mxu0 %v2023
    %2273 = vmatpush1.bf16.msra.mxu0 %v2022
    %2274 = vmatprep.subr.bf16.mxu0 %v2028
    %2275 = vmatpush1.bf16.msra.mxu0 %v2027
    %2276 = vmatprep.subr.bf16.mxu0 %v2033
    %2277 = vmatpush1.bf16.msra.mxu0 %v2032
    %2278 = vmatprep.subr.bf16.mxu0 %v2038
    %2279 = vmatpush1.bf16.msra.mxu0 %v2037
    %2280 = vmatprep.mubr.bf16.mxu0 %v2129
    %2281 = vmatmul.mubr.bf16.gmra.mrb[0].mxu0 %v2128
    %v2282 = vpop.f32.mrb[0].mxu0
    %v2283 = vadd.f32 %v2210, %v2282
    %v2284 = vpop.f32.mrb[0].mxu0
    %v2285 = vadd.f32 %v2212, %v2284
    %v2286 = vpop.f32.mrb[0].mxu0
    %v2287 = vadd.f32 %v2214, %v2286
    %v2288 = vpop.f32.mrb[0].mxu0
    %v2289 = vadd.f32 %v2216, %v2288
    %2290 = vmatprep.mubr.bf16.mxu0 %v2134
    %2291 = vmatmul.mubr.bf16.gmra.mrb[0].mxu0 %v2133
    %v2292 = vpop.f32.mrb[0].mxu0
    %v2293 = vadd.f32 %v2220, %v2292
    %v2294 = vpop.f32.mrb[0].mxu0
    %v2295 = vadd.f32 %v2222, %v2294
    %v2296 = vpop.f32.mrb[0].mxu0
    %v2297 = vadd.f32 %v2224, %v2296
    %v2298 = vpop.f32.mrb[0].mxu0
    %v2299 = vadd.f32 %v2226, %v2298
    %2300 = vmatprep.mubr.bf16.mxu0 %v2139
    %2301 = vmatmul.mubr.bf16.gmra.mrb[0].mxu0 %v2138
    %v2302 = vpop.f32.mrb[0].mxu0
    %v2303 = vadd.f32 %v2230, %v2302
    %v2304 = vpop.f32.mrb[0].mxu0
    %v2305 = vadd.f32 %v2232, %v2304
    %v2306 = vpop.f32.mrb[0].mxu0
    %v2307 = vadd.f32 %v2234, %v2306
    %v2308 = vpop.f32.mrb[0].mxu0
    %v2309 = vadd.f32 %v2236, %v2308
    %2310 = vmatprep.mubr.bf16.mxu0 %v2144
    %2311 = vmatmul.mubr.bf16.gmra.mrb[0].mxu0 %v2143
    %v2312 = vpop.f32.mrb[0].mxu0
    %v2313 = vadd.f32 %v2240, %v2312
    %v2314 = vpop.f32.mrb[0].mxu0
    %v2315 = vadd.f32 %v2242, %v2314
    %v2316 = vpop.f32.mrb[0].mxu0
    %v2317 = vadd.f32 %v2244, %v2316
    %v2318 = vpop.f32.mrb[0].mxu0
    %v2319 = vadd.f32 %v2246, %v2318
    %2320 = vdwg.mxu0
    %2321 = vmatprep.subr.bf16.mxu0 %v2043
    %2322 = vmatpush1.bf16.msra.mxu0 %v2042
    %2323 = vmatprep.subr.bf16.mxu0 %v2048
    %2324 = vmatpush1.bf16.msra.mxu0 %v2047
    %2325 = vmatprep.subr.bf16.mxu0 %v2053
    %2326 = vmatpush1.bf16.msra.mxu0 %v2052
    %2327 = vmatprep.subr.bf16.mxu0 %v2058
    %2328 = vmatpush1.bf16.msra.mxu0 %v2057
    %2329 = vmatprep.subr.bf16.mxu0 0
    %2330 = vmatpush1.bf16.msra.mxu0 0
    %2331 = vmatprep.subr.bf16.mxu0 0
    %2332 = vmatpush1.bf16.msra.mxu0 0
    %2333 = vmatprep.subr.bf16.mxu0 0
    %2334 = vmatpush1.bf16.msra.mxu0 0
    %2335 = vmatprep.subr.bf16.mxu0 0
    %2336 = vmatpush1.bf16.msra.mxu0 0
    %2337 = vmatprep.subr.bf16.mxu0 0
    %2338 = vmatpush1.bf16.msra.mxu0 0
    %2339 = vmatprep.subr.bf16.mxu0 0
    %2340 = vmatpush1.bf16.msra.mxu0 0
    %2341 = vmatprep.subr.bf16.mxu0 0
    %2342 = vmatpush1.bf16.msra.mxu0 0
    %2343 = vmatprep.subr.bf16.mxu0 0
    %2344 = vmatpush1.bf16.msra.mxu0 0
    %2345 = vmatprep.subr.bf16.mxu0 0
    %2346 = vmatpush1.bf16.msra.mxu0 0
    %2347 = vmatprep.subr.bf16.mxu0 0
    %2348 = vmatpush1.bf16.msra.mxu0 0
    %2349 = vmatprep.subr.bf16.mxu0 0
    %2350 = vmatpush1.bf16.msra.mxu0 0
    %2351 = vmatprep.subr.bf16.mxu0 0
    %2352 = vmatpush1.bf16.msra.mxu0 0
    %2353 = vmatprep.mubr.bf16.mxu0 0
    %2354 = vmatmul.mubr.bf16.gmra.mrb[0].mxu0 %v2164
    %v2355 = vpop.f32.mrb[0].mxu0
    %v2356 = vadd.f32 %v2283, %v2355
    %v2357 = vpop.f32.mrb[0].mxu0
    %v2358 = vadd.f32 %v2285, %v2357
    %v2359 = vpop.f32.mrb[0].mxu0
    %v2360 = vadd.f32 %v2287, %v2359
    %v2361 = vpop.f32.mrb[0].mxu0
    %v2362 = vadd.f32 %v2289, %v2361
    %2363 = vmatprep.mubr.bf16.mxu0 0
    %2364 = vmatmul.mubr.bf16.gmra.mrb[0].mxu0 %v2167
    %v2365 = vpop.f32.mrb[0].mxu0
    %v2366 = vadd.f32 %v2293, %v2365
    %v2367 = vpop.f32.mrb[0].mxu0
    %v2368 = vadd.f32 %v2295, %v2367
    %v2369 = vpop.f32.mrb[0].mxu0
    %v2370 = vadd.f32 %v2297, %v2369
    %v2371 = vpop.f32.mrb[0].mxu0
    %v2372 = vadd.f32 %v2299, %v2371
    %2373 = vmatprep.mubr.bf16.mxu0 0
    %2374 = vmatmul.mubr.bf16.gmra.mrb[0].mxu0 %v2170
    %v2375 = vpop.f32.mrb[0].mxu0
    %v2376 = vadd.f32 %v2303, %v2375
    %v2377 = vpop.f32.mrb[0].mxu0
    %v2378 = vadd.f32 %v2305, %v2377
    %v2379 = vpop.f32.mrb[0].mxu0
    %v2380 = vadd.f32 %v2307, %v2379
    %v2381 = vpop.f32.mrb[0].mxu0
    %v2382 = vadd.f32 %v2309, %v2381
    %2383 = vmatprep.mubr.bf16.mxu0 0
    %2384 = vmatmul.mubr.bf16.gmra.mrb[0].mxu0 %v2173
    %v2385 = vpop.f32.mrb[0].mxu0
    %v2386 = vadd.f32 %v2313, %v2385
    %v2387 = vpop.f32.mrb[0].mxu0
    %v2388 = vadd.f32 %v2315, %v2387
    %v2389 = vpop.f32.mrb[0].mxu0
    %v2390 = vadd.f32 %v2317, %v2389
    %v2391 = vpop.f32.mrb[0].mxu0
    %v2392 = vadd.f32 %v2319, %v2391
    %2393 = vdwg.mxu0
    %2394 = vmatprep.subr.bf16.mxu0 %v1885
    %2395 = vmatpush1.bf16.msra.mxu0 %v1884
    %2396 = vmatprep.subr.bf16.mxu0 %v1890
    %2397 = vmatpush1.bf16.msra.mxu0 %v1889
    %2398 = vmatprep.subr.bf16.mxu0 %v1895
    %2399 = vmatpush1.bf16.msra.mxu0 %v1894
    %2400 = vmatprep.subr.bf16.mxu0 %v1900
    %2401 = vmatpush1.bf16.msra.mxu0 %v1899
    %2402 = vmatprep.subr.bf16.mxu0 %v1905
    %2403 = vmatpush1.bf16.msra.mxu0 %v1904
    %2404 = vmatprep.subr.bf16.mxu0 %v1910
    %2405 = vmatpush1.bf16.msra.mxu0 %v1909
    %2406 = vmatprep.subr.bf16.mxu0 %v1915
    %2407 = vmatpush1.bf16.msra.mxu0 %v1914
    %2408 = vmatprep.subr.bf16.mxu0 %v1920
    %2409 = vmatpush1.bf16.msra.mxu0 %v1919
    %2410 = vmatprep.subr.bf16.mxu0 %v1925
    %2411 = vmatpush1.bf16.msra.mxu0 %v1924
    %2412 = vmatprep.subr.bf16.mxu0 %v1930
    %2413 = vmatpush1.bf16.msra.mxu0 %v1929
    %2414 = vmatprep.subr.bf16.mxu0 %v1935
    %2415 = vmatpush1.bf16.msra.mxu0 %v1934
    %2416 = vmatprep.subr.bf16.mxu0 %v1940
    %2417 = vmatpush1.bf16.msra.mxu0 %v1939
    %2418 = vmatprep.subr.bf16.mxu0 %v1945
    %2419 = vmatpush1.bf16.msra.mxu0 %v1944
    %2420 = vmatprep.subr.bf16.mxu0 %v1950
    %2421 = vmatpush1.bf16.msra.mxu0 %v1949
    %2422 = vmatprep.subr.bf16.mxu0 %v1955
    %2423 = vmatpush1.bf16.msra.mxu0 %v1954
    %2424 = vmatprep.subr.bf16.mxu0 %v1960
    %2425 = vmatpush1.bf16.msra.mxu0 %v1959
    %2426 = vmatprep.mubr.bf16.mxu0 %v2127
    %2427 = vmatmul.mubr.bf16.gmra.mrb[0].mxu0 %v2126
    %v2428 = vpop.f32.mrb[0].mxu0
    %v2429 = vadd.f32 0.0, %v2428
    %v2430 = vpop.f32.mrb[0].mxu0
    %v2431 = vadd.f32 0.0, %v2430
    %v2432 = vpop.f32.mrb[0].mxu0
    %v2433 = vadd.f32 0.0, %v2432
    %v2434 = vpop.f32.mrb[0].mxu0
    %v2435 = vadd.f32 0.0, %v2434
    %2436 = vmatprep.mubr.bf16.mxu0 %v2132
    %2437 = vmatmul.mubr.bf16.gmra.mrb[0].mxu0 %v2131
    %v2438 = vpop.f32.mrb[0].mxu0
    %v2439 = vadd.f32 0.0, %v2438
    %v2440 = vpop.f32.mrb[0].mxu0
    %v2441 = vadd.f32 0.0, %v2440
    %v2442 = vpop.f32.mrb[0].mxu0
    %v2443 = vadd.f32 0.0, %v2442
    %v2444 = vpop.f32.mrb[0].mxu0
    %v2445 = vadd.f32 0.0, %v2444
    %2446 = vmatprep.mubr.bf16.mxu0 %v2137
    %2447 = vmatmul.mubr.bf16.gmra.mrb[0].mxu0 %v2136
    %v2448 = vpop.f32.mrb[0].mxu0
    %v2449 = vadd.f32 0.0, %v2448
    %v2450 = vpop.f32.mrb[0].mxu0
    %v2451 = vadd.f32 0.0, %v2450
    %v2452 = vpop.f32.mrb[0].mxu0
    %v2453 = vadd.f32 0.0, %v2452
    %v2454 = vpop.f32.mrb[0].mxu0
    %v2455 = vadd.f32 0.0, %v2454
    %2456 = vmatprep.mubr.bf16.mxu0 %v2142
    %2457 = vmatmul.mubr.bf16.gmra.mrb[0].mxu0 %v2141
    %v2458 = vpop.f32.mrb[0].mxu0
    %v2459 = vadd.f32 0.0, %v2458
    %v2460 = vpop.f32.mrb[0].mxu0
    %v2461 = vadd.f32 0.0, %v2460
    %v2462 = vpop.f32.mrb[0].mxu0
    %v2463 = vadd.f32 0.0, %v2462
    %v2464 = vpop.f32.mrb[0].mxu0
    %v2465 = vadd.f32 0.0, %v2464
    %2466 = vdwg.mxu0
    %2467 = vmatprep.subr.bf16.mxu0 %v1965
    %2468 = vmatpush1.bf16.msra.mxu0 %v1964
    %2469 = vmatprep.subr.bf16.mxu0 %v1970
    %2470 = vmatpush1.bf16.msra.mxu0 %v1969
    %2471 = vmatprep.subr.bf16.mxu0 %v1975
    %2472 = vmatpush1.bf16.msra.mxu0 %v1974
    %2473 = vmatprep.subr.bf16.mxu0 %v1980
    %2474 = vmatpush1.bf16.msra.mxu0 %v1979
    %2475 = vmatprep.subr.bf16.mxu0 %v1985
    %2476 = vmatpush1.bf16.msra.mxu0 %v1984
    %2477 = vmatprep.subr.bf16.mxu0 %v1990
    %2478 = vmatpush1.bf16.msra.mxu0 %v1989
    %2479 = vmatprep.subr.bf16.mxu0 %v1995
    %2480 = vmatpush1.bf16.msra.mxu0 %v1994
    %2481 = vmatprep.subr.bf16.mxu0 %v2000
    %2482 = vmatpush1.bf16.msra.mxu0 %v1999
    %2483 = vmatprep.subr.bf16.mxu0 %v2005
    %2484 = vmatpush1.bf16.msra.mxu0 %v2004
    %2485 = vmatprep.subr.bf16.mxu0 %v2010
    %2486 = vmatpush1.bf16.msra.mxu0 %v2009
    %2487 = vmatprep.subr.bf16.mxu0 %v2015
    %2488 = vmatpush1.bf16.msra.mxu0 %v2014
    %2489 = vmatprep.subr.bf16.mxu0 %v2020
    %2490 = vmatpush1.bf16.msra.mxu0 %v2019
    %2491 = vmatprep.subr.bf16.mxu0 %v2025
    %2492 = vmatpush1.bf16.msra.mxu0 %v2024
    %2493 = vmatprep.subr.bf16.mxu0 %v2030
    %2494 = vmatpush1.bf16.msra.mxu0 %v2029
    %2495 = vmatprep.subr.bf16.mxu0 %v2035
    %2496 = vmatpush1.bf16.msra.mxu0 %v2034
    %2497 = vmatprep.subr.bf16.mxu0 %v2040
    %2498 = vmatpush1.bf16.msra.mxu0 %v2039
    %2499 = vmatprep.mubr.bf16.mxu0 %v2129
    %2500 = vmatmul.mubr.bf16.gmra.mrb[0].mxu0 %v2128
    %v2501 = vpop.f32.mrb[0].mxu0
    %v2502 = vadd.f32 %v2429, %v2501
    %v2503 = vpop.f32.mrb[0].mxu0
    %v2504 = vadd.f32 %v2431, %v2503
    %v2505 = vpop.f32.mrb[0].mxu0
    %v2506 = vadd.f32 %v2433, %v2505
    %v2507 = vpop.f32.mrb[0].mxu0
    %v2508 = vadd.f32 %v2435, %v2507
    %2509 = vmatprep.mubr.bf16.mxu0 %v2134
    %2510 = vmatmul.mubr.bf16.gmra.mrb[0].mxu0 %v2133
    %v2511 = vpop.f32.mrb[0].mxu0
    %v2512 = vadd.f32 %v2439, %v2511
    %v2513 = vpop.f32.mrb[0].mxu0
    %v2514 = vadd.f32 %v2441, %v2513
    %v2515 = vpop.f32.mrb[0].mxu0
    %v2516 = vadd.f32 %v2443, %v2515
    %v2517 = vpop.f32.mrb[0].mxu0
    %v2518 = vadd.f32 %v2445, %v2517
    %2519 = vmatprep.mubr.bf16.mxu0 %v2139
    %2520 = vmatmul.mubr.bf16.gmra.mrb[0].mxu0 %v2138
    %v2521 = vpop.f32.mrb[0].mxu0
    %v2522 = vadd.f32 %v2449, %v2521
    %v2523 = vpop.f32.mrb[0].mxu0
    %v2524 = vadd.f32 %v2451, %v2523
    %v2525 = vpop.f32.mrb[0].mxu0
    %v2526 = vadd.f32 %v2453, %v2525
    %v2527 = vpop.f32.mrb[0].mxu0
    %v2528 = vadd.f32 %v2455, %v2527
    %2529 = vmatprep.mubr.bf16.mxu0 %v2144
    %2530 = vmatmul.mubr.bf16.gmra.mrb[0].mxu0 %v2143
    %v2531 = vpop.f32.mrb[0].mxu0
    %v2532 = vadd.f32 %v2459, %v2531
    %v2533 = vpop.f32.mrb[0].mxu0
    %v2534 = vadd.f32 %v2461, %v2533
    %v2535 = vpop.f32.mrb[0].mxu0
    %v2536 = vadd.f32 %v2463, %v2535
    %v2537 = vpop.f32.mrb[0].mxu0
    %v2538 = vadd.f32 %v2465, %v2537
    %2539 = vdwg.mxu0
    %2540 = vmatprep.subr.bf16.mxu0 %v2045
    %2541 = vmatpush1.bf16.msra.mxu0 %v2044
    %2542 = vmatprep.subr.bf16.mxu0 %v2050
    %2543 = vmatpush1.bf16.msra.mxu0 %v2049
    %2544 = vmatprep.subr.bf16.mxu0 %v2055
    %2545 = vmatpush1.bf16.msra.mxu0 %v2054
    %2546 = vmatprep.subr.bf16.mxu0 %v2060
    %2547 = vmatpush1.bf16.msra.mxu0 %v2059
    %2548 = vmatprep.subr.bf16.mxu0 0
    %2549 = vmatpush1.bf16.msra.mxu0 0
    %2550 = vmatprep.subr.bf16.mxu0 0
    %2551 = vmatpush1.bf16.msra.mxu0 0
    %2552 = vmatprep.subr.bf16.mxu0 0
    %2553 = vmatpush1.bf16.msra.mxu0 0
    %2554 = vmatprep.subr.bf16.mxu0 0
    %2555 = vmatpush1.bf16.msra.mxu0 0
    %2556 = vmatprep.subr.bf16.mxu0 0
    %2557 = vmatpush1.bf16.msra.mxu0 0
    %2558 = vmatprep.subr.bf16.mxu0 0
    %2559 = vmatpush1.bf16.msra.mxu0 0
    %2560 = vmatprep.subr.bf16.mxu0 0
    %2561 = vmatpush1.bf16.msra.mxu0 0
    %2562 = vmatprep.subr.bf16.mxu0 0
    %2563 = vmatpush1.bf16.msra.mxu0 0
    %2564 = vmatprep.subr.bf16.mxu0 0
    %2565 = vmatpush1.bf16.msra.mxu0 0
    %2566 = vmatprep.subr.bf16.mxu0 0
    %2567 = vmatpush1.bf16.msra.mxu0 0
    %2568 = vmatprep.subr.bf16.mxu0 0
    %2569 = vmatpush1.bf16.msra.mxu0 0
    %2570 = vmatprep.subr.bf16.mxu0 0
    %2571 = vmatpush1.bf16.msra.mxu0 0
    %2572 = vmatprep.mubr.bf16.mxu0 0
    %2573 = vmatmul.mubr.bf16.gmra.mrb[0].mxu0 %v2164
    %v2574 = vpop.f32.mrb[0].mxu0
    %v2575 = vadd.f32 %v2502, %v2574
    %v2576 = vpop.f32.mrb[0].mxu0
    %v2577 = vadd.f32 %v2504, %v2576
    %v2578 = vpop.f32.mrb[0].mxu0
    %v2579 = vadd.f32 %v2506, %v2578
    %v2580 = vpop.f32.mrb[0].mxu0
    %v2581 = vadd.f32 %v2508, %v2580
    %2582 = vmatprep.mubr.bf16.mxu0 0
    %2583 = vmatmul.mubr.bf16.gmra.mrb[0].mxu0 %v2167
    %v2584 = vpop.f32.mrb[0].mxu0
    %v2585 = vadd.f32 %v2512, %v2584
    %v2586 = vpop.f32.mrb[0].mxu0
    %v2587 = vadd.f32 %v2514, %v2586
    %v2588 = vpop.f32.mrb[0].mxu0
    %v2589 = vadd.f32 %v2516, %v2588
    %v2590 = vpop.f32.mrb[0].mxu0
    %v2591 = vadd.f32 %v2518, %v2590
    %2592 = vmatprep.mubr.bf16.mxu0 0
    %2593 = vmatmul.mubr.bf16.gmra.mrb[0].mxu0 %v2170
    %v2594 = vpop.f32.mrb[0].mxu0
    %v2595 = vadd.f32 %v2522, %v2594
    %v2596 = vpop.f32.mrb[0].mxu0
    %v2597 = vadd.f32 %v2524, %v2596
    %v2598 = vpop.f32.mrb[0].mxu0
    %v2599 = vadd.f32 %v2526, %v2598
    %v2600 = vpop.f32.mrb[0].mxu0
    %v2601 = vadd.f32 %v2528, %v2600
    %2602 = vmatprep.mubr.bf16.mxu0 0
    %2603 = vmatmul.mubr.bf16.gmra.mrb[0].mxu0 %v2173
    %v2604 = vpop.f32.mrb[0].mxu0
    %v2605 = vadd.f32 %v2532, %v2604
    %v2606 = vpop.f32.mrb[0].mxu0
    %v2607 = vadd.f32 %v2534, %v2606
    %v2608 = vpop.f32.mrb[0].mxu0
    %v2609 = vadd.f32 %v2536, %v2608
    %v2610 = vpop.f32.mrb[0].mxu0
    %v2611 = vadd.f32 %v2538, %v2610
    %2612 = vdwg.mxu0
    %2613 = vmatprep.subr.bf16.mxu0 0
    %2614 = vmatpush1.bf16.msra.mxu0 %v1886
    %2615 = vmatprep.subr.bf16.mxu0 0
    %2616 = vmatpush1.bf16.msra.mxu0 %v1891
    %2617 = vmatprep.subr.bf16.mxu0 0
    %2618 = vmatpush1.bf16.msra.mxu0 %v1896
    %2619 = vmatprep.subr.bf16.mxu0 0
    %2620 = vmatpush1.bf16.msra.mxu0 %v1901
    %2621 = vmatprep.subr.bf16.mxu0 0
    %2622 = vmatpush1.bf16.msra.mxu0 %v1906
    %2623 = vmatprep.subr.bf16.mxu0 0
    %2624 = vmatpush1.bf16.msra.mxu0 %v1911
    %2625 = vmatprep.subr.bf16.mxu0 0
    %2626 = vmatpush1.bf16.msra.mxu0 %v1916
    %2627 = vmatprep.subr.bf16.mxu0 0
    %2628 = vmatpush1.bf16.msra.mxu0 %v1921
    %2629 = vmatprep.subr.bf16.mxu0 0
    %2630 = vmatpush1.bf16.msra.mxu0 %v1926
    %2631 = vmatprep.subr.bf16.mxu0 0
    %2632 = vmatpush1.bf16.msra.mxu0 %v1931
    %2633 = vmatprep.subr.bf16.mxu0 0
    %2634 = vmatpush1.bf16.msra.mxu0 %v1936
    %2635 = vmatprep.subr.bf16.mxu0 0
    %2636 = vmatpush1.bf16.msra.mxu0 %v1941
    %2637 = vmatprep.subr.bf16.mxu0 0
    %2638 = vmatpush1.bf16.msra.mxu0 %v1946
    %2639 = vmatprep.subr.bf16.mxu0 0
    %2640 = vmatpush1.bf16.msra.mxu0 %v1951
    %2641 = vmatprep.subr.bf16.mxu0 0
    %2642 = vmatpush1.bf16.msra.mxu0 %v1956
    %2643 = vmatprep.subr.bf16.mxu0 0
    %2644 = vmatpush1.bf16.msra.mxu0 %v1961
    %2645 = vmatprep.mubr.bf16.mxu0 %v2127
    %2646 = vmatmul.mubr.bf16.gmra.mrb[0].mxu0 %v2126
    %v2647 = vpop.f32.mrb[0].mxu0
    %v2648 = vadd.f32 0.0, %v2647
    %v2649 = vpop.f32.mrb[0].mxu0
    %v2650 = vpop.f32.mrb[0].mxu0
    %v2651 = vadd.f32 0.0, %v2650
    %v2652 = vpop.f32.mrb[0].mxu0
    %2653 = vmatprep.mubr.bf16.mxu0 %v2132
    %2654 = vmatmul.mubr.bf16.gmra.mrb[0].mxu0 %v2131
    %v2655 = vpop.f32.mrb[0].mxu0
    %v2656 = vadd.f32 0.0, %v2655
    %v2657 = vpop.f32.mrb[0].mxu0
    %v2658 = vpop.f32.mrb[0].mxu0
    %v2659 = vadd.f32 0.0, %v2658
    %v2660 = vpop.f32.mrb[0].mxu0
    %2661 = vmatprep.mubr.bf16.mxu0 %v2137
    %2662 = vmatmul.mubr.bf16.gmra.mrb[0].mxu0 %v2136
    %v2663 = vpop.f32.mrb[0].mxu0
    %v2664 = vadd.f32 0.0, %v2663
    %v2665 = vpop.f32.mrb[0].mxu0
    %v2666 = vpop.f32.mrb[0].mxu0
    %v2667 = vadd.f32 0.0, %v2666
    %v2668 = vpop.f32.mrb[0].mxu0
    %2669 = vmatprep.mubr.bf16.mxu0 %v2142
    %2670 = vmatmul.mubr.bf16.gmra.mrb[0].mxu0 %v2141
    %v2671 = vpop.f32.mrb[0].mxu0
    %v2672 = vadd.f32 0.0, %v2671
    %v2673 = vpop.f32.mrb[0].mxu0
    %v2674 = vpop.f32.mrb[0].mxu0
    %v2675 = vadd.f32 0.0, %v2674
    %v2676 = vpop.f32.mrb[0].mxu0
    %2677 = vdwg.mxu0
    %2678 = vmatprep.subr.bf16.mxu0 0
    %2679 = vmatpush1.bf16.msra.mxu0 %v1966
    %2680 = vmatprep.subr.bf16.mxu0 0
    %2681 = vmatpush1.bf16.msra.mxu0 %v1971
    %2682 = vmatprep.subr.bf16.mxu0 0
    %2683 = vmatpush1.bf16.msra.mxu0 %v1976
    %2684 = vmatprep.subr.bf16.mxu0 0
    %2685 = vmatpush1.bf16.msra.mxu0 %v1981
    %2686 = vmatprep.subr.bf16.mxu0 0
    %2687 = vmatpush1.bf16.msra.mxu0 %v1986
    %2688 = vmatprep.subr.bf16.mxu0 0
    %2689 = vmatpush1.bf16.msra.mxu0 %v1991
    %2690 = vmatprep.subr.bf16.mxu0 0
    %2691 = vmatpush1.bf16.msra.mxu0 %v1996
    %2692 = vmatprep.subr.bf16.mxu0 0
    %2693 = vmatpush1.bf16.msra.mxu0 %v2001
    %2694 = vmatprep.subr.bf16.mxu0 0
    %2695 = vmatpush1.bf16.msra.mxu0 %v2006
    %2696 = vmatprep.subr.bf16.mxu0 0
    %2697 = vmatpush1.bf16.msra.mxu0 %v2011
    %2698 = vmatprep.subr.bf16.mxu0 0
    %2699 = vmatpush1.bf16.msra.mxu0 %v2016
    %2700 = vmatprep.subr.bf16.mxu0 0
    %2701 = vmatpush1.bf16.msra.mxu0 %v2021
    %2702 = vmatprep.subr.bf16.mxu0 0
    %2703 = vmatpush1.bf16.msra.mxu0 %v2026
    %2704 = vmatprep.subr.bf16.mxu0 0
    %2705 = vmatpush1.bf16.msra.mxu0 %v2031
    %2706 = vmatprep.subr.bf16.mxu0 0
    %2707 = vmatpush1.bf16.msra.mxu0 %v2036
    %2708 = vmatprep.subr.bf16.mxu0 0
    %2709 = vmatpush1.bf16.msra.mxu0 %v2041
    %2710 = vmatprep.mubr.bf16.mxu0 %v2129
    %2711 = vmatmul.mubr.bf16.gmra.mrb[0].mxu0 %v2128
    %v2712 = vpop.f32.mrb[0].mxu0
    %v2713 = vadd.f32 %v2648, %v2712
    %v2714 = vpop.f32.mrb[0].mxu0
    %v2715 = vpop.f32.mrb[0].mxu0
    %v2716 = vadd.f32 %v2651, %v2715
    %v2717 = vpop.f32.mrb[0].mxu0
    %2718 = vmatprep.mubr.bf16.mxu0 %v2134
    %2719 = vmatmul.mubr.bf16.gmra.mrb[0].mxu0 %v2133
    %v2720 = vpop.f32.mrb[0].mxu0
    %v2721 = vadd.f32 %v2656, %v2720
    %v2722 = vpop.f32.mrb[0].mxu0
    %v2723 = vpop.f32.mrb[0].mxu0
    %v2724 = vadd.f32 %v2659, %v2723
    %v2725 = vpop.f32.mrb[0].mxu0
    %2726 = vmatprep.mubr.bf16.mxu0 %v2139
    %2727 = vmatmul.mubr.bf16.gmra.mrb[0].mxu0 %v2138
    %v2728 = vpop.f32.mrb[0].mxu0
    %v2729 = vadd.f32 %v2664, %v2728
    %v2730 = vpop.f32.mrb[0].mxu0
    %v2731 = vpop.f32.mrb[0].mxu0
    %v2732 = vadd.f32 %v2667, %v2731
    %v2733 = vpop.f32.mrb[0].mxu0
    %2734 = vmatprep.mubr.bf16.mxu0 %v2144
    %2735 = vmatmul.mubr.bf16.gmra.mrb[0].mxu0 %v2143
    %v2736 = vpop.f32.mrb[0].mxu0
    %v2737 = vadd.f32 %v2672, %v2736
    %v2738 = vpop.f32.mrb[0].mxu0
    %v2739 = vpop.f32.mrb[0].mxu0
    %v2740 = vadd.f32 %v2675, %v2739
    %v2741 = vpop.f32.mrb[0].mxu0
    %2742 = vdwg.mxu0
    %2743 = vmatprep.subr.bf16.mxu0 0
    %2744 = vmatpush1.bf16.msra.mxu0 %v2046
    %2745 = vmatprep.subr.bf16.mxu0 0
    %2746 = vmatpush1.bf16.msra.mxu0 %v2051
    %2747 = vmatprep.subr.bf16.mxu0 0
    %2748 = vmatpush1.bf16.msra.mxu0 %v2056
    %2749 = vmatprep.subr.bf16.mxu0 0
    %2750 = vmatpush1.bf16.msra.mxu0 %v2061
    %2751 = vmatprep.subr.bf16.mxu0 0
    %2752 = vmatpush1.bf16.msra.mxu0 0
    %2753 = vmatprep.subr.bf16.mxu0 0
    %2754 = vmatpush1.bf16.msra.mxu0 0
    %2755 = vmatprep.subr.bf16.mxu0 0
    %2756 = vmatpush1.bf16.msra.mxu0 0
    %2757 = vmatprep.subr.bf16.mxu0 0
    %2758 = vmatpush1.bf16.msra.mxu0 0
    %2759 = vmatprep.subr.bf16.mxu0 0
    %2760 = vmatpush1.bf16.msra.mxu0 0
    %2761 = vmatprep.subr.bf16.mxu0 0
    %2762 = vmatpush1.bf16.msra.mxu0 0
    %2763 = vmatprep.subr.bf16.mxu0 0
    %2764 = vmatpush1.bf16.msra.mxu0 0
    %2765 = vmatprep.subr.bf16.mxu0 0
    %2766 = vmatpush1.bf16.msra.mxu0 0
    %2767 = vmatprep.subr.bf16.mxu0 0
    %2768 = vmatpush1.bf16.msra.mxu0 0
    %2769 = vmatprep.subr.bf16.mxu0 0
    %2770 = vmatpush1.bf16.msra.mxu0 0
    %2771 = vmatprep.subr.bf16.mxu0 0
    %2772 = vmatpush1.bf16.msra.mxu0 0
    %2773 = vmatprep.subr.bf16.mxu0 0
    %2774 = vmatpush1.bf16.msra.mxu0 0
    %2775 = vmatprep.mubr.bf16.mxu0 0
    %2776 = vmatmul.mubr.bf16.gmra.mrb[0].mxu0 %v2164
    %v2777 = vpop.f32.mrb[0].mxu0
    %v2778 = vadd.f32 %v2713, %v2777
    %v2779 = vpop.f32.mrb[0].mxu0
    %v2780 = vpop.f32.mrb[0].mxu0
    %v2781 = vadd.f32 %v2716, %v2780
    %v2782 = vpop.f32.mrb[0].mxu0
    %2783 = vmatprep.mubr.bf16.mxu0 0
    %2784 = vmatmul.mubr.bf16.gmra.mrb[0].mxu0 %v2167
    %v2785 = vpop.f32.mrb[0].mxu0
    %v2786 = vadd.f32 %v2721, %v2785
    %v2787 = vpop.f32.mrb[0].mxu0
    %v2788 = vpop.f32.mrb[0].mxu0
    %v2789 = vadd.f32 %v2724, %v2788
    %v2790 = vpop.f32.mrb[0].mxu0
    %2791 = vmatprep.mubr.bf16.mxu0 0
    %2792 = vmatmul.mubr.bf16.gmra.mrb[0].mxu0 %v2170
    %v2793 = vpop.f32.mrb[0].mxu0
    %v2794 = vadd.f32 %v2729, %v2793
    %v2795 = vpop.f32.mrb[0].mxu0
    %v2796 = vpop.f32.mrb[0].mxu0
    %v2797 = vadd.f32 %v2732, %v2796
    %v2798 = vpop.f32.mrb[0].mxu0
    %2799 = vmatprep.mubr.bf16.mxu0 0
    %2800 = vmatmul.mubr.bf16.gmra.mrb[0].mxu0 %v2173
    %v2801 = vpop.f32.mrb[0].mxu0
    %v2802 = vadd.f32 %v2737, %v2801
    %v2803 = vpop.f32.mrb[0].mxu0
    %v2804 = vpop.f32.mrb[0].mxu0
    %v2805 = vadd.f32 %v2740, %v2804
    %v2806 = vpop.f32.mrb[0].mxu0
    %2807 = vdwg.mxu0
    %v2808 = vld [vmem:[%s4] sm:$0xff]
    %v2809 = vld [vmem:[%s4 + $0x8] sm:$0xff]
    %v2810 = vld [vmem:[%s4 + $0x10] sm:$0xff]
    %v2811 = vld [vmem:[%s4 + $0x18] sm:$0xff]
    %v2812 = vld [vmem:[%s4 + $0x20] sm:$0xff]
    %v2813 = vld [vmem:[%s4 + $0x28] sm:$0xff]
    %v2814 = vld [vmem:[%s4 + $0x30] sm:$0xff]
    %v2815 = vld [vmem:[%s4 + $0x38] sm:$0xff]
    %2817 = vset.pattern.permute.xlu0 0
    %2818 = vperm.xlu0 %2817, %v2808
    %v2819 = vpop.permute.xlu0 %2818
    %2822 = vset.pattern.permute.xlu0 0
    %2823 = vperm.xlu0 %2822, %v2809
    %v2824 = vpop.permute.xlu0 %2823
    %2827 = vset.pattern.permute.xlu0 0
    %2828 = vperm.xlu0 %2827, %v2810
    %v2829 = vpop.permute.xlu0 %2828
    %2832 = vset.pattern.permute.xlu0 0
    %2833 = vperm.xlu0 %2832, %v2811
    %v2834 = vpop.permute.xlu0 %2833
    %2837 = vset.pattern.permute.xlu0 0
    %2838 = vperm.xlu0 %2837, %v2812
    %v2839 = vpop.permute.xlu0 %2838
    %2842 = vset.pattern.permute.xlu0 0
    %2843 = vperm.xlu0 %2842, %v2813
    %v2844 = vpop.permute.xlu0 %2843
    %2847 = vset.pattern.permute.xlu0 0
    %2848 = vperm.xlu0 %2847, %v2814
    %v2849 = vpop.permute.xlu0 %2848
    %2852 = vset.pattern.permute.xlu0 0
    %2853 = vperm.xlu0 %2852, %v2815
    %v2854 = vpop.permute.xlu0 %2853
    %v2856 = vmul.f32 %v2356, %v2819
    %v2857 = vmul.f32 %v2358, %v2819
    %v2858 = vmul.f32 %v2575, %v2819
    %v2859 = vmul.f32 %v2577, %v2819
    %v2860 = vmul.f32 %v2778, %v2819
    %v2861 = vmul.f32 %v2360, %v2824
    %v2862 = vmul.f32 %v2362, %v2824
    %v2863 = vmul.f32 %v2579, %v2824
    %v2864 = vmul.f32 %v2581, %v2824
    %v2865 = vmul.f32 %v2781, %v2824
    %v2866 = vmul.f32 %v2366, %v2829
    %v2867 = vmul.f32 %v2368, %v2829
    %v2868 = vmul.f32 %v2585, %v2829
    %v2869 = vmul.f32 %v2587, %v2829
    %v2870 = vmul.f32 %v2786, %v2829
    %v2871 = vmul.f32 %v2370, %v2834
    %v2872 = vmul.f32 %v2372, %v2834
    %v2873 = vmul.f32 %v2589, %v2834
    %v2874 = vmul.f32 %v2591, %v2834
    %v2875 = vmul.f32 %v2789, %v2834
    %v2876 = vmul.f32 %v2376, %v2839
    %v2877 = vmul.f32 %v2378, %v2839
    %v2878 = vmul.f32 %v2595, %v2839
    %v2879 = vmul.f32 %v2597, %v2839
    %v2880 = vmul.f32 %v2794, %v2839
    %v2881 = vmul.f32 %v2380, %v2844
    %v2882 = vmul.f32 %v2382, %v2844
    %v2883 = vmul.f32 %v2599, %v2844
    %v2884 = vmul.f32 %v2601, %v2844
    %v2885 = vmul.f32 %v2797, %v2844
    %v2886 = vmul.f32 %v2386, %v2849
    %v2887 = vmul.f32 %v2388, %v2849
    %v2888 = vmul.f32 %v2605, %v2849
    %v2889 = vmul.f32 %v2607, %v2849
    %v2890 = vmul.f32 %v2802, %v2849
    %v2891 = vmul.f32 %v2390, %v2854
    %v2892 = vmul.f32 %v2392, %v2854
    %v2893 = vmul.f32 %v2609, %v2854
    %v2894 = vmul.f32 %v2611, %v2854
    %v2895 = vmul.f32 %v2805, %v2854
    %v2896 = vld [vmem:[%s5] sm:$0xff]
    %v2897 = vld [vmem:[%s5 + $0x8] sm:$0xff]
    %v2898 = vld [vmem:[%s5 + $0x10] sm:$0xff]
    %v2899 = vld [vmem:[%s5 + $0x18] sm:$0xff]
    %v2900 = vld [vmem:[%s5 + $0x20] sm:$0xff]
    %v2901 = vld [vmem:[%s5 + $0x28] sm:$0xff]
    %v2902 = vld [vmem:[%s5 + $0x30] sm:$0xff]
    %v2903 = vld [vmem:[%s5 + $0x38] sm:$0xff]
    %2905 = vset.pattern.permute.xlu0 0
    %2906 = vperm.xlu0 %2905, %v2896
    %v2907 = vpop.permute.xlu0 %2906
    %2910 = vset.pattern.permute.xlu0 0
    %2911 = vperm.xlu0 %2910, %v2897
    %v2912 = vpop.permute.xlu0 %2911
    %2915 = vset.pattern.permute.xlu0 0
    %2916 = vperm.xlu0 %2915, %v2898
    %v2917 = vpop.permute.xlu0 %2916
    %2920 = vset.pattern.permute.xlu0 0
    %2921 = vperm.xlu0 %2920, %v2899
    %v2922 = vpop.permute.xlu0 %2921
    %2925 = vset.pattern.permute.xlu0 0
    %2926 = vperm.xlu0 %2925, %v2900
    %v2927 = vpop.permute.xlu0 %2926
    %2930 = vset.pattern.permute.xlu0 0
    %2931 = vperm.xlu0 %2930, %v2901
    %v2932 = vpop.permute.xlu0 %2931
    %2935 = vset.pattern.permute.xlu0 0
    %2936 = vperm.xlu0 %2935, %v2902
    %v2937 = vpop.permute.xlu0 %2936
    %2940 = vset.pattern.permute.xlu0 0
    %2941 = vperm.xlu0 %2940, %v2903
    %v2942 = vpop.permute.xlu0 %2941
    %v2944 = vadd.f32 %v2856, %v2907
    %v2945 = vadd.f32 %v2857, %v2907
    %v2946 = vadd.f32 %v2858, %v2907
    %v2947 = vadd.f32 %v2859, %v2907
    %v2948 = vadd.f32 %v2860, %v2907
    %v2949 = vadd.f32 %v2861, %v2912
    %v2950 = vadd.f32 %v2862, %v2912
    %v2951 = vadd.f32 %v2863, %v2912
    %v2952 = vadd.f32 %v2864, %v2912
    %v2953 = vadd.f32 %v2865, %v2912
    %v2954 = vadd.f32 %v2866, %v2917
    %v2955 = vadd.f32 %v2867, %v2917
    %v2956 = vadd.f32 %v2868, %v2917
    %v2957 = vadd.f32 %v2869, %v2917
    %v2958 = vadd.f32 %v2870, %v2917
    %v2959 = vadd.f32 %v2871, %v2922
    %v2960 = vadd.f32 %v2872, %v2922
    %v2961 = vadd.f32 %v2873, %v2922
    %v2962 = vadd.f32 %v2874, %v2922
    %v2963 = vadd.f32 %v2875, %v2922
    %v2964 = vadd.f32 %v2876, %v2927
    %v2965 = vadd.f32 %v2877, %v2927
    %v2966 = vadd.f32 %v2878, %v2927
    %v2967 = vadd.f32 %v2879, %v2927
    %v2968 = vadd.f32 %v2880, %v2927
    %v2969 = vadd.f32 %v2881, %v2932
    %v2970 = vadd.f32 %v2882, %v2932
    %v2971 = vadd.f32 %v2883, %v2932
    %v2972 = vadd.f32 %v2884, %v2932
    %v2973 = vadd.f32 %v2885, %v2932
    %v2974 = vadd.f32 %v2886, %v2937
    %v2975 = vadd.f32 %v2887, %v2937
    %v2976 = vadd.f32 %v2888, %v2937
    %v2977 = vadd.f32 %v2889, %v2937
    %v2978 = vadd.f32 %v2890, %v2937
    %v2979 = vadd.f32 %v2891, %v2942
    %v2980 = vadd.f32 %v2892, %v2942
    %v2981 = vadd.f32 %v2893, %v2942
    %v2982 = vadd.f32 %v2894, %v2942
    %v2983 = vadd.f32 %v2895, %v2942
    %v2984 = vmax.f32 %v2944, 0.0
    %v2985 = vmax.f32 %v2945, 0.0
    %v2986 = vmax.f32 %v2946, 0.0
    %v2987 = vmax.f32 %v2947, 0.0
    %v2988 = vmax.f32 %v2948, 0.0
    %v2989 = vmax.f32 %v2949, 0.0
    %v2990 = vmax.f32 %v2950, 0.0
    %v2991 = vmax.f32 %v2951, 0.0
    %v2992 = vmax.f32 %v2952, 0.0
    %v2993 = vmax.f32 %v2953, 0.0
    %v2994 = vmax.f32 %v2954, 0.0
    %v2995 = vmax.f32 %v2955, 0.0
    %v2996 = vmax.f32 %v2956, 0.0
    %v2997 = vmax.f32 %v2957, 0.0
    %v2998 = vmax.f32 %v2958, 0.0
    %v2999 = vmax.f32 %v2959, 0.0
    %v3000 = vmax.f32 %v2960, 0.0
    %v3001 = vmax.f32 %v2961, 0.0
    %v3002 = vmax.f32 %v2962, 0.0
    %v3003 = vmax.f32 %v2963, 0.0
    %v3004 = vmax.f32 %v2964, 0.0
    %v3005 = vmax.f32 %v2965, 0.0
    %v3006 = vmax.f32 %v2966, 0.0
    %v3007 = vmax.f32 %v2967, 0.0
    %v3008 = vmax.f32 %v2968, 0.0
    %v3009 = vmax.f32 %v2969, 0.0
    %v3010 = vmax.f32 %v2970, 0.0
    %v3011 = vmax.f32 %v2971, 0.0
    %v3012 = vmax.f32 %v2972, 0.0
    %v3013 = vmax.f32 %v2973, 0.0
    %v3014 = vmax.f32 %v2974, 0.0
    %v3015 = vmax.f32 %v2975, 0.0
    %v3016 = vmax.f32 %v2976, 0.0
    %v3017 = vmax.f32 %v2977, 0.0
    %v3018 = vmax.f32 %v2978, 0.0
    %v3019 = vmax.f32 %v2979, 0.0
    %v3020 = vmax.f32 %v2980, 0.0
    %v3021 = vmax.f32 %v2981, 0.0
    %v3022 = vmax.f32 %v2982, 0.0
    %v3023 = vmax.f32 %v2983, 0.0
    %v3024 = vmul.f32 %v2984, %v460
    %v3025 = vmul.f32 %v2985, %v464
    %v3026 = vmul.f32 %v2986, %v468
    %v3027 = vmul.f32 %v2987, %v472
    %v3028 = vmul.f32 %v2988, %v476
    %v3029 = vmul.f32 %v2989, %v460
    %v3030 = vmul.f32 %v2990, %v464
    %v3031 = vmul.f32 %v2991, %v468
    %v3032 = vmul.f32 %v2992, %v472
    %v3033 = vmul.f32 %v2993, %v476
    %v3034 = vmul.f32 %v2994, %v460
    %v3035 = vmul.f32 %v2995, %v464
    %v3036 = vmul.f32 %v2996, %v468
    %v3037 = vmul.f32 %v2997, %v472
    %v3038 = vmul.f32 %v2998, %v476
    %v3039 = vmul.f32 %v2999, %v460
    %v3040 = vmul.f32 %v3000, %v464
    %v3041 = vmul.f32 %v3001, %v468
    %v3042 = vmul.f32 %v3002, %v472
    %v3043 = vmul.f32 %v3003, %v476
    %v3044 = vmul.f32 %v3004, %v460
    %v3045 = vmul.f32 %v3005, %v464
    %v3046 = vmul.f32 %v3006, %v468
    %v3047 = vmul.f32 %v3007, %v472
    %v3048 = vmul.f32 %v3008, %v476
    %v3049 = vmul.f32 %v3009, %v460
    %v3050 = vmul.f32 %v3010, %v464
    %v3051 = vmul.f32 %v3011, %v468
    %v3052 = vmul.f32 %v3012, %v472
    %v3053 = vmul.f32 %v3013, %v476
    %v3054 = vmul.f32 %v3014, %v460
    %v3055 = vmul.f32 %v3015, %v464
    %v3056 = vmul.f32 %v3016, %v468
    %v3057 = vmul.f32 %v3017, %v472
    %v3058 = vmul.f32 %v3018, %v476
    %v3059 = vmul.f32 %v3019, %v460
    %v3060 = vmul.f32 %v3020, %v464
    %v3061 = vmul.f32 %v3021, %v468
    %v3062 = vmul.f32 %v3022, %v472
    %v3063 = vmul.f32 %v3023, %v476
    %v3064 = vpack.c.bf16 %v3029, %v3024
    %v3065 = vpack.c.bf16 %v3030, %v3025
    %v3066 = vpack.c.bf16 %v3031, %v3026
    %v3067 = vpack.c.bf16 %v3032, %v3027
    %v3068 = vpack.c.bf16 %v3033, %v3028
    %v3069 = vpack.c.bf16 %v3039, %v3034
    %v3070 = vpack.c.bf16 %v3040, %v3035
    %v3071 = vpack.c.bf16 %v3041, %v3036
    %v3072 = vpack.c.bf16 %v3042, %v3037
    %v3073 = vpack.c.bf16 %v3043, %v3038
    %v3074 = vpack.c.bf16 %v3049, %v3044
    %v3075 = vpack.c.bf16 %v3050, %v3045
    %v3076 = vpack.c.bf16 %v3051, %v3046
    %v3077 = vpack.c.bf16 %v3052, %v3047
    %v3078 = vpack.c.bf16 %v3053, %v3048
    %v3079 = vpack.c.bf16 %v3059, %v3054
    %v3080 = vpack.c.bf16 %v3060, %v3055
    %v3081 = vpack.c.bf16 %v3061, %v3056
    %v3082 = vpack.c.bf16 %v3062, %v3057
    %v3083 = vpack.c.bf16 %v3063, %v3058
    %3104 = vrot.lane.b32.xlu0 %v3064, 19
    %v3105 = vpop.permute.xlu0 %3104
    %3106 = vrot.lane.b32.xlu0 %v3065, 19
    %v3107 = vpop.permute.xlu0 %3106
    %3108 = vrot.lane.b32.xlu0 %v3066, 19
    %v3109 = vpop.permute.xlu0 %3108
    %3110 = vrot.lane.b32.xlu0 %v3067, 19
    %v3111 = vpop.permute.xlu0 %3110
    %3112 = vrot.lane.b32.xlu0 %v3068, 19
    %v3113 = vpop.permute.xlu0 %3112
    %3114 = vrot.lane.b32.xlu0 %v3069, 19
    %v3115 = vpop.permute.xlu0 %3114
    %3116 = vrot.lane.b32.xlu0 %v3070, 19
    %v3117 = vpop.permute.xlu0 %3116
    %3118 = vrot.lane.b32.xlu0 %v3071, 19
    %v3119 = vpop.permute.xlu0 %3118
    %3120 = vrot.lane.b32.xlu0 %v3072, 19
    %v3121 = vpop.permute.xlu0 %3120
    %3122 = vrot.lane.b32.xlu0 %v3073, 19
    %v3123 = vpop.permute.xlu0 %3122
    %3124 = vrot.lane.b32.xlu0 %v3074, 19
    %v3125 = vpop.permute.xlu0 %3124
    %3126 = vrot.lane.b32.xlu0 %v3075, 19
    %v3127 = vpop.permute.xlu0 %3126
    %3128 = vrot.lane.b32.xlu0 %v3076, 19
    %v3129 = vpop.permute.xlu0 %3128
    %3130 = vrot.lane.b32.xlu0 %v3077, 19
    %v3131 = vpop.permute.xlu0 %3130
    %3132 = vrot.lane.b32.xlu0 %v3078, 19
    %v3133 = vpop.permute.xlu0 %3132
    %3134 = vrot.lane.b32.xlu0 %v3079, 19
    %v3135 = vpop.permute.xlu0 %3134
    %3136 = vrot.lane.b32.xlu0 %v3080, 19
    %v3137 = vpop.permute.xlu0 %3136
    %3138 = vrot.lane.b32.xlu0 %v3081, 19
    %v3139 = vpop.permute.xlu0 %3138
    %3140 = vrot.lane.b32.xlu0 %v3082, 19
    %v3141 = vpop.permute.xlu0 %3140
    %3142 = vrot.lane.b32.xlu0 %v3083, 19
    %v3143 = vpop.permute.xlu0 %3142
    %v3144 = vsel %vm602, %v3105, %v3107
    %v3145 = vsel %vm602, %v3107, %v3109
    %v3146 = vsel %vm602, %v3109, %v3111
    %v3147 = vsel %vm602, %v3111, %v3113
    %v3148 = vsel %vm602, %v3115, %v3117
    %v3149 = vsel %vm602, %v3117, %v3119
    %v3150 = vsel %vm602, %v3119, %v3121
    %v3151 = vsel %vm602, %v3121, %v3123
    %v3152 = vsel %vm602, %v3125, %v3127
    %v3153 = vsel %vm602, %v3127, %v3129
    %v3154 = vsel %vm602, %v3129, %v3131
    %v3155 = vsel %vm602, %v3131, %v3133
    %v3156 = vsel %vm602, %v3135, %v3137
    %v3157 = vsel %vm602, %v3137, %v3139
    %v3158 = vsel %vm602, %v3139, %v3141
    %v3159 = vsel %vm602, %v3141, %v3143
    %3180 = vst.msk [vmem:[#allocation2] sm:$0xff] %vm639, %v3105
    %3181 = vst [vmem:[#allocation2 + $0x8] sm:$0xff] %v3144
    %3182 = vst [vmem:[#allocation2 + $0x10] sm:$0xff] %v3145
    %3183 = vst [vmem:[#allocation2 + $0x18] sm:$0xff] %v3146
    %3184 = vst.msk [vmem:[#allocation2 + $0x20] sm:$0xff] %vm644, %v3147
    %3185 = vst.msk [vmem:[#allocation2 + $0x30] sm:$0xff] %vm639, %v3115
    %3186 = vst [vmem:[#allocation2 + $0x38] sm:$0xff] %v3148
    %3187 = vst [vmem:[#allocation2 + $0x40] sm:$0xff] %v3149
    %3188 = vst [vmem:[#allocation2 + $0x48] sm:$0xff] %v3150
    %3189 = vst.msk [vmem:[#allocation2 + $0x50] sm:$0xff] %vm644, %v3151
    %3190 = vst.msk [vmem:[#allocation2 + $0x60] sm:$0xff] %vm639, %v3125
    %3191 = vst [vmem:[#allocation2 + $0x68] sm:$0xff] %v3152
    %3192 = vst [vmem:[#allocation2 + $0x70] sm:$0xff] %v3153
    %3193 = vst [vmem:[#allocation2 + $0x78] sm:$0xff] %v3154
    %3194 = vst.msk [vmem:[#allocation2 + $0x80] sm:$0xff] %vm644, %v3155
    %3195 = vst.msk [vmem:[#allocation2 + $0x90] sm:$0xff] %vm639, %v3135
    %3196 = vst [vmem:[#allocation2 + $0x98] sm:$0xff] %v3156
    %3197 = vst [vmem:[#allocation2 + $0xa0] sm:$0xff] %v3157
    %3198 = vst [vmem:[#allocation2 + $0xa8] sm:$0xff] %v3158
    %3199 = vst.msk [vmem:[#allocation2 + $0xb0] sm:$0xff] %vm644, %v3159
    %v3200 = vld [vmem:[#allocation2] sm:$0xff]
    %v3201 = vld [vmem:[#allocation2 + $0x8] sm:$0xff]
    %v3202 = vld [vmem:[#allocation2 + $0x10] sm:$0xff]
    %v3203 = vld [vmem:[#allocation2 + $0x18] sm:$0xff]
    %v3204 = vld [vmem:[#allocation2 + $0x20] sm:$0xff]
    %v3205 = vld [vmem:[#allocation2 + $0x30] sm:$0xff]
    %v3206 = vld [vmem:[#allocation2 + $0x38] sm:$0xff]
    %v3207 = vld [vmem:[#allocation2 + $0x40] sm:$0xff]
    %v3208 = vld [vmem:[#allocation2 + $0x48] sm:$0xff]
    %v3209 = vld [vmem:[#allocation2 + $0x50] sm:$0xff]
    %v3210 = vld [vmem:[#allocation2 + $0x60] sm:$0xff]
    %v3211 = vld [vmem:[#allocation2 + $0x68] sm:$0xff]
    %v3212 = vld [vmem:[#allocation2 + $0x70] sm:$0xff]
    %v3213 = vld [vmem:[#allocation2 + $0x78] sm:$0xff]
    %v3214 = vld [vmem:[#allocation2 + $0x80] sm:$0xff]
    %v3215 = vld [vmem:[#allocation2 + $0x90] sm:$0xff]
    %v3216 = vld [vmem:[#allocation2 + $0x98] sm:$0xff]
    %v3217 = vld [vmem:[#allocation2 + $0xa0] sm:$0xff]
    %v3218 = vld [vmem:[#allocation2 + $0xa8] sm:$0xff]
    %v3219 = vld [vmem:[#allocation2 + $0xb0] sm:$0xff]
    %3220 = vst [vmem:[#allocation3] sm:$0xff] %v3200
    %3221 = vst [vmem:[#allocation3 + $0x8] sm:$0xff] %v3201
    %3222 = vst [vmem:[#allocation3 + $0x10] sm:$0xff] %v3202
    %3223 = vst [vmem:[#allocation3 + $0x18] sm:$0xff] %v3203
    %3224 = vst.msk [vmem:[#allocation3 + $0x20] sm:$0xff] %vm685, %v3204
    %3225 = vst [vmem:[#allocation3 + $0x28] sm:$0xff] %v3205
    %3226 = vst [vmem:[#allocation3 + $0x30] sm:$0xff] %v3206
    %3227 = vst [vmem:[#allocation3 + $0x38] sm:$0xff] %v3207
    %3228 = vst [vmem:[#allocation3 + $0x40] sm:$0xff] %v3208
    %3229 = vst.msk [vmem:[#allocation3 + $0x48] sm:$0xff] %vm685, %v3209
    %3230 = vst [vmem:[#allocation3 + $0x50] sm:$0xff] %v3210
    %3231 = vst [vmem:[#allocation3 + $0x58] sm:$0xff] %v3211
    %3232 = vst [vmem:[#allocation3 + $0x60] sm:$0xff] %v3212
    %3233 = vst [vmem:[#allocation3 + $0x68] sm:$0xff] %v3213
    %3234 = vst.msk [vmem:[#allocation3 + $0x70] sm:$0xff] %vm685, %v3214
    %3235 = vst [vmem:[#allocation3 + $0x78] sm:$0xff] %v3215
    %3236 = vst [vmem:[#allocation3 + $0x80] sm:$0xff] %v3216
    %3237 = vst [vmem:[#allocation3 + $0x88] sm:$0xff] %v3217
    %3238 = vst [vmem:[#allocation3 + $0x90] sm:$0xff] %v3218
    %3239 = vst.msk [vmem:[#allocation3 + $0x98] sm:$0xff] %vm685, %v3219
    %v3240 = vld [vmem:[#allocation2] sm:$0xff]
    %v3241 = vld [vmem:[#allocation2 + $0x8] sm:$0xff]
    %v3242 = vld [vmem:[#allocation2 + $0x10] sm:$0xff]
    %v3243 = vld [vmem:[#allocation2 + $0x18] sm:$0xff]
    %v3244 = vld [vmem:[#allocation2 + $0x20] sm:$0xff]
    %v3245 = vld [vmem:[#allocation2 + $0x30] sm:$0xff]
    %v3246 = vld [vmem:[#allocation2 + $0x38] sm:$0xff]
    %v3247 = vld [vmem:[#allocation2 + $0x40] sm:$0xff]
    %v3248 = vld [vmem:[#allocation2 + $0x48] sm:$0xff]
    %v3249 = vld [vmem:[#allocation2 + $0x50] sm:$0xff]
    %v3250 = vld [vmem:[#allocation2 + $0x60] sm:$0xff]
    %v3251 = vld [vmem:[#allocation2 + $0x68] sm:$0xff]
    %v3252 = vld [vmem:[#allocation2 + $0x70] sm:$0xff]
    %v3253 = vld [vmem:[#allocation2 + $0x78] sm:$0xff]
    %v3254 = vld [vmem:[#allocation2 + $0x80] sm:$0xff]
    %v3255 = vld [vmem:[#allocation2 + $0x90] sm:$0xff]
    %v3256 = vld [vmem:[#allocation2 + $0x98] sm:$0xff]
    %v3257 = vld [vmem:[#allocation2 + $0xa0] sm:$0xff]
    %v3258 = vld [vmem:[#allocation2 + $0xa8] sm:$0xff]
    %v3259 = vld [vmem:[#allocation2 + $0xb0] sm:$0xff]
    %3280 = vrot.lane.b32.xlu0 %v3240, 127
    %v3281 = vpop.permute.xlu0 %3280
    %3282 = vrot.lane.b32.xlu0 %v3241, 127
    %v3283 = vpop.permute.xlu0 %3282
    %3284 = vrot.lane.b32.xlu0 %v3242, 127
    %v3285 = vpop.permute.xlu0 %3284
    %3286 = vrot.lane.b32.xlu0 %v3243, 127
    %v3287 = vpop.permute.xlu0 %3286
    %3288 = vrot.lane.b32.xlu0 %v3244, 127
    %v3289 = vpop.permute.xlu0 %3288
    %3290 = vrot.lane.b32.xlu0 %v3245, 127
    %v3291 = vpop.permute.xlu0 %3290
    %3292 = vrot.lane.b32.xlu0 %v3246, 127
    %v3293 = vpop.permute.xlu0 %3292
    %3294 = vrot.lane.b32.xlu0 %v3247, 127
    %v3295 = vpop.permute.xlu0 %3294
    %3296 = vrot.lane.b32.xlu0 %v3248, 127
    %v3297 = vpop.permute.xlu0 %3296
    %3298 = vrot.lane.b32.xlu0 %v3249, 127
    %v3299 = vpop.permute.xlu0 %3298
    %3300 = vrot.lane.b32.xlu0 %v3250, 127
    %v3301 = vpop.permute.xlu0 %3300
    %3302 = vrot.lane.b32.xlu0 %v3251, 127
    %v3303 = vpop.permute.xlu0 %3302
    %3304 = vrot.lane.b32.xlu0 %v3252, 127
    %v3305 = vpop.permute.xlu0 %3304
    %3306 = vrot.lane.b32.xlu0 %v3253, 127
    %v3307 = vpop.permute.xlu0 %3306
    %3308 = vrot.lane.b32.xlu0 %v3254, 127
    %v3309 = vpop.permute.xlu0 %3308
    %3310 = vrot.lane.b32.xlu0 %v3255, 127
    %v3311 = vpop.permute.xlu0 %3310
    %3312 = vrot.lane.b32.xlu0 %v3256, 127
    %v3313 = vpop.permute.xlu0 %3312
    %3314 = vrot.lane.b32.xlu0 %v3257, 127
    %v3315 = vpop.permute.xlu0 %3314
    %3316 = vrot.lane.b32.xlu0 %v3258, 127
    %v3317 = vpop.permute.xlu0 %3316
    %3318 = vrot.lane.b32.xlu0 %v3259, 127
    %v3319 = vpop.permute.xlu0 %3318
    %v3320 = vsel %vm782, %v3281, %v3283
    %v3321 = vsel %vm782, %v3283, %v3285
    %v3322 = vsel %vm782, %v3285, %v3287
    %v3323 = vsel %vm782, %v3287, %v3289
    %v3324 = vsel %vm782, %v3291, %v3293
    %v3325 = vsel %vm782, %v3293, %v3295
    %v3326 = vsel %vm782, %v3295, %v3297
    %v3327 = vsel %vm782, %v3297, %v3299
    %v3328 = vsel %vm782, %v3301, %v3303
    %v3329 = vsel %vm782, %v3303, %v3305
    %v3330 = vsel %vm782, %v3305, %v3307
    %v3331 = vsel %vm782, %v3307, %v3309
    %v3332 = vsel %vm782, %v3311, %v3313
    %v3333 = vsel %vm782, %v3313, %v3315
    %v3334 = vsel %vm782, %v3315, %v3317
    %v3335 = vsel %vm782, %v3317, %v3319
    %3356 = vst [vmem:[#allocation3 + $0xa0] sm:$0xff] %v3320
    %3357 = vst [vmem:[#allocation3 + $0xa8] sm:$0xff] %v3321
    %3358 = vst [vmem:[#allocation3 + $0xb0] sm:$0xff] %v3322
    %3359 = vst [vmem:[#allocation3 + $0xb8] sm:$0xff] %v3323
    %3360 = vst.msk [vmem:[#allocation3 + $0xc0] sm:$0xff] %vm685, %v3289
    %3361 = vst [vmem:[#allocation3 + $0xc8] sm:$0xff] %v3324
    %3362 = vst [vmem:[#allocation3 + $0xd0] sm:$0xff] %v3325
    %3363 = vst [vmem:[#allocation3 + $0xd8] sm:$0xff] %v3326
    %3364 = vst [vmem:[#allocation3 + $0xe0] sm:$0xff] %v3327
    %3365 = vst.msk [vmem:[#allocation3 + $0xe8] sm:$0xff] %vm685, %v3299
    %3366 = vst [vmem:[#allocation3 + $0xf0] sm:$0xff] %v3328
    %3367 = vst [vmem:[#allocation3 + $0xf8] sm:$0xff] %v3329
    %3368 = vst [vmem:[#allocation3 + $0x100] sm:$0xff] %v3330
    %3369 = vst [vmem:[#allocation3 + $0x108] sm:$0xff] %v3331
    %3370 = vst.msk [vmem:[#allocation3 + $0x110] sm:$0xff] %vm685, %v3309
    %3371 = vst [vmem:[#allocation3 + $0x118] sm:$0xff] %v3332
    %3372 = vst [vmem:[#allocation3 + $0x120] sm:$0xff] %v3333
    %3373 = vst [vmem:[#allocation3 + $0x128] sm:$0xff] %v3334
    %3374 = vst [vmem:[#allocation3 + $0x130] sm:$0xff] %v3335
    %3375 = vst.msk [vmem:[#allocation3 + $0x138] sm:$0xff] %vm685, %v3319
    %v3376 = vld [vmem:[#allocation2] sm:$0xff]
    %v3377 = vld [vmem:[#allocation2 + $0x8] sm:$0xff]
    %v3378 = vld [vmem:[#allocation2 + $0x10] sm:$0xff]
    %v3379 = vld [vmem:[#allocation2 + $0x18] sm:$0xff]
    %v3380 = vld [vmem:[#allocation2 + $0x20] sm:$0xff]
    %v3381 = vld [vmem:[#allocation2 + $0x30] sm:$0xff]
    %v3382 = vld [vmem:[#allocation2 + $0x38] sm:$0xff]
    %v3383 = vld [vmem:[#allocation2 + $0x40] sm:$0xff]
    %v3384 = vld [vmem:[#allocation2 + $0x48] sm:$0xff]
    %v3385 = vld [vmem:[#allocation2 + $0x50] sm:$0xff]
    %v3386 = vld [vmem:[#allocation2 + $0x60] sm:$0xff]
    %v3387 = vld [vmem:[#allocation2 + $0x68] sm:$0xff]
    %v3388 = vld [vmem:[#allocation2 + $0x70] sm:$0xff]
    %v3389 = vld [vmem:[#allocation2 + $0x78] sm:$0xff]
    %v3390 = vld [vmem:[#allocation2 + $0x80] sm:$0xff]
    %v3391 = vld [vmem:[#allocation2 + $0x90] sm:$0xff]
    %v3392 = vld [vmem:[#allocation2 + $0x98] sm:$0xff]
    %v3393 = vld [vmem:[#allocation2 + $0xa0] sm:$0xff]
    %v3394 = vld [vmem:[#allocation2 + $0xa8] sm:$0xff]
    %v3395 = vld [vmem:[#allocation2 + $0xb0] sm:$0xff]
    %3416 = vrot.lane.b32.xlu0 %v3376, 126
    %v3417 = vpop.permute.xlu0 %3416
    %3418 = vrot.lane.b32.xlu0 %v3377, 126
    %v3419 = vpop.permute.xlu0 %3418
    %3420 = vrot.lane.b32.xlu0 %v3378, 126
    %v3421 = vpop.permute.xlu0 %3420
    %3422 = vrot.lane.b32.xlu0 %v3379, 126
    %v3423 = vpop.permute.xlu0 %3422
    %3424 = vrot.lane.b32.xlu0 %v3380, 126
    %v3425 = vpop.permute.xlu0 %3424
    %3426 = vrot.lane.b32.xlu0 %v3381, 126
    %v3427 = vpop.permute.xlu0 %3426
    %3428 = vrot.lane.b32.xlu0 %v3382, 126
    %v3429 = vpop.permute.xlu0 %3428
    %3430 = vrot.lane.b32.xlu0 %v3383, 126
    %v3431 = vpop.permute.xlu0 %3430
    %3432 = vrot.lane.b32.xlu0 %v3384, 126
    %v3433 = vpop.permute.xlu0 %3432
    %3434 = vrot.lane.b32.xlu0 %v3385, 126
    %v3435 = vpop.permute.xlu0 %3434
    %3436 = vrot.lane.b32.xlu0 %v3386, 126
    %v3437 = vpop.permute.xlu0 %3436
    %3438 = vrot.lane.b32.xlu0 %v3387, 126
    %v3439 = vpop.permute.xlu0 %3438
    %3440 = vrot.lane.b32.xlu0 %v3388, 126
    %v3441 = vpop.permute.xlu0 %3440
    %3442 = vrot.lane.b32.xlu0 %v3389, 126
    %v3443 = vpop.permute.xlu0 %3442
    %3444 = vrot.lane.b32.xlu0 %v3390, 126
    %v3445 = vpop.permute.xlu0 %3444
    %3446 = vrot.lane.b32.xlu0 %v3391, 126
    %v3447 = vpop.permute.xlu0 %3446
    %3448 = vrot.lane.b32.xlu0 %v3392, 126
    %v3449 = vpop.permute.xlu0 %3448
    %3450 = vrot.lane.b32.xlu0 %v3393, 126
    %v3451 = vpop.permute.xlu0 %3450
    %3452 = vrot.lane.b32.xlu0 %v3394, 126
    %v3453 = vpop.permute.xlu0 %3452
    %3454 = vrot.lane.b32.xlu0 %v3395, 126
    %v3455 = vpop.permute.xlu0 %3454
    %v3456 = vsel %vm919, %v3417, %v3419
    %v3457 = vsel %vm919, %v3419, %v3421
    %v3458 = vsel %vm919, %v3421, %v3423
    %v3459 = vsel %vm919, %v3423, %v3425
    %v3460 = vsel %vm919, %v3427, %v3429
    %v3461 = vsel %vm919, %v3429, %v3431
    %v3462 = vsel %vm919, %v3431, %v3433
    %v3463 = vsel %vm919, %v3433, %v3435
    %v3464 = vsel %vm919, %v3437, %v3439
    %v3465 = vsel %vm919, %v3439, %v3441
    %v3466 = vsel %vm919, %v3441, %v3443
    %v3467 = vsel %vm919, %v3443, %v3445
    %v3468 = vsel %vm919, %v3447, %v3449
    %v3469 = vsel %vm919, %v3449, %v3451
    %v3470 = vsel %vm919, %v3451, %v3453
    %v3471 = vsel %vm919, %v3453, %v3455
    %3492 = vst [vmem:[#allocation3 + $0x140] sm:$0xff] %v3456
    %3493 = vst [vmem:[#allocation3 + $0x148] sm:$0xff] %v3457
    %3494 = vst [vmem:[#allocation3 + $0x150] sm:$0xff] %v3458
    %3495 = vst [vmem:[#allocation3 + $0x158] sm:$0xff] %v3459
    %3496 = vst.msk [vmem:[#allocation3 + $0x160] sm:$0xff] %vm685, %v3425
    %3497 = vst [vmem:[#allocation3 + $0x168] sm:$0xff] %v3460
    %3498 = vst [vmem:[#allocation3 + $0x170] sm:$0xff] %v3461
    %3499 = vst [vmem:[#allocation3 + $0x178] sm:$0xff] %v3462
    %3500 = vst [vmem:[#allocation3 + $0x180] sm:$0xff] %v3463
    %3501 = vst.msk [vmem:[#allocation3 + $0x188] sm:$0xff] %vm685, %v3435
    %3502 = vst [vmem:[#allocation3 + $0x190] sm:$0xff] %v3464
    %3503 = vst [vmem:[#allocation3 + $0x198] sm:$0xff] %v3465
    %3504 = vst [vmem:[#allocation3 + $0x1a0] sm:$0xff] %v3466
    %3505 = vst [vmem:[#allocation3 + $0x1a8] sm:$0xff] %v3467
    %3506 = vst.msk [vmem:[#allocation3 + $0x1b0] sm:$0xff] %vm685, %v3445
    %3507 = vst [vmem:[#allocation3 + $0x1b8] sm:$0xff] %v3468
    %3508 = vst [vmem:[#allocation3 + $0x1c0] sm:$0xff] %v3469
    %3509 = vst [vmem:[#allocation3 + $0x1c8] sm:$0xff] %v3470
    %3510 = vst [vmem:[#allocation3 + $0x1d0] sm:$0xff] %v3471
    %3511 = vst.msk [vmem:[#allocation3 + $0x1d8] sm:$0xff] %vm685, %v3455
    %v3512 = vld [vmem:[#allocation2] sm:$0xff]
    %v3513 = vld [vmem:[#allocation2 + $0x8] sm:$0xff]
    %v3514 = vld [vmem:[#allocation2 + $0x10] sm:$0xff]
    %v3515 = vld [vmem:[#allocation2 + $0x18] sm:$0xff]
    %v3516 = vld [vmem:[#allocation2 + $0x20] sm:$0xff]
    %v3517 = vld [vmem:[#allocation2 + $0x30] sm:$0xff]
    %v3518 = vld [vmem:[#allocation2 + $0x38] sm:$0xff]
    %v3519 = vld [vmem:[#allocation2 + $0x40] sm:$0xff]
    %v3520 = vld [vmem:[#allocation2 + $0x48] sm:$0xff]
    %v3521 = vld [vmem:[#allocation2 + $0x50] sm:$0xff]
    %v3522 = vld [vmem:[#allocation2 + $0x60] sm:$0xff]
    %v3523 = vld [vmem:[#allocation2 + $0x68] sm:$0xff]
    %v3524 = vld [vmem:[#allocation2 + $0x70] sm:$0xff]
    %v3525 = vld [vmem:[#allocation2 + $0x78] sm:$0xff]
    %v3526 = vld [vmem:[#allocation2 + $0x80] sm:$0xff]
    %v3527 = vld [vmem:[#allocation2 + $0x90] sm:$0xff]
    %v3528 = vld [vmem:[#allocation2 + $0x98] sm:$0xff]
    %v3529 = vld [vmem:[#allocation2 + $0xa0] sm:$0xff]
    %v3530 = vld [vmem:[#allocation2 + $0xa8] sm:$0xff]
    %v3531 = vld [vmem:[#allocation2 + $0xb0] sm:$0xff]
    %3552 = vrot.lane.b32.xlu0 %v3512, 110
    %v3553 = vpop.permute.xlu0 %3552
    %3554 = vrot.lane.b32.xlu0 %v3513, 110
    %v3555 = vpop.permute.xlu0 %3554
    %3556 = vrot.lane.b32.xlu0 %v3514, 110
    %v3557 = vpop.permute.xlu0 %3556
    %3558 = vrot.lane.b32.xlu0 %v3515, 110
    %v3559 = vpop.permute.xlu0 %3558
    %3560 = vrot.lane.b32.xlu0 %v3516, 110
    %v3561 = vpop.permute.xlu0 %3560
    %3562 = vrot.lane.b32.xlu0 %v3517, 110
    %v3563 = vpop.permute.xlu0 %3562
    %3564 = vrot.lane.b32.xlu0 %v3518, 110
    %v3565 = vpop.permute.xlu0 %3564
    %3566 = vrot.lane.b32.xlu0 %v3519, 110
    %v3567 = vpop.permute.xlu0 %3566
    %3568 = vrot.lane.b32.xlu0 %v3520, 110
    %v3569 = vpop.permute.xlu0 %3568
    %3570 = vrot.lane.b32.xlu0 %v3521, 110
    %v3571 = vpop.permute.xlu0 %3570
    %3572 = vrot.lane.b32.xlu0 %v3522, 110
    %v3573 = vpop.permute.xlu0 %3572
    %3574 = vrot.lane.b32.xlu0 %v3523, 110
    %v3575 = vpop.permute.xlu0 %3574
    %3576 = vrot.lane.b32.xlu0 %v3524, 110
    %v3577 = vpop.permute.xlu0 %3576
    %3578 = vrot.lane.b32.xlu0 %v3525, 110
    %v3579 = vpop.permute.xlu0 %3578
    %3580 = vrot.lane.b32.xlu0 %v3526, 110
    %v3581 = vpop.permute.xlu0 %3580
    %3582 = vrot.lane.b32.xlu0 %v3527, 110
    %v3583 = vpop.permute.xlu0 %3582
    %3584 = vrot.lane.b32.xlu0 %v3528, 110
    %v3585 = vpop.permute.xlu0 %3584
    %3586 = vrot.lane.b32.xlu0 %v3529, 110
    %v3587 = vpop.permute.xlu0 %3586
    %3588 = vrot.lane.b32.xlu0 %v3530, 110
    %v3589 = vpop.permute.xlu0 %3588
    %3590 = vrot.lane.b32.xlu0 %v3531, 110
    %v3591 = vpop.permute.xlu0 %3590
    %v3592 = vsel %vm1056, %v3553, %v3555
    %v3593 = vsel %vm1056, %v3555, %v3557
    %v3594 = vsel %vm1056, %v3557, %v3559
    %v3595 = vsel %vm1056, %v3559, %v3561
    %v3596 = vsel %vm1056, %v3563, %v3565
    %v3597 = vsel %vm1056, %v3565, %v3567
    %v3598 = vsel %vm1056, %v3567, %v3569
    %v3599 = vsel %vm1056, %v3569, %v3571
    %v3600 = vsel %vm1056, %v3573, %v3575
    %v3601 = vsel %vm1056, %v3575, %v3577
    %v3602 = vsel %vm1056, %v3577, %v3579
    %v3603 = vsel %vm1056, %v3579, %v3581
    %v3604 = vsel %vm1056, %v3583, %v3585
    %v3605 = vsel %vm1056, %v3585, %v3587
    %v3606 = vsel %vm1056, %v3587, %v3589
    %v3607 = vsel %vm1056, %v3589, %v3591
    %3628 = vst [vmem:[#allocation3 + $0x1e0] sm:$0xff] %v3592
    %3629 = vst [vmem:[#allocation3 + $0x1e8] sm:$0xff] %v3593
    %3630 = vst [vmem:[#allocation3 + $0x1f0] sm:$0xff] %v3594
    %3631 = vst [vmem:[#allocation3 + $0x1f8] sm:$0xff] %v3595
    %3632 = vst.msk [vmem:[#allocation3 + $0x200] sm:$0xff] %vm685, %v3561
    %3633 = vst [vmem:[#allocation3 + $0x208] sm:$0xff] %v3596
    %3634 = vst [vmem:[#allocation3 + $0x210] sm:$0xff] %v3597
    %3635 = vst [vmem:[#allocation3 + $0x218] sm:$0xff] %v3598
    %3636 = vst [vmem:[#allocation3 + $0x220] sm:$0xff] %v3599
    %3637 = vst.msk [vmem:[#allocation3 + $0x228] sm:$0xff] %vm685, %v3571
    %3638 = vst [vmem:[#allocation3 + $0x230] sm:$0xff] %v3600
    %3639 = vst [vmem:[#allocation3 + $0x238] sm:$0xff] %v3601
    %3640 = vst [vmem:[#allocation3 + $0x240] sm:$0xff] %v3602
    %3641 = vst [vmem:[#allocation3 + $0x248] sm:$0xff] %v3603
    %3642 = vst.msk [vmem:[#allocation3 + $0x250] sm:$0xff] %vm685, %v3581
    %3643 = vst [vmem:[#allocation3 + $0x258] sm:$0xff] %v3604
    %3644 = vst [vmem:[#allocation3 + $0x260] sm:$0xff] %v3605
    %3645 = vst [vmem:[#allocation3 + $0x268] sm:$0xff] %v3606
    %3646 = vst [vmem:[#allocation3 + $0x270] sm:$0xff] %v3607
    %3647 = vst.msk [vmem:[#allocation3 + $0x278] sm:$0xff] %vm685, %v3591
    %v3648 = vld [vmem:[#allocation2] sm:$0xff]
    %v3649 = vld [vmem:[#allocation2 + $0x8] sm:$0xff]
    %v3650 = vld [vmem:[#allocation2 + $0x10] sm:$0xff]
    %v3651 = vld [vmem:[#allocation2 + $0x18] sm:$0xff]
    %v3652 = vld [vmem:[#allocation2 + $0x20] sm:$0xff]
    %v3653 = vld [vmem:[#allocation2 + $0x30] sm:$0xff]
    %v3654 = vld [vmem:[#allocation2 + $0x38] sm:$0xff]
    %v3655 = vld [vmem:[#allocation2 + $0x40] sm:$0xff]
    %v3656 = vld [vmem:[#allocation2 + $0x48] sm:$0xff]
    %v3657 = vld [vmem:[#allocation2 + $0x50] sm:$0xff]
    %v3658 = vld [vmem:[#allocation2 + $0x60] sm:$0xff]
    %v3659 = vld [vmem:[#allocation2 + $0x68] sm:$0xff]
    %v3660 = vld [vmem:[#allocation2 + $0x70] sm:$0xff]
    %v3661 = vld [vmem:[#allocation2 + $0x78] sm:$0xff]
    %v3662 = vld [vmem:[#allocation2 + $0x80] sm:$0xff]
    %v3663 = vld [vmem:[#allocation2 + $0x90] sm:$0xff]
    %v3664 = vld [vmem:[#allocation2 + $0x98] sm:$0xff]
    %v3665 = vld [vmem:[#allocation2 + $0xa0] sm:$0xff]
    %v3666 = vld [vmem:[#allocation2 + $0xa8] sm:$0xff]
    %v3667 = vld [vmem:[#allocation2 + $0xb0] sm:$0xff]
    %3688 = vrot.lane.b32.xlu0 %v3648, 109
    %v3689 = vpop.permute.xlu0 %3688
    %3690 = vrot.lane.b32.xlu0 %v3649, 109
    %v3691 = vpop.permute.xlu0 %3690
    %3692 = vrot.lane.b32.xlu0 %v3650, 109
    %v3693 = vpop.permute.xlu0 %3692
    %3694 = vrot.lane.b32.xlu0 %v3651, 109
    %v3695 = vpop.permute.xlu0 %3694
    %3696 = vrot.lane.b32.xlu0 %v3652, 109
    %v3697 = vpop.permute.xlu0 %3696
    %3698 = vrot.lane.b32.xlu0 %v3653, 109
    %v3699 = vpop.permute.xlu0 %3698
    %3700 = vrot.lane.b32.xlu0 %v3654, 109
    %v3701 = vpop.permute.xlu0 %3700
    %3702 = vrot.lane.b32.xlu0 %v3655, 109
    %v3703 = vpop.permute.xlu0 %3702
    %3704 = vrot.lane.b32.xlu0 %v3656, 109
    %v3705 = vpop.permute.xlu0 %3704
    %3706 = vrot.lane.b32.xlu0 %v3657, 109
    %v3707 = vpop.permute.xlu0 %3706
    %3708 = vrot.lane.b32.xlu0 %v3658, 109
    %v3709 = vpop.permute.xlu0 %3708
    %3710 = vrot.lane.b32.xlu0 %v3659, 109
    %v3711 = vpop.permute.xlu0 %3710
    %3712 = vrot.lane.b32.xlu0 %v3660, 109
    %v3713 = vpop.permute.xlu0 %3712
    %3714 = vrot.lane.b32.xlu0 %v3661, 109
    %v3715 = vpop.permute.xlu0 %3714
    %3716 = vrot.lane.b32.xlu0 %v3662, 109
    %v3717 = vpop.permute.xlu0 %3716
    %3718 = vrot.lane.b32.xlu0 %v3663, 109
    %v3719 = vpop.permute.xlu0 %3718
    %3720 = vrot.lane.b32.xlu0 %v3664, 109
    %v3721 = vpop.permute.xlu0 %3720
    %3722 = vrot.lane.b32.xlu0 %v3665, 109
    %v3723 = vpop.permute.xlu0 %3722
    %3724 = vrot.lane.b32.xlu0 %v3666, 109
    %v3725 = vpop.permute.xlu0 %3724
    %3726 = vrot.lane.b32.xlu0 %v3667, 109
    %v3727 = vpop.permute.xlu0 %3726
    %v3728 = vsel %vm1193, %v3689, %v3691
    %v3729 = vsel %vm1193, %v3691, %v3693
    %v3730 = vsel %vm1193, %v3693, %v3695
    %v3731 = vsel %vm1193, %v3695, %v3697
    %v3732 = vsel %vm1193, %v3699, %v3701
    %v3733 = vsel %vm1193, %v3701, %v3703
    %v3734 = vsel %vm1193, %v3703, %v3705
    %v3735 = vsel %vm1193, %v3705, %v3707
    %v3736 = vsel %vm1193, %v3709, %v3711
    %v3737 = vsel %vm1193, %v3711, %v3713
    %v3738 = vsel %vm1193, %v3713, %v3715
    %v3739 = vsel %vm1193, %v3715, %v3717
    %v3740 = vsel %vm1193, %v3719, %v3721
    %v3741 = vsel %vm1193, %v3721, %v3723
    %v3742 = vsel %vm1193, %v3723, %v3725
    %v3743 = vsel %vm1193, %v3725, %v3727
    %3764 = vst [vmem:[#allocation3 + $0x280] sm:$0xff] %v3728
    %3765 = vst [vmem:[#allocation3 + $0x288] sm:$0xff] %v3729
    %3766 = vst [vmem:[#allocation3 + $0x290] sm:$0xff] %v3730
    %3767 = vst [vmem:[#allocation3 + $0x298] sm:$0xff] %v3731
    %3768 = vst.msk [vmem:[#allocation3 + $0x2a0] sm:$0xff] %vm685, %v3697
    %3769 = vst [vmem:[#allocation3 + $0x2a8] sm:$0xff] %v3732
    %3770 = vst [vmem:[#allocation3 + $0x2b0] sm:$0xff] %v3733
    %3771 = vst [vmem:[#allocation3 + $0x2b8] sm:$0xff] %v3734
    %3772 = vst [vmem:[#allocation3 + $0x2c0] sm:$0xff] %v3735
    %3773 = vst.msk [vmem:[#allocation3 + $0x2c8] sm:$0xff] %vm685, %v3707
    %3774 = vst [vmem:[#allocation3 + $0x2d0] sm:$0xff] %v3736
    %3775 = vst [vmem:[#allocation3 + $0x2d8] sm:$0xff] %v3737
    %3776 = vst [vmem:[#allocation3 + $0x2e0] sm:$0xff] %v3738
    %3777 = vst [vmem:[#allocation3 + $0x2e8] sm:$0xff] %v3739
    %3778 = vst.msk [vmem:[#allocation3 + $0x2f0] sm:$0xff] %vm685, %v3717
    %3779 = vst [vmem:[#allocation3 + $0x2f8] sm:$0xff] %v3740
    %3780 = vst [vmem:[#allocation3 + $0x300] sm:$0xff] %v3741
    %3781 = vst [vmem:[#allocation3 + $0x308] sm:$0xff] %v3742
    %3782 = vst [vmem:[#allocation3 + $0x310] sm:$0xff] %v3743
    %3783 = vst.msk [vmem:[#allocation3 + $0x318] sm:$0xff] %vm685, %v3727
    %v3784 = vld [vmem:[#allocation2] sm:$0xff]
    %v3785 = vld [vmem:[#allocation2 + $0x8] sm:$0xff]
    %v3786 = vld [vmem:[#allocation2 + $0x10] sm:$0xff]
    %v3787 = vld [vmem:[#allocation2 + $0x18] sm:$0xff]
    %v3788 = vld [vmem:[#allocation2 + $0x20] sm:$0xff]
    %v3789 = vld [vmem:[#allocation2 + $0x30] sm:$0xff]
    %v3790 = vld [vmem:[#allocation2 + $0x38] sm:$0xff]
    %v3791 = vld [vmem:[#allocation2 + $0x40] sm:$0xff]
    %v3792 = vld [vmem:[#allocation2 + $0x48] sm:$0xff]
    %v3793 = vld [vmem:[#allocation2 + $0x50] sm:$0xff]
    %v3794 = vld [vmem:[#allocation2 + $0x60] sm:$0xff]
    %v3795 = vld [vmem:[#allocation2 + $0x68] sm:$0xff]
    %v3796 = vld [vmem:[#allocation2 + $0x70] sm:$0xff]
    %v3797 = vld [vmem:[#allocation2 + $0x78] sm:$0xff]
    %v3798 = vld [vmem:[#allocation2 + $0x80] sm:$0xff]
    %v3799 = vld [vmem:[#allocation2 + $0x90] sm:$0xff]
    %v3800 = vld [vmem:[#allocation2 + $0x98] sm:$0xff]
    %v3801 = vld [vmem:[#allocation2 + $0xa0] sm:$0xff]
    %v3802 = vld [vmem:[#allocation2 + $0xa8] sm:$0xff]
    %v3803 = vld [vmem:[#allocation2 + $0xb0] sm:$0xff]
    %3824 = vrot.lane.b32.xlu0 %v3784, 108
    %v3825 = vpop.permute.xlu0 %3824
    %3826 = vrot.lane.b32.xlu0 %v3785, 108
    %v3827 = vpop.permute.xlu0 %3826
    %3828 = vrot.lane.b32.xlu0 %v3786, 108
    %v3829 = vpop.permute.xlu0 %3828
    %3830 = vrot.lane.b32.xlu0 %v3787, 108
    %v3831 = vpop.permute.xlu0 %3830
    %3832 = vrot.lane.b32.xlu0 %v3788, 108
    %v3833 = vpop.permute.xlu0 %3832
    %3834 = vrot.lane.b32.xlu0 %v3789, 108
    %v3835 = vpop.permute.xlu0 %3834
    %3836 = vrot.lane.b32.xlu0 %v3790, 108
    %v3837 = vpop.permute.xlu0 %3836
    %3838 = vrot.lane.b32.xlu0 %v3791, 108
    %v3839 = vpop.permute.xlu0 %3838
    %3840 = vrot.lane.b32.xlu0 %v3792, 108
    %v3841 = vpop.permute.xlu0 %3840
    %3842 = vrot.lane.b32.xlu0 %v3793, 108
    %v3843 = vpop.permute.xlu0 %3842
    %3844 = vrot.lane.b32.xlu0 %v3794, 108
    %v3845 = vpop.permute.xlu0 %3844
    %3846 = vrot.lane.b32.xlu0 %v3795, 108
    %v3847 = vpop.permute.xlu0 %3846
    %3848 = vrot.lane.b32.xlu0 %v3796, 108
    %v3849 = vpop.permute.xlu0 %3848
    %3850 = vrot.lane.b32.xlu0 %v3797, 108
    %v3851 = vpop.permute.xlu0 %3850
    %3852 = vrot.lane.b32.xlu0 %v3798, 108
    %v3853 = vpop.permute.xlu0 %3852
    %3854 = vrot.lane.b32.xlu0 %v3799, 108
    %v3855 = vpop.permute.xlu0 %3854
    %3856 = vrot.lane.b32.xlu0 %v3800, 108
    %v3857 = vpop.permute.xlu0 %3856
    %3858 = vrot.lane.b32.xlu0 %v3801, 108
    %v3859 = vpop.permute.xlu0 %3858
    %3860 = vrot.lane.b32.xlu0 %v3802, 108
    %v3861 = vpop.permute.xlu0 %3860
    %3862 = vrot.lane.b32.xlu0 %v3803, 108
    %v3863 = vpop.permute.xlu0 %3862
    %v3864 = vsel %vm1330, %v3825, %v3827
    %v3865 = vsel %vm1330, %v3827, %v3829
    %v3866 = vsel %vm1330, %v3829, %v3831
    %v3867 = vsel %vm1330, %v3831, %v3833
    %v3868 = vsel %vm1330, %v3835, %v3837
    %v3869 = vsel %vm1330, %v3837, %v3839
    %v3870 = vsel %vm1330, %v3839, %v3841
    %v3871 = vsel %vm1330, %v3841, %v3843
    %v3872 = vsel %vm1330, %v3845, %v3847
    %v3873 = vsel %vm1330, %v3847, %v3849
    %v3874 = vsel %vm1330, %v3849, %v3851
    %v3875 = vsel %vm1330, %v3851, %v3853
    %v3876 = vsel %vm1330, %v3855, %v3857
    %v3877 = vsel %vm1330, %v3857, %v3859
    %v3878 = vsel %vm1330, %v3859, %v3861
    %v3879 = vsel %vm1330, %v3861, %v3863
    %3900 = vst [vmem:[#allocation3 + $0x320] sm:$0xff] %v3864
    %3901 = vst [vmem:[#allocation3 + $0x328] sm:$0xff] %v3865
    %3902 = vst [vmem:[#allocation3 + $0x330] sm:$0xff] %v3866
    %3903 = vst [vmem:[#allocation3 + $0x338] sm:$0xff] %v3867
    %3904 = vst.msk [vmem:[#allocation3 + $0x340] sm:$0xff] %vm685, %v3833
    %3905 = vst [vmem:[#allocation3 + $0x348] sm:$0xff] %v3868
    %3906 = vst [vmem:[#allocation3 + $0x350] sm:$0xff] %v3869
    %3907 = vst [vmem:[#allocation3 + $0x358] sm:$0xff] %v3870
    %3908 = vst [vmem:[#allocation3 + $0x360] sm:$0xff] %v3871
    %3909 = vst.msk [vmem:[#allocation3 + $0x368] sm:$0xff] %vm685, %v3843
    %3910 = vst [vmem:[#allocation3 + $0x370] sm:$0xff] %v3872
    %3911 = vst [vmem:[#allocation3 + $0x378] sm:$0xff] %v3873
    %3912 = vst [vmem:[#allocation3 + $0x380] sm:$0xff] %v3874
    %3913 = vst [vmem:[#allocation3 + $0x388] sm:$0xff] %v3875
    %3914 = vst.msk [vmem:[#allocation3 + $0x390] sm:$0xff] %vm685, %v3853
    %3915 = vst [vmem:[#allocation3 + $0x398] sm:$0xff] %v3876
    %3916 = vst [vmem:[#allocation3 + $0x3a0] sm:$0xff] %v3877
    %3917 = vst [vmem:[#allocation3 + $0x3a8] sm:$0xff] %v3878
    %3918 = vst [vmem:[#allocation3 + $0x3b0] sm:$0xff] %v3879
    %3919 = vst.msk [vmem:[#allocation3 + $0x3b8] sm:$0xff] %vm685, %v3863
    %v3920 = vld [vmem:[#allocation2] sm:$0xff]
    %v3921 = vld [vmem:[#allocation2 + $0x8] sm:$0xff]
    %v3922 = vld [vmem:[#allocation2 + $0x10] sm:$0xff]
    %v3923 = vld [vmem:[#allocation2 + $0x18] sm:$0xff]
    %v3924 = vld [vmem:[#allocation2 + $0x20] sm:$0xff]
    %v3925 = vld [vmem:[#allocation2 + $0x28] sm:$0xff]
    %v3926 = vld [vmem:[#allocation2 + $0x30] sm:$0xff]
    %v3927 = vld [vmem:[#allocation2 + $0x38] sm:$0xff]
    %v3928 = vld [vmem:[#allocation2 + $0x40] sm:$0xff]
    %v3929 = vld [vmem:[#allocation2 + $0x48] sm:$0xff]
    %v3930 = vld [vmem:[#allocation2 + $0x50] sm:$0xff]
    %v3931 = vld [vmem:[#allocation2 + $0x58] sm:$0xff]
    %v3932 = vld [vmem:[#allocation2 + $0x60] sm:$0xff]
    %v3933 = vld [vmem:[#allocation2 + $0x68] sm:$0xff]
    %v3934 = vld [vmem:[#allocation2 + $0x70] sm:$0xff]
    %v3935 = vld [vmem:[#allocation2 + $0x78] sm:$0xff]
    %v3936 = vld [vmem:[#allocation2 + $0x80] sm:$0xff]
    %v3937 = vld [vmem:[#allocation2 + $0x88] sm:$0xff]
    %v3938 = vld [vmem:[#allocation2 + $0x90] sm:$0xff]
    %v3939 = vld [vmem:[#allocation2 + $0x98] sm:$0xff]
    %v3940 = vld [vmem:[#allocation2 + $0xa0] sm:$0xff]
    %v3941 = vld [vmem:[#allocation2 + $0xa8] sm:$0xff]
    %v3942 = vld [vmem:[#allocation2 + $0xb0] sm:$0xff]
    %v3943 = vld [vmem:[#allocation2 + $0xb8] sm:$0xff]
    %3968 = vrot.lane.b32.xlu0 %v3920, 92
    %v3969 = vpop.permute.xlu0 %3968
    %3970 = vrot.lane.b32.xlu0 %v3921, 92
    %v3971 = vpop.permute.xlu0 %3970
    %3972 = vrot.lane.b32.xlu0 %v3922, 92
    %v3973 = vpop.permute.xlu0 %3972
    %3974 = vrot.lane.b32.xlu0 %v3923, 92
    %v3975 = vpop.permute.xlu0 %3974
    %3976 = vrot.lane.b32.xlu0 %v3924, 92
    %v3977 = vpop.permute.xlu0 %3976
    %3978 = vrot.lane.b32.xlu0 %v3925, 92
    %v3979 = vpop.permute.xlu0 %3978
    %3980 = vrot.lane.b32.xlu0 %v3926, 92
    %v3981 = vpop.permute.xlu0 %3980
    %3982 = vrot.lane.b32.xlu0 %v3927, 92
    %v3983 = vpop.permute.xlu0 %3982
    %3984 = vrot.lane.b32.xlu0 %v3928, 92
    %v3985 = vpop.permute.xlu0 %3984
    %3986 = vrot.lane.b32.xlu0 %v3929, 92
    %v3987 = vpop.permute.xlu0 %3986
    %3988 = vrot.lane.b32.xlu0 %v3930, 92
    %v3989 = vpop.permute.xlu0 %3988
    %3990 = vrot.lane.b32.xlu0 %v3931, 92
    %v3991 = vpop.permute.xlu0 %3990
    %3992 = vrot.lane.b32.xlu0 %v3932, 92
    %v3993 = vpop.permute.xlu0 %3992
    %3994 = vrot.lane.b32.xlu0 %v3933, 92
    %v3995 = vpop.permute.xlu0 %3994
    %3996 = vrot.lane.b32.xlu0 %v3934, 92
    %v3997 = vpop.permute.xlu0 %3996
    %3998 = vrot.lane.b32.xlu0 %v3935, 92
    %v3999 = vpop.permute.xlu0 %3998
    %4000 = vrot.lane.b32.xlu0 %v3936, 92
    %v4001 = vpop.permute.xlu0 %4000
    %4002 = vrot.lane.b32.xlu0 %v3937, 92
    %v4003 = vpop.permute.xlu0 %4002
    %4004 = vrot.lane.b32.xlu0 %v3938, 92
    %v4005 = vpop.permute.xlu0 %4004
    %4006 = vrot.lane.b32.xlu0 %v3939, 92
    %v4007 = vpop.permute.xlu0 %4006
    %4008 = vrot.lane.b32.xlu0 %v3940, 92
    %v4009 = vpop.permute.xlu0 %4008
    %4010 = vrot.lane.b32.xlu0 %v3941, 92
    %v4011 = vpop.permute.xlu0 %4010
    %4012 = vrot.lane.b32.xlu0 %v3942, 92
    %v4013 = vpop.permute.xlu0 %4012
    %4014 = vrot.lane.b32.xlu0 %v3943, 92
    %v4015 = vpop.permute.xlu0 %4014
    %v4016 = vsel %vm1483, %v3969, %v3971
    %v4017 = vsel %vm1483, %v3971, %v3973
    %v4018 = vsel %vm1483, %v3973, %v3975
    %v4019 = vsel %vm1483, %v3975, %v3977
    %v4020 = vsel %vm1483, %v3977, %v3979
    %v4021 = vsel %vm1483, %v3981, %v3983
    %v4022 = vsel %vm1483, %v3983, %v3985
    %v4023 = vsel %vm1483, %v3985, %v3987
    %v4024 = vsel %vm1483, %v3987, %v3989
    %v4025 = vsel %vm1483, %v3989, %v3991
    %v4026 = vsel %vm1483, %v3993, %v3995
    %v4027 = vsel %vm1483, %v3995, %v3997
    %v4028 = vsel %vm1483, %v3997, %v3999
    %v4029 = vsel %vm1483, %v3999, %v4001
    %v4030 = vsel %vm1483, %v4001, %v4003
    %v4031 = vsel %vm1483, %v4005, %v4007
    %v4032 = vsel %vm1483, %v4007, %v4009
    %v4033 = vsel %vm1483, %v4009, %v4011
    %v4034 = vsel %vm1483, %v4011, %v4013
    %v4035 = vsel %vm1483, %v4013, %v4015
    %4056 = vst [vmem:[#allocation3 + $0x3c0] sm:$0xff] %v4016
    %4057 = vst [vmem:[#allocation3 + $0x3c8] sm:$0xff] %v4017
    %4058 = vst [vmem:[#allocation3 + $0x3d0] sm:$0xff] %v4018
    %4059 = vst [vmem:[#allocation3 + $0x3d8] sm:$0xff] %v4019
    %4060 = vst.msk [vmem:[#allocation3 + $0x3e0] sm:$0xff] %vm685, %v4020
    %4061 = vst [vmem:[#allocation3 + $0x3e8] sm:$0xff] %v4021
    %4062 = vst [vmem:[#allocation3 + $0x3f0] sm:$0xff] %v4022
    %4063 = vst [vmem:[#allocation3 + $0x3f8] sm:$0xff] %v4023
    %4064 = vst [vmem:[#allocation3 + $0x400] sm:$0xff] %v4024
    %4065 = vst.msk [vmem:[#allocation3 + $0x408] sm:$0xff] %vm685, %v4025
    %4066 = vst [vmem:[#allocation3 + $0x410] sm:$0xff] %v4026
    %4067 = vst [vmem:[#allocation3 + $0x418] sm:$0xff] %v4027
    %4068 = vst [vmem:[#allocation3 + $0x420] sm:$0xff] %v4028
    %4069 = vst [vmem:[#allocation3 + $0x428] sm:$0xff] %v4029
    %4070 = vst.msk [vmem:[#allocation3 + $0x430] sm:$0xff] %vm685, %v4030
    %4071 = vst [vmem:[#allocation3 + $0x438] sm:$0xff] %v4031
    %4072 = vst [vmem:[#allocation3 + $0x440] sm:$0xff] %v4032
    %4073 = vst [vmem:[#allocation3 + $0x448] sm:$0xff] %v4033
    %4074 = vst [vmem:[#allocation3 + $0x450] sm:$0xff] %v4034
    %4075 = vst.msk [vmem:[#allocation3 + $0x458] sm:$0xff] %vm685, %v4035
    %v4076 = vld [vmem:[#allocation2] sm:$0xff]
    %v4077 = vld [vmem:[#allocation2 + $0x8] sm:$0xff]
    %v4078 = vld [vmem:[#allocation2 + $0x10] sm:$0xff]
    %v4079 = vld [vmem:[#allocation2 + $0x18] sm:$0xff]
    %v4080 = vld [vmem:[#allocation2 + $0x20] sm:$0xff]
    %v4081 = vld [vmem:[#allocation2 + $0x28] sm:$0xff]
    %v4082 = vld [vmem:[#allocation2 + $0x30] sm:$0xff]
    %v4083 = vld [vmem:[#allocation2 + $0x38] sm:$0xff]
    %v4084 = vld [vmem:[#allocation2 + $0x40] sm:$0xff]
    %v4085 = vld [vmem:[#allocation2 + $0x48] sm:$0xff]
    %v4086 = vld [vmem:[#allocation2 + $0x50] sm:$0xff]
    %v4087 = vld [vmem:[#allocation2 + $0x58] sm:$0xff]
    %v4088 = vld [vmem:[#allocation2 + $0x60] sm:$0xff]
    %v4089 = vld [vmem:[#allocation2 + $0x68] sm:$0xff]
    %v4090 = vld [vmem:[#allocation2 + $0x70] sm:$0xff]
    %v4091 = vld [vmem:[#allocation2 + $0x78] sm:$0xff]
    %v4092 = vld [vmem:[#allocation2 + $0x80] sm:$0xff]
    %v4093 = vld [vmem:[#allocation2 + $0x88] sm:$0xff]
    %v4094 = vld [vmem:[#allocation2 + $0x90] sm:$0xff]
    %v4095 = vld [vmem:[#allocation2 + $0x98] sm:$0xff]
    %v4096 = vld [vmem:[#allocation2 + $0xa0] sm:$0xff]
    %v4097 = vld [vmem:[#allocation2 + $0xa8] sm:$0xff]
    %v4098 = vld [vmem:[#allocation2 + $0xb0] sm:$0xff]
    %v4099 = vld [vmem:[#allocation2 + $0xb8] sm:$0xff]
    %4124 = vrot.lane.b32.xlu0 %v4076, 91
    %v4125 = vpop.permute.xlu0 %4124
    %4126 = vrot.lane.b32.xlu0 %v4077, 91
    %v4127 = vpop.permute.xlu0 %4126
    %4128 = vrot.lane.b32.xlu0 %v4078, 91
    %v4129 = vpop.permute.xlu0 %4128
    %4130 = vrot.lane.b32.xlu0 %v4079, 91
    %v4131 = vpop.permute.xlu0 %4130
    %4132 = vrot.lane.b32.xlu0 %v4080, 91
    %v4133 = vpop.permute.xlu0 %4132
    %4134 = vrot.lane.b32.xlu0 %v4081, 91
    %v4135 = vpop.permute.xlu0 %4134
    %4136 = vrot.lane.b32.xlu0 %v4082, 91
    %v4137 = vpop.permute.xlu0 %4136
    %4138 = vrot.lane.b32.xlu0 %v4083, 91
    %v4139 = vpop.permute.xlu0 %4138
    %4140 = vrot.lane.b32.xlu0 %v4084, 91
    %v4141 = vpop.permute.xlu0 %4140
    %4142 = vrot.lane.b32.xlu0 %v4085, 91
    %v4143 = vpop.permute.xlu0 %4142
    %4144 = vrot.lane.b32.xlu0 %v4086, 91
    %v4145 = vpop.permute.xlu0 %4144
    %4146 = vrot.lane.b32.xlu0 %v4087, 91
    %v4147 = vpop.permute.xlu0 %4146
    %4148 = vrot.lane.b32.xlu0 %v4088, 91
    %v4149 = vpop.permute.xlu0 %4148
    %4150 = vrot.lane.b32.xlu0 %v4089, 91
    %v4151 = vpop.permute.xlu0 %4150
    %4152 = vrot.lane.b32.xlu0 %v4090, 91
    %v4153 = vpop.permute.xlu0 %4152
    %4154 = vrot.lane.b32.xlu0 %v4091, 91
    %v4155 = vpop.permute.xlu0 %4154
    %4156 = vrot.lane.b32.xlu0 %v4092, 91
    %v4157 = vpop.permute.xlu0 %4156
    %4158 = vrot.lane.b32.xlu0 %v4093, 91
    %v4159 = vpop.permute.xlu0 %4158
    %4160 = vrot.lane.b32.xlu0 %v4094, 91
    %v4161 = vpop.permute.xlu0 %4160
    %4162 = vrot.lane.b32.xlu0 %v4095, 91
    %v4163 = vpop.permute.xlu0 %4162
    %4164 = vrot.lane.b32.xlu0 %v4096, 91
    %v4165 = vpop.permute.xlu0 %4164
    %4166 = vrot.lane.b32.xlu0 %v4097, 91
    %v4167 = vpop.permute.xlu0 %4166
    %4168 = vrot.lane.b32.xlu0 %v4098, 91
    %v4169 = vpop.permute.xlu0 %4168
    %4170 = vrot.lane.b32.xlu0 %v4099, 91
    %v4171 = vpop.permute.xlu0 %4170
    %v4172 = vsel %vm1640, %v4125, %v4127
    %v4173 = vsel %vm1640, %v4127, %v4129
    %v4174 = vsel %vm1640, %v4129, %v4131
    %v4175 = vsel %vm1640, %v4131, %v4133
    %v4176 = vsel %vm1640, %v4133, %v4135
    %v4177 = vsel %vm1640, %v4137, %v4139
    %v4178 = vsel %vm1640, %v4139, %v4141
    %v4179 = vsel %vm1640, %v4141, %v4143
    %v4180 = vsel %vm1640, %v4143, %v4145
    %v4181 = vsel %vm1640, %v4145, %v4147
    %v4182 = vsel %vm1640, %v4149, %v4151
    %v4183 = vsel %vm1640, %v4151, %v4153
    %v4184 = vsel %vm1640, %v4153, %v4155
    %v4185 = vsel %vm1640, %v4155, %v4157
    %v4186 = vsel %vm1640, %v4157, %v4159
    %v4187 = vsel %vm1640, %v4161, %v4163
    %v4188 = vsel %vm1640, %v4163, %v4165
    %v4189 = vsel %vm1640, %v4165, %v4167
    %v4190 = vsel %vm1640, %v4167, %v4169
    %v4191 = vsel %vm1640, %v4169, %v4171
    %4212 = vst [vmem:[#allocation3 + $0x460] sm:$0xff] %v4172
    %4213 = vst [vmem:[#allocation3 + $0x468] sm:$0xff] %v4173
    %4214 = vst [vmem:[#allocation3 + $0x470] sm:$0xff] %v4174
    %4215 = vst [vmem:[#allocation3 + $0x478] sm:$0xff] %v4175
    %4216 = vst.msk [vmem:[#allocation3 + $0x480] sm:$0xff] %vm685, %v4176
    %4217 = vst [vmem:[#allocation3 + $0x488] sm:$0xff] %v4177
    %4218 = vst [vmem:[#allocation3 + $0x490] sm:$0xff] %v4178
    %4219 = vst [vmem:[#allocation3 + $0x498] sm:$0xff] %v4179
    %4220 = vst [vmem:[#allocation3 + $0x4a0] sm:$0xff] %v4180
    %4221 = vst.msk [vmem:[#allocation3 + $0x4a8] sm:$0xff] %vm685, %v4181
    %4222 = vst [vmem:[#allocation3 + $0x4b0] sm:$0xff] %v4182
    %4223 = vst [vmem:[#allocation3 + $0x4b8] sm:$0xff] %v4183
    %4224 = vst [vmem:[#allocation3 + $0x4c0] sm:$0xff] %v4184
    %4225 = vst [vmem:[#allocation3 + $0x4c8] sm:$0xff] %v4185
    %4226 = vst.msk [vmem:[#allocation3 + $0x4d0] sm:$0xff] %vm685, %v4186
    %4227 = vst [vmem:[#allocation3 + $0x4d8] sm:$0xff] %v4187
    %4228 = vst [vmem:[#allocation3 + $0x4e0] sm:$0xff] %v4188
    %4229 = vst [vmem:[#allocation3 + $0x4e8] sm:$0xff] %v4189
    %4230 = vst [vmem:[#allocation3 + $0x4f0] sm:$0xff] %v4190
    %4231 = vst.msk [vmem:[#allocation3 + $0x4f8] sm:$0xff] %vm685, %v4191
    %v4232 = vld [vmem:[#allocation2] sm:$0xff]
    %v4233 = vld [vmem:[#allocation2 + $0x8] sm:$0xff]
    %v4234 = vld [vmem:[#allocation2 + $0x10] sm:$0xff]
    %v4235 = vld [vmem:[#allocation2 + $0x18] sm:$0xff]
    %v4236 = vld [vmem:[#allocation2 + $0x20] sm:$0xff]
    %v4237 = vld [vmem:[#allocation2 + $0x28] sm:$0xff]
    %v4238 = vld [vmem:[#allocation2 + $0x30] sm:$0xff]
    %v4239 = vld [vmem:[#allocation2 + $0x38] sm:$0xff]
    %v4240 = vld [vmem:[#allocation2 + $0x40] sm:$0xff]
    %v4241 = vld [vmem:[#allocation2 + $0x48] sm:$0xff]
    %v4242 = vld [vmem:[#allocation2 + $0x50] sm:$0xff]
    %v4243 = vld [vmem:[#allocation2 + $0x58] sm:$0xff]
    %v4244 = vld [vmem:[#allocation2 + $0x60] sm:$0xff]
    %v4245 = vld [vmem:[#allocation2 + $0x68] sm:$0xff]
    %v4246 = vld [vmem:[#allocation2 + $0x70] sm:$0xff]
    %v4247 = vld [vmem:[#allocation2 + $0x78] sm:$0xff]
    %v4248 = vld [vmem:[#allocation2 + $0x80] sm:$0xff]
    %v4249 = vld [vmem:[#allocation2 + $0x88] sm:$0xff]
    %v4250 = vld [vmem:[#allocation2 + $0x90] sm:$0xff]
    %v4251 = vld [vmem:[#allocation2 + $0x98] sm:$0xff]
    %v4252 = vld [vmem:[#allocation2 + $0xa0] sm:$0xff]
    %v4253 = vld [vmem:[#allocation2 + $0xa8] sm:$0xff]
    %v4254 = vld [vmem:[#allocation2 + $0xb0] sm:$0xff]
    %v4255 = vld [vmem:[#allocation2 + $0xb8] sm:$0xff]
    %4280 = vrot.lane.b32.xlu0 %v4232, 90
    %v4281 = vpop.permute.xlu0 %4280
    %4282 = vrot.lane.b32.xlu0 %v4233, 90
    %v4283 = vpop.permute.xlu0 %4282
    %4284 = vrot.lane.b32.xlu0 %v4234, 90
    %v4285 = vpop.permute.xlu0 %4284
    %4286 = vrot.lane.b32.xlu0 %v4235, 90
    %v4287 = vpop.permute.xlu0 %4286
    %4288 = vrot.lane.b32.xlu0 %v4236, 90
    %v4289 = vpop.permute.xlu0 %4288
    %4290 = vrot.lane.b32.xlu0 %v4237, 90
    %v4291 = vpop.permute.xlu0 %4290
    %4292 = vrot.lane.b32.xlu0 %v4238, 90
    %v4293 = vpop.permute.xlu0 %4292
    %4294 = vrot.lane.b32.xlu0 %v4239, 90
    %v4295 = vpop.permute.xlu0 %4294
    %4296 = vrot.lane.b32.xlu0 %v4240, 90
    %v4297 = vpop.permute.xlu0 %4296
    %4298 = vrot.lane.b32.xlu0 %v4241, 90
    %v4299 = vpop.permute.xlu0 %4298
    %4300 = vrot.lane.b32.xlu0 %v4242, 90
    %v4301 = vpop.permute.xlu0 %4300
    %4302 = vrot.lane.b32.xlu0 %v4243, 90
    %v4303 = vpop.permute.xlu0 %4302
    %4304 = vrot.lane.b32.xlu0 %v4244, 90
    %v4305 = vpop.permute.xlu0 %4304
    %4306 = vrot.lane.b32.xlu0 %v4245, 90
    %v4307 = vpop.permute.xlu0 %4306
    %4308 = vrot.lane.b32.xlu0 %v4246, 90
    %v4309 = vpop.permute.xlu0 %4308
    %4310 = vrot.lane.b32.xlu0 %v4247, 90
    %v4311 = vpop.permute.xlu0 %4310
    %4312 = vrot.lane.b32.xlu0 %v4248, 90
    %v4313 = vpop.permute.xlu0 %4312
    %4314 = vrot.lane.b32.xlu0 %v4249, 90
    %v4315 = vpop.permute.xlu0 %4314
    %4316 = vrot.lane.b32.xlu0 %v4250, 90
    %v4317 = vpop.permute.xlu0 %4316
    %4318 = vrot.lane.b32.xlu0 %v4251, 90
    %v4319 = vpop.permute.xlu0 %4318
    %4320 = vrot.lane.b32.xlu0 %v4252, 90
    %v4321 = vpop.permute.xlu0 %4320
    %4322 = vrot.lane.b32.xlu0 %v4253, 90
    %v4323 = vpop.permute.xlu0 %4322
    %4324 = vrot.lane.b32.xlu0 %v4254, 90
    %v4325 = vpop.permute.xlu0 %4324
    %4326 = vrot.lane.b32.xlu0 %v4255, 90
    %v4327 = vpop.permute.xlu0 %4326
    %v4328 = vsel %vm1797, %v4281, %v4283
    %v4329 = vsel %vm1797, %v4283, %v4285
    %v4330 = vsel %vm1797, %v4285, %v4287
    %v4331 = vsel %vm1797, %v4287, %v4289
    %v4332 = vsel %vm1797, %v4289, %v4291
    %v4333 = vsel %vm1797, %v4293, %v4295
    %v4334 = vsel %vm1797, %v4295, %v4297
    %v4335 = vsel %vm1797, %v4297, %v4299
    %v4336 = vsel %vm1797, %v4299, %v4301
    %v4337 = vsel %vm1797, %v4301, %v4303
    %v4338 = vsel %vm1797, %v4305, %v4307
    %v4339 = vsel %vm1797, %v4307, %v4309
    %v4340 = vsel %vm1797, %v4309, %v4311
    %v4341 = vsel %vm1797, %v4311, %v4313
    %v4342 = vsel %vm1797, %v4313, %v4315
    %v4343 = vsel %vm1797, %v4317, %v4319
    %v4344 = vsel %vm1797, %v4319, %v4321
    %v4345 = vsel %vm1797, %v4321, %v4323
    %v4346 = vsel %vm1797, %v4323, %v4325
    %v4347 = vsel %vm1797, %v4325, %v4327
    %4368 = vst [vmem:[#allocation3 + $0x500] sm:$0xff] %v4328
    %4369 = vst [vmem:[#allocation3 + $0x508] sm:$0xff] %v4329
    %4370 = vst [vmem:[#allocation3 + $0x510] sm:$0xff] %v4330
    %4371 = vst [vmem:[#allocation3 + $0x518] sm:$0xff] %v4331
    %4372 = vst.msk [vmem:[#allocation3 + $0x520] sm:$0xff] %vm685, %v4332
    %4373 = vst [vmem:[#allocation3 + $0x528] sm:$0xff] %v4333
    %4374 = vst [vmem:[#allocation3 + $0x530] sm:$0xff] %v4334
    %4375 = vst [vmem:[#allocation3 + $0x538] sm:$0xff] %v4335
    %4376 = vst [vmem:[#allocation3 + $0x540] sm:$0xff] %v4336
    %4377 = vst.msk [vmem:[#allocation3 + $0x548] sm:$0xff] %vm685, %v4337
    %4378 = vst [vmem:[#allocation3 + $0x550] sm:$0xff] %v4338
    %4379 = vst [vmem:[#allocation3 + $0x558] sm:$0xff] %v4339
    %4380 = vst [vmem:[#allocation3 + $0x560] sm:$0xff] %v4340
    %4381 = vst [vmem:[#allocation3 + $0x568] sm:$0xff] %v4341
    %4382 = vst.msk [vmem:[#allocation3 + $0x570] sm:$0xff] %vm685, %v4342
    %4383 = vst [vmem:[#allocation3 + $0x578] sm:$0xff] %v4343
    %4384 = vst [vmem:[#allocation3 + $0x580] sm:$0xff] %v4344
    %4385 = vst [vmem:[#allocation3 + $0x588] sm:$0xff] %v4345
    %4386 = vst [vmem:[#allocation3 + $0x590] sm:$0xff] %v4346
    %4387 = vst.msk [vmem:[#allocation3 + $0x598] sm:$0xff] %vm685, %v4347
    %v4388 = vld [vmem:[%s3] sm:$0xff]
    %v4389 = vld [vmem:[%s3 + $0x8] sm:$0x3]
    %v4390 = vld [vmem:[#allocation3] sm:$0xff]
    %v4391 = vld [vmem:[#allocation3 + $0x8] sm:$0xff]
    %v4392 = vld [vmem:[#allocation3 + $0x10] sm:$0xff]
    %v4393 = vld [vmem:[#allocation3 + $0x18] sm:$0xff]
    %v4394 = vld [vmem:[#allocation3 + $0x20] sm:$0xff]
    %v4395 = vld [vmem:[#allocation3 + $0x28] sm:$0xff]
    %v4396 = vld [vmem:[#allocation3 + $0x30] sm:$0xff]
    %v4397 = vld [vmem:[#allocation3 + $0x38] sm:$0xff]
    %v4398 = vld [vmem:[#allocation3 + $0x40] sm:$0xff]
    %v4399 = vld [vmem:[#allocation3 + $0x48] sm:$0xff]
    %v4400 = vld [vmem:[#allocation3 + $0x50] sm:$0xff]
    %v4401 = vld [vmem:[#allocation3 + $0x58] sm:$0xff]
    %v4402 = vld [vmem:[#allocation3 + $0x60] sm:$0xff]
    %v4403 = vld [vmem:[#allocation3 + $0x68] sm:$0xff]
    %v4404 = vld [vmem:[#allocation3 + $0x70] sm:$0xff]
    %v4405 = vld [vmem:[#allocation3 + $0x78] sm:$0xff]
    %v4406 = vld [vmem:[#allocation3 + $0x80] sm:$0xff]
    %v4407 = vld [vmem:[#allocation3 + $0x88] sm:$0xff]
    %v4408 = vld [vmem:[#allocation3 + $0x90] sm:$0xff]
    %v4409 = vld [vmem:[#allocation3 + $0x98] sm:$0xff]
    %v4410 = vld [vmem:[#allocation3 + $0xa0] sm:$0xff]
    %v4411 = vld [vmem:[#allocation3 + $0xa8] sm:$0xff]
    %v4412 = vld [vmem:[#allocation3 + $0xb0] sm:$0xff]
    %v4413 = vld [vmem:[#allocation3 + $0xb8] sm:$0xff]
    %v4414 = vld [vmem:[#allocation3 + $0xc0] sm:$0xff]
    %v4415 = vld [vmem:[#allocation3 + $0xc8] sm:$0xff]
    %v4416 = vld [vmem:[#allocation3 + $0xd0] sm:$0xff]
    %v4417 = vld [vmem:[#allocation3 + $0xd8] sm:$0xff]
    %v4418 = vld [vmem:[#allocation3 + $0xe0] sm:$0xff]
    %v4419 = vld [vmem:[#allocation3 + $0xe8] sm:$0xff]
    %v4420 = vld [vmem:[#allocation3 + $0xf0] sm:$0xff]
    %v4421 = vld [vmem:[#allocation3 + $0xf8] sm:$0xff]
    %v4422 = vld [vmem:[#allocation3 + $0x100] sm:$0xff]
    %v4423 = vld [vmem:[#allocation3 + $0x108] sm:$0xff]
    %v4424 = vld [vmem:[#allocation3 + $0x110] sm:$0xff]
    %v4425 = vld [vmem:[#allocation3 + $0x118] sm:$0xff]
    %v4426 = vld [vmem:[#allocation3 + $0x120] sm:$0xff]
    %v4427 = vld [vmem:[#allocation3 + $0x128] sm:$0xff]
    %v4428 = vld [vmem:[#allocation3 + $0x130] sm:$0xff]
    %v4429 = vld [vmem:[#allocation3 + $0x138] sm:$0xff]
    %v4430 = vld [vmem:[#allocation3 + $0x140] sm:$0xff]
    %v4431 = vld [vmem:[#allocation3 + $0x148] sm:$0xff]
    %v4432 = vld [vmem:[#allocation3 + $0x150] sm:$0xff]
    %v4433 = vld [vmem:[#allocation3 + $0x158] sm:$0xff]
    %v4434 = vld [vmem:[#allocation3 + $0x160] sm:$0xff]
    %v4435 = vld [vmem:[#allocation3 + $0x168] sm:$0xff]
    %v4436 = vld [vmem:[#allocation3 + $0x170] sm:$0xff]
    %v4437 = vld [vmem:[#allocation3 + $0x178] sm:$0xff]
    %v4438 = vld [vmem:[#allocation3 + $0x180] sm:$0xff]
    %v4439 = vld [vmem:[#allocation3 + $0x188] sm:$0xff]
    %v4440 = vld [vmem:[#allocation3 + $0x190] sm:$0xff]
    %v4441 = vld [vmem:[#allocation3 + $0x198] sm:$0xff]
    %v4442 = vld [vmem:[#allocation3 + $0x1a0] sm:$0xff]
    %v4443 = vld [vmem:[#allocation3 + $0x1a8] sm:$0xff]
    %v4444 = vld [vmem:[#allocation3 + $0x1b0] sm:$0xff]
    %v4445 = vld [vmem:[#allocation3 + $0x1b8] sm:$0xff]
    %v4446 = vld [vmem:[#allocation3 + $0x1c0] sm:$0xff]
    %v4447 = vld [vmem:[#allocation3 + $0x1c8] sm:$0xff]
    %v4448 = vld [vmem:[#allocation3 + $0x1d0] sm:$0xff]
    %v4449 = vld [vmem:[#allocation3 + $0x1d8] sm:$0xff]
    %v4450 = vld [vmem:[#allocation3 + $0x1e0] sm:$0xff]
    %v4451 = vld [vmem:[#allocation3 + $0x1e8] sm:$0xff]
    %v4452 = vld [vmem:[#allocation3 + $0x1f0] sm:$0xff]
    %v4453 = vld [vmem:[#allocation3 + $0x1f8] sm:$0xff]
    %v4454 = vld [vmem:[#allocation3 + $0x200] sm:$0xff]
    %v4455 = vld [vmem:[#allocation3 + $0x208] sm:$0xff]
    %v4456 = vld [vmem:[#allocation3 + $0x210] sm:$0xff]
    %v4457 = vld [vmem:[#allocation3 + $0x218] sm:$0xff]
    %v4458 = vld [vmem:[#allocation3 + $0x220] sm:$0xff]
    %v4459 = vld [vmem:[#allocation3 + $0x228] sm:$0xff]
    %v4460 = vld [vmem:[#allocation3 + $0x230] sm:$0xff]
    %v4461 = vld [vmem:[#allocation3 + $0x238] sm:$0xff]
    %v4462 = vld [vmem:[#allocation3 + $0x240] sm:$0xff]
    %v4463 = vld [vmem:[#allocation3 + $0x248] sm:$0xff]
    %v4464 = vld [vmem:[#allocation3 + $0x250] sm:$0xff]
    %v4465 = vld [vmem:[#allocation3 + $0x258] sm:$0xff]
    %v4466 = vld [vmem:[#allocation3 + $0x260] sm:$0xff]
    %v4467 = vld [vmem:[#allocation3 + $0x268] sm:$0xff]
    %v4468 = vld [vmem:[#allocation3 + $0x270] sm:$0xff]
    %v4469 = vld [vmem:[#allocation3 + $0x278] sm:$0xff]
    %v4470 = vld [vmem:[#allocation3 + $0x280] sm:$0xff]
    %v4471 = vld [vmem:[#allocation3 + $0x288] sm:$0xff]
    %v4472 = vld [vmem:[#allocation3 + $0x290] sm:$0xff]
    %v4473 = vld [vmem:[#allocation3 + $0x298] sm:$0xff]
    %v4474 = vld [vmem:[#allocation3 + $0x2a0] sm:$0xff]
    %v4475 = vld [vmem:[#allocation3 + $0x2a8] sm:$0xff]
    %v4476 = vld [vmem:[#allocation3 + $0x2b0] sm:$0xff]
    %v4477 = vld [vmem:[#allocation3 + $0x2b8] sm:$0xff]
    %v4478 = vld [vmem:[#allocation3 + $0x2c0] sm:$0xff]
    %v4479 = vld [vmem:[#allocation3 + $0x2c8] sm:$0xff]
    %v4480 = vld [vmem:[#allocation3 + $0x2d0] sm:$0xff]
    %v4481 = vld [vmem:[#allocation3 + $0x2d8] sm:$0xff]
    %v4482 = vld [vmem:[#allocation3 + $0x2e0] sm:$0xff]
    %v4483 = vld [vmem:[#allocation3 + $0x2e8] sm:$0xff]
    %v4484 = vld [vmem:[#allocation3 + $0x2f0] sm:$0xff]
    %v4485 = vld [vmem:[#allocation3 + $0x2f8] sm:$0xff]
    %v4486 = vld [vmem:[#allocation3 + $0x300] sm:$0xff]
    %v4487 = vld [vmem:[#allocation3 + $0x308] sm:$0xff]
    %v4488 = vld [vmem:[#allocation3 + $0x310] sm:$0xff]
    %v4489 = vld [vmem:[#allocation3 + $0x318] sm:$0xff]
    %v4490 = vld [vmem:[#allocation3 + $0x320] sm:$0xff]
    %v4491 = vld [vmem:[#allocation3 + $0x328] sm:$0xff]
    %v4492 = vld [vmem:[#allocation3 + $0x330] sm:$0xff]
    %v4493 = vld [vmem:[#allocation3 + $0x338] sm:$0xff]
    %v4494 = vld [vmem:[#allocation3 + $0x340] sm:$0xff]
    %v4495 = vld [vmem:[#allocation3 + $0x348] sm:$0xff]
    %v4496 = vld [vmem:[#allocation3 + $0x350] sm:$0xff]
    %v4497 = vld [vmem:[#allocation3 + $0x358] sm:$0xff]
    %v4498 = vld [vmem:[#allocation3 + $0x360] sm:$0xff]
    %v4499 = vld [vmem:[#allocation3 + $0x368] sm:$0xff]
    %v4500 = vld [vmem:[#allocation3 + $0x370] sm:$0xff]
    %v4501 = vld [vmem:[#allocation3 + $0x378] sm:$0xff]
    %v4502 = vld [vmem:[#allocation3 + $0x380] sm:$0xff]
    %v4503 = vld [vmem:[#allocation3 + $0x388] sm:$0xff]
    %v4504 = vld [vmem:[#allocation3 + $0x390] sm:$0xff]
    %v4505 = vld [vmem:[#allocation3 + $0x398] sm:$0xff]
    %v4506 = vld [vmem:[#allocation3 + $0x3a0] sm:$0xff]
    %v4507 = vld [vmem:[#allocation3 + $0x3a8] sm:$0xff]
    %v4508 = vld [vmem:[#allocation3 + $0x3b0] sm:$0xff]
    %v4509 = vld [vmem:[#allocation3 + $0x3b8] sm:$0xff]
    %v4510 = vld [vmem:[#allocation3 + $0x3c0] sm:$0xff]
    %v4511 = vld [vmem:[#allocation3 + $0x3c8] sm:$0xff]
    %v4512 = vld [vmem:[#allocation3 + $0x3d0] sm:$0xff]
    %v4513 = vld [vmem:[#allocation3 + $0x3d8] sm:$0xff]
    %v4514 = vld [vmem:[#allocation3 + $0x3e0] sm:$0xff]
    %v4515 = vld [vmem:[#allocation3 + $0x3e8] sm:$0xff]
    %v4516 = vld [vmem:[#allocation3 + $0x3f0] sm:$0xff]
    %v4517 = vld [vmem:[#allocation3 + $0x3f8] sm:$0xff]
    %v4518 = vld [vmem:[#allocation3 + $0x400] sm:$0xff]
    %v4519 = vld [vmem:[#allocation3 + $0x408] sm:$0xff]
    %v4520 = vld [vmem:[#allocation3 + $0x410] sm:$0xff]
    %v4521 = vld [vmem:[#allocation3 + $0x418] sm:$0xff]
    %v4522 = vld [vmem:[#allocation3 + $0x420] sm:$0xff]
    %v4523 = vld [vmem:[#allocation3 + $0x428] sm:$0xff]
    %v4524 = vld [vmem:[#allocation3 + $0x430] sm:$0xff]
    %v4525 = vld [vmem:[#allocation3 + $0x438] sm:$0xff]
    %v4526 = vld [vmem:[#allocation3 + $0x440] sm:$0xff]
    %v4527 = vld [vmem:[#allocation3 + $0x448] sm:$0xff]
    %v4528 = vld [vmem:[#allocation3 + $0x450] sm:$0xff]
    %v4529 = vld [vmem:[#allocation3 + $0x458] sm:$0xff]
    %v4530 = vld [vmem:[#allocation3 + $0x460] sm:$0xff]
    %v4531 = vld [vmem:[#allocation3 + $0x468] sm:$0xff]
    %v4532 = vld [vmem:[#allocation3 + $0x470] sm:$0xff]
    %v4533 = vld [vmem:[#allocation3 + $0x478] sm:$0xff]
    %v4534 = vld [vmem:[#allocation3 + $0x480] sm:$0xff]
    %v4535 = vld [vmem:[#allocation3 + $0x488] sm:$0xff]
    %v4536 = vld [vmem:[#allocation3 + $0x490] sm:$0xff]
    %v4537 = vld [vmem:[#allocation3 + $0x498] sm:$0xff]
    %v4538 = vld [vmem:[#allocation3 + $0x4a0] sm:$0xff]
    %v4539 = vld [vmem:[#allocation3 + $0x4a8] sm:$0xff]
    %v4540 = vld [vmem:[#allocation3 + $0x4b0] sm:$0xff]
    %v4541 = vld [vmem:[#allocation3 + $0x4b8] sm:$0xff]
    %v4542 = vld [vmem:[#allocation3 + $0x4c0] sm:$0xff]
    %v4543 = vld [vmem:[#allocation3 + $0x4c8] sm:$0xff]
    %v4544 = vld [vmem:[#allocation3 + $0x4d0] sm:$0xff]
    %v4545 = vld [vmem:[#allocation3 + $0x4d8] sm:$0xff]
    %v4546 = vld [vmem:[#allocation3 + $0x4e0] sm:$0xff]
    %v4547 = vld [vmem:[#allocation3 + $0x4e8] sm:$0xff]
    %v4548 = vld [vmem:[#allocation3 + $0x4f0] sm:$0xff]
    %v4549 = vld [vmem:[#allocation3 + $0x4f8] sm:$0xff]
    %v4550 = vld [vmem:[#allocation3 + $0x500] sm:$0xff]
    %v4551 = vld [vmem:[#allocation3 + $0x508] sm:$0xff]
    %v4552 = vld [vmem:[#allocation3 + $0x510] sm:$0xff]
    %v4553 = vld [vmem:[#allocation3 + $0x518] sm:$0xff]
    %v4554 = vld [vmem:[#allocation3 + $0x520] sm:$0xff]
    %v4555 = vld [vmem:[#allocation3 + $0x528] sm:$0xff]
    %v4556 = vld [vmem:[#allocation3 + $0x530] sm:$0xff]
    %v4557 = vld [vmem:[#allocation3 + $0x538] sm:$0xff]
    %v4558 = vld [vmem:[#allocation3 + $0x540] sm:$0xff]
    %v4559 = vld [vmem:[#allocation3 + $0x548] sm:$0xff]
    %v4560 = vld [vmem:[#allocation3 + $0x550] sm:$0xff]
    %v4561 = vld [vmem:[#allocation3 + $0x558] sm:$0xff]
    %v4562 = vld [vmem:[#allocation3 + $0x560] sm:$0xff]
    %v4563 = vld [vmem:[#allocation3 + $0x568] sm:$0xff]
    %v4564 = vld [vmem:[#allocation3 + $0x570] sm:$0xff]
    %v4565 = vld [vmem:[#allocation3 + $0x578] sm:$0xff]
    %v4566 = vld [vmem:[#allocation3 + $0x580] sm:$0xff]
    %v4567 = vld [vmem:[#allocation3 + $0x588] sm:$0xff]
    %v4568 = vld [vmem:[#allocation3 + $0x590] sm:$0xff]
    %v4569 = vld [vmem:[#allocation3 + $0x598] sm:$0xff]
    %v4572 = vcombine.high %v4388, %v4388
    %v4574 = vunpack.c.l.s4 1983009808
    %v4575 = vunpack.c.0.s8 %v4574
    %v4576 = vlaneseq
    %v4577 = vshrl.u32 %v4576, 7
    %v4578 = vsub.s32 %v4575, %v4577
    %v4579 = vrot.slane %v4388, %v4578
    %v4581 = vunpack.c.l.s4 1983009808
    %v4582 = vunpack.c.0.s8 %v4581
    %v4583 = vlaneseq
    %v4584 = vshrl.u32 %v4583, 7
    %v4585 = vsub.s32 %v4582, %v4584
    %v4586 = vrot.slane %v4572, %v4585
    %v4587 = vcombine.high %v4579, %v4579
    %v4588 = vcombine.high %v4586, %v4586
    %v4590 = vunpack.c.l.s4 1983009808
    %v4591 = vunpack.c.0.s8 %v4590
    %v4592 = vlaneseq
    %v4593 = vshrl.u32 %v4592, 7
    %v4594 = vsub.s32 %v4591, %v4593
    %v4595 = vrot.slane %v4389, %v4594
    %v4601 = vsel %vm2162, %v4595, 0
    %4603 = vmatprep.subr.bf16.mxu0 %v4391
    %4604 = vmatpush1.bf16.msra.mxu0 %v4390
    %4605 = vmatprep.subr.bf16.mxu0 %v4396
    %4606 = vmatpush1.bf16.msra.mxu0 %v4395
    %4607 = vmatprep.subr.bf16.mxu0 %v4401
    %4608 = vmatpush1.bf16.msra.mxu0 %v4400
    %4609 = vmatprep.subr.bf16.mxu0 %v4406
    %4610 = vmatpush1.bf16.msra.mxu0 %v4405
    %4611 = vmatprep.subr.bf16.mxu0 %v4411
    %4612 = vmatpush1.bf16.msra.mxu0 %v4410
    %4613 = vmatprep.subr.bf16.mxu0 %v4416
    %4614 = vmatpush1.bf16.msra.mxu0 %v4415
    %4615 = vmatprep.subr.bf16.mxu0 %v4421
    %4616 = vmatpush1.bf16.msra.mxu0 %v4420
    %4617 = vmatprep.subr.bf16.mxu0 %v4426
    %4618 = vmatpush1.bf16.msra.mxu0 %v4425
    %4619 = vmatprep.subr.bf16.mxu0 %v4431
    %4620 = vmatpush1.bf16.msra.mxu0 %v4430
    %4621 = vmatprep.subr.bf16.mxu0 %v4436
    %4622 = vmatpush1.bf16.msra.mxu0 %v4435
    %4623 = vmatprep.subr.bf16.mxu0 %v4441
    %4624 = vmatpush1.bf16.msra.mxu0 %v4440
    %4625 = vmatprep.subr.bf16.mxu0 %v4446
    %4626 = vmatpush1.bf16.msra.mxu0 %v4445
    %4627 = vmatprep.subr.bf16.mxu0 %v4451
    %4628 = vmatpush1.bf16.msra.mxu0 %v4450
    %4629 = vmatprep.subr.bf16.mxu0 %v4456
    %4630 = vmatpush1.bf16.msra.mxu0 %v4455
    %4631 = vmatprep.subr.bf16.mxu0 %v4461
    %4632 = vmatpush1.bf16.msra.mxu0 %v4460
    %4633 = vmatprep.subr.bf16.mxu0 %v4466
    %4634 = vmatpush1.bf16.msra.mxu0 %v4465
    %4635 = vmatprep.mubr.bf16.mxu0 %v4587
    %4636 = vmatmul.mubr.bf16.gmra.mrb[0].mxu0 %v4579
    %v4637 = vpop.f32.mrb[0].mxu0
    %v4638 = vadd.f32 0.0, %v4637
    %v4639 = vpop.f32.mrb[0].mxu0
    %v4640 = vadd.f32 0.0, %v4639
    %v4641 = vpop.f32.mrb[0].mxu0
    %v4642 = vpop.f32.mrb[0].mxu0
    %4643 = vdwg.mxu0
    %4644 = vmatprep.subr.bf16.mxu0 %v4471
    %4645 = vmatpush1.bf16.msra.mxu0 %v4470
    %4646 = vmatprep.subr.bf16.mxu0 %v4476
    %4647 = vmatpush1.bf16.msra.mxu0 %v4475
    %4648 = vmatprep.subr.bf16.mxu0 %v4481
    %4649 = vmatpush1.bf16.msra.mxu0 %v4480
    %4650 = vmatprep.subr.bf16.mxu0 %v4486
    %4651 = vmatpush1.bf16.msra.mxu0 %v4485
    %4652 = vmatprep.subr.bf16.mxu0 %v4491
    %4653 = vmatpush1.bf16.msra.mxu0 %v4490
    %4654 = vmatprep.subr.bf16.mxu0 %v4496
    %4655 = vmatpush1.bf16.msra.mxu0 %v4495
    %4656 = vmatprep.subr.bf16.mxu0 %v4501
    %4657 = vmatpush1.bf16.msra.mxu0 %v4500
    %4658 = vmatprep.subr.bf16.mxu0 %v4506
    %4659 = vmatpush1.bf16.msra.mxu0 %v4505
    %4660 = vmatprep.subr.bf16.mxu0 %v4511
    %4661 = vmatpush1.bf16.msra.mxu0 %v4510
    %4662 = vmatprep.subr.bf16.mxu0 %v4516
    %4663 = vmatpush1.bf16.msra.mxu0 %v4515
    %4664 = vmatprep.subr.bf16.mxu0 %v4521
    %4665 = vmatpush1.bf16.msra.mxu0 %v4520
    %4666 = vmatprep.subr.bf16.mxu0 %v4526
    %4667 = vmatpush1.bf16.msra.mxu0 %v4525
    %4668 = vmatprep.subr.bf16.mxu0 %v4531
    %4669 = vmatpush1.bf16.msra.mxu0 %v4530
    %4670 = vmatprep.subr.bf16.mxu0 %v4536
    %4671 = vmatpush1.bf16.msra.mxu0 %v4535
    %4672 = vmatprep.subr.bf16.mxu0 %v4541
    %4673 = vmatpush1.bf16.msra.mxu0 %v4540
    %4674 = vmatprep.subr.bf16.mxu0 %v4546
    %4675 = vmatpush1.bf16.msra.mxu0 %v4545
    %4676 = vmatprep.mubr.bf16.mxu0 %v4588
    %4677 = vmatmul.mubr.bf16.gmra.mrb[0].mxu0 %v4586
    %v4678 = vpop.f32.mrb[0].mxu0
    %v4679 = vadd.f32 %v4638, %v4678
    %v4680 = vpop.f32.mrb[0].mxu0
    %v4681 = vadd.f32 %v4640, %v4680
    %v4682 = vpop.f32.mrb[0].mxu0
    %v4683 = vpop.f32.mrb[0].mxu0
    %4684 = vdwg.mxu0
    %4685 = vmatprep.subr.bf16.mxu0 %v4551
    %4686 = vmatpush1.bf16.msra.mxu0 %v4550
    %4687 = vmatprep.subr.bf16.mxu0 %v4556
    %4688 = vmatpush1.bf16.msra.mxu0 %v4555
    %4689 = vmatprep.subr.bf16.mxu0 %v4561
    %4690 = vmatpush1.bf16.msra.mxu0 %v4560
    %4691 = vmatprep.subr.bf16.mxu0 %v4566
    %4692 = vmatpush1.bf16.msra.mxu0 %v4565
    %4693 = vmatprep.subr.bf16.mxu0 0
    %4694 = vmatpush1.bf16.msra.mxu0 0
    %4695 = vmatprep.subr.bf16.mxu0 0
    %4696 = vmatpush1.bf16.msra.mxu0 0
    %4697 = vmatprep.subr.bf16.mxu0 0
    %4698 = vmatpush1.bf16.msra.mxu0 0
    %4699 = vmatprep.subr.bf16.mxu0 0
    %4700 = vmatpush1.bf16.msra.mxu0 0
    %4701 = vmatprep.subr.bf16.mxu0 0
    %4702 = vmatpush1.bf16.msra.mxu0 0
    %4703 = vmatprep.subr.bf16.mxu0 0
    %4704 = vmatpush1.bf16.msra.mxu0 0
    %4705 = vmatprep.subr.bf16.mxu0 0
    %4706 = vmatpush1.bf16.msra.mxu0 0
    %4707 = vmatprep.subr.bf16.mxu0 0
    %4708 = vmatpush1.bf16.msra.mxu0 0
    %4709 = vmatprep.subr.bf16.mxu0 0
    %4710 = vmatpush1.bf16.msra.mxu0 0
    %4711 = vmatprep.subr.bf16.mxu0 0
    %4712 = vmatpush1.bf16.msra.mxu0 0
    %4713 = vmatprep.subr.bf16.mxu0 0
    %4714 = vmatpush1.bf16.msra.mxu0 0
    %4715 = vmatprep.subr.bf16.mxu0 0
    %4716 = vmatpush1.bf16.msra.mxu0 0
    %4717 = vmatprep.mubr.bf16.mxu0 0
    %4718 = vmatmul.mubr.bf16.gmra.mrb[0].mxu0 %v4601
    %v4719 = vpop.f32.mrb[0].mxu0
    %v4720 = vadd.f32 %v4679, %v4719
    %v4721 = vpop.f32.mrb[0].mxu0
    %v4722 = vadd.f32 %v4681, %v4721
    %v4723 = vpop.f32.mrb[0].mxu0
    %v4724 = vpop.f32.mrb[0].mxu0
    %4725 = vdwg.mxu0
    %4726 = vmatprep.subr.bf16.mxu0 %v4393
    %4727 = vmatpush1.bf16.msra.mxu0 %v4392
    %4728 = vmatprep.subr.bf16.mxu0 %v4398
    %4729 = vmatpush1.bf16.msra.mxu0 %v4397
    %4730 = vmatprep.subr.bf16.mxu0 %v4403
    %4731 = vmatpush1.bf16.msra.mxu0 %v4402
    %4732 = vmatprep.subr.bf16.mxu0 %v4408
    %4733 = vmatpush1.bf16.msra.mxu0 %v4407
    %4734 = vmatprep.subr.bf16.mxu0 %v4413
    %4735 = vmatpush1.bf16.msra.mxu0 %v4412
    %4736 = vmatprep.subr.bf16.mxu0 %v4418
    %4737 = vmatpush1.bf16.msra.mxu0 %v4417
    %4738 = vmatprep.subr.bf16.mxu0 %v4423
    %4739 = vmatpush1.bf16.msra.mxu0 %v4422
    %4740 = vmatprep.subr.bf16.mxu0 %v4428
    %4741 = vmatpush1.bf16.msra.mxu0 %v4427
    %4742 = vmatprep.subr.bf16.mxu0 %v4433
    %4743 = vmatpush1.bf16.msra.mxu0 %v4432
    %4744 = vmatprep.subr.bf16.mxu0 %v4438
    %4745 = vmatpush1.bf16.msra.mxu0 %v4437
    %4746 = vmatprep.subr.bf16.mxu0 %v4443
    %4747 = vmatpush1.bf16.msra.mxu0 %v4442
    %4748 = vmatprep.subr.bf16.mxu0 %v4448
    %4749 = vmatpush1.bf16.msra.mxu0 %v4447
    %4750 = vmatprep.subr.bf16.mxu0 %v4453
    %4751 = vmatpush1.bf16.msra.mxu0 %v4452
    %4752 = vmatprep.subr.bf16.mxu0 %v4458
    %4753 = vmatpush1.bf16.msra.mxu0 %v4457
    %4754 = vmatprep.subr.bf16.mxu0 %v4463
    %4755 = vmatpush1.bf16.msra.mxu0 %v4462
    %4756 = vmatprep.subr.bf16.mxu0 %v4468
    %4757 = vmatpush1.bf16.msra.mxu0 %v4467
    %4758 = vmatprep.mubr.bf16.mxu0 %v4587
    %4759 = vmatmul.mubr.bf16.gmra.mrb[0].mxu0 %v4579
    %v4760 = vpop.f32.mrb[0].mxu0
    %v4761 = vadd.f32 0.0, %v4760
    %v4762 = vpop.f32.mrb[0].mxu0
    %v4763 = vadd.f32 0.0, %v4762
    %v4764 = vpop.f32.mrb[0].mxu0
    %v4765 = vpop.f32.mrb[0].mxu0
    %4766 = vdwg.mxu0
    %4767 = vmatprep.subr.bf16.mxu0 %v4473
    %4768 = vmatpush1.bf16.msra.mxu0 %v4472
    %4769 = vmatprep.subr.bf16.mxu0 %v4478
    %4770 = vmatpush1.bf16.msra.mxu0 %v4477
    %4771 = vmatprep.subr.bf16.mxu0 %v4483
    %4772 = vmatpush1.bf16.msra.mxu0 %v4482
    %4773 = vmatprep.subr.bf16.mxu0 %v4488
    %4774 = vmatpush1.bf16.msra.mxu0 %v4487
    %4775 = vmatprep.subr.bf16.mxu0 %v4493
    %4776 = vmatpush1.bf16.msra.mxu0 %v4492
    %4777 = vmatprep.subr.bf16.mxu0 %v4498
    %4778 = vmatpush1.bf16.msra.mxu0 %v4497
    %4779 = vmatprep.subr.bf16.mxu0 %v4503
    %4780 = vmatpush1.bf16.msra.mxu0 %v4502
    %4781 = vmatprep.subr.bf16.mxu0 %v4508
    %4782 = vmatpush1.bf16.msra.mxu0 %v4507
    %4783 = vmatprep.subr.bf16.mxu0 %v4513
    %4784 = vmatpush1.bf16.msra.mxu0 %v4512
    %4785 = vmatprep.subr.bf16.mxu0 %v4518
    %4786 = vmatpush1.bf16.msra.mxu0 %v4517
    %4787 = vmatprep.subr.bf16.mxu0 %v4523
    %4788 = vmatpush1.bf16.msra.mxu0 %v4522
    %4789 = vmatprep.subr.bf16.mxu0 %v4528
    %4790 = vmatpush1.bf16.msra.mxu0 %v4527
    %4791 = vmatprep.subr.bf16.mxu0 %v4533
    %4792 = vmatpush1.bf16.msra.mxu0 %v4532
    %4793 = vmatprep.subr.bf16.mxu0 %v4538
    %4794 = vmatpush1.bf16.msra.mxu0 %v4537
    %4795 = vmatprep.subr.bf16.mxu0 %v4543
    %4796 = vmatpush1.bf16.msra.mxu0 %v4542
    %4797 = vmatprep.subr.bf16.mxu0 %v4548
    %4798 = vmatpush1.bf16.msra.mxu0 %v4547
    %4799 = vmatprep.mubr.bf16.mxu0 %v4588
    %4800 = vmatmul.mubr.bf16.gmra.mrb[0].mxu0 %v4586
    %v4801 = vpop.f32.mrb[0].mxu0
    %v4802 = vadd.f32 %v4761, %v4801
    %v4803 = vpop.f32.mrb[0].mxu0
    %v4804 = vadd.f32 %v4763, %v4803
    %v4805 = vpop.f32.mrb[0].mxu0
    %v4806 = vpop.f32.mrb[0].mxu0
    %4807 = vdwg.mxu0
    %4808 = vmatprep.subr.bf16.mxu0 %v4553
    %4809 = vmatpush1.bf16.msra.mxu0 %v4552
    %4810 = vmatprep.subr.bf16.mxu0 %v4558
    %4811 = vmatpush1.bf16.msra.mxu0 %v4557
    %4812 = vmatprep.subr.bf16.mxu0 %v4563
    %4813 = vmatpush1.bf16.msra.mxu0 %v4562
    %4814 = vmatprep.subr.bf16.mxu0 %v4568
    %4815 = vmatpush1.bf16.msra.mxu0 %v4567
    %4816 = vmatprep.subr.bf16.mxu0 0
    %4817 = vmatpush1.bf16.msra.mxu0 0
    %4818 = vmatprep.subr.bf16.mxu0 0
    %4819 = vmatpush1.bf16.msra.mxu0 0
    %4820 = vmatprep.subr.bf16.mxu0 0
    %4821 = vmatpush1.bf16.msra.mxu0 0
    %4822 = vmatprep.subr.bf16.mxu0 0
    %4823 = vmatpush1.bf16.msra.mxu0 0
    %4824 = vmatprep.subr.bf16.mxu0 0
    %4825 = vmatpush1.bf16.msra.mxu0 0
    %4826 = vmatprep.subr.bf16.mxu0 0
    %4827 = vmatpush1.bf16.msra.mxu0 0
    %4828 = vmatprep.subr.bf16.mxu0 0
    %4829 = vmatpush1.bf16.msra.mxu0 0
    %4830 = vmatprep.subr.bf16.mxu0 0
    %4831 = vmatpush1.bf16.msra.mxu0 0
    %4832 = vmatprep.subr.bf16.mxu0 0
    %4833 = vmatpush1.bf16.msra.mxu0 0
    %4834 = vmatprep.subr.bf16.mxu0 0
    %4835 = vmatpush1.bf16.msra.mxu0 0
    %4836 = vmatprep.subr.bf16.mxu0 0
    %4837 = vmatpush1.bf16.msra.mxu0 0
    %4838 = vmatprep.subr.bf16.mxu0 0
    %4839 = vmatpush1.bf16.msra.mxu0 0
    %4840 = vmatprep.mubr.bf16.mxu0 0
    %4841 = vmatmul.mubr.bf16.gmra.mrb[0].mxu0 %v4601
    %v4842 = vpop.f32.mrb[0].mxu0
    %v4843 = vadd.f32 %v4802, %v4842
    %v4844 = vpop.f32.mrb[0].mxu0
    %v4845 = vadd.f32 %v4804, %v4844
    %v4846 = vpop.f32.mrb[0].mxu0
    %v4847 = vpop.f32.mrb[0].mxu0
    %4848 = vdwg.mxu0
    %4849 = vmatprep.subr.bf16.mxu0 0
    %4850 = vmatpush1.bf16.msra.mxu0 %v4394
    %4851 = vmatprep.subr.bf16.mxu0 0
    %4852 = vmatpush1.bf16.msra.mxu0 %v4399
    %4853 = vmatprep.subr.bf16.mxu0 0
    %4854 = vmatpush1.bf16.msra.mxu0 %v4404
    %4855 = vmatprep.subr.bf16.mxu0 0
    %4856 = vmatpush1.bf16.msra.mxu0 %v4409
    %4857 = vmatprep.subr.bf16.mxu0 0
    %4858 = vmatpush1.bf16.msra.mxu0 %v4414
    %4859 = vmatprep.subr.bf16.mxu0 0
    %4860 = vmatpush1.bf16.msra.mxu0 %v4419
    %4861 = vmatprep.subr.bf16.mxu0 0
    %4862 = vmatpush1.bf16.msra.mxu0 %v4424
    %4863 = vmatprep.subr.bf16.mxu0 0
    %4864 = vmatpush1.bf16.msra.mxu0 %v4429
    %4865 = vmatprep.subr.bf16.mxu0 0
    %4866 = vmatpush1.bf16.msra.mxu0 %v4434
    %4867 = vmatprep.subr.bf16.mxu0 0
    %4868 = vmatpush1.bf16.msra.mxu0 %v4439
    %4869 = vmatprep.subr.bf16.mxu0 0
    %4870 = vmatpush1.bf16.msra.mxu0 %v4444
    %4871 = vmatprep.subr.bf16.mxu0 0
    %4872 = vmatpush1.bf16.msra.mxu0 %v4449
    %4873 = vmatprep.subr.bf16.mxu0 0
    %4874 = vmatpush1.bf16.msra.mxu0 %v4454
    %4875 = vmatprep.subr.bf16.mxu0 0
    %4876 = vmatpush1.bf16.msra.mxu0 %v4459
    %4877 = vmatprep.subr.bf16.mxu0 0
    %4878 = vmatpush1.bf16.msra.mxu0 %v4464
    %4879 = vmatprep.subr.bf16.mxu0 0
    %4880 = vmatpush1.bf16.msra.mxu0 %v4469
    %4881 = vmatprep.mubr.bf16.mxu0 %v4587
    %4882 = vmatmul.mubr.bf16.gmra.mrb[0].mxu0 %v4579
    %v4883 = vpop.f32.mrb[0].mxu0
    %v4884 = vadd.f32 0.0, %v4883
    %v4885 = vpop.f32.mrb[0].mxu0
    %v4886 = vpop.f32.mrb[0].mxu0
    %v4887 = vpop.f32.mrb[0].mxu0
    %4888 = vdwg.mxu0
    %4889 = vmatprep.subr.bf16.mxu0 0
    %4890 = vmatpush1.bf16.msra.mxu0 %v4474
    %4891 = vmatprep.subr.bf16.mxu0 0
    %4892 = vmatpush1.bf16.msra.mxu0 %v4479
    %4893 = vmatprep.subr.bf16.mxu0 0
    %4894 = vmatpush1.bf16.msra.mxu0 %v4484
    %4895 = vmatprep.subr.bf16.mxu0 0
    %4896 = vmatpush1.bf16.msra.mxu0 %v4489
    %4897 = vmatprep.subr.bf16.mxu0 0
    %4898 = vmatpush1.bf16.msra.mxu0 %v4494
    %4899 = vmatprep.subr.bf16.mxu0 0
    %4900 = vmatpush1.bf16.msra.mxu0 %v4499
    %4901 = vmatprep.subr.bf16.mxu0 0
    %4902 = vmatpush1.bf16.msra.mxu0 %v4504
    %4903 = vmatprep.subr.bf16.mxu0 0
    %4904 = vmatpush1.bf16.msra.mxu0 %v4509
    %4905 = vmatprep.subr.bf16.mxu0 0
    %4906 = vmatpush1.bf16.msra.mxu0 %v4514
    %4907 = vmatprep.subr.bf16.mxu0 0
    %4908 = vmatpush1.bf16.msra.mxu0 %v4519
    %4909 = vmatprep.subr.bf16.mxu0 0
    %4910 = vmatpush1.bf16.msra.mxu0 %v4524
    %4911 = vmatprep.subr.bf16.mxu0 0
    %4912 = vmatpush1.bf16.msra.mxu0 %v4529
    %4913 = vmatprep.subr.bf16.mxu0 0
    %4914 = vmatpush1.bf16.msra.mxu0 %v4534
    %4915 = vmatprep.subr.bf16.mxu0 0
    %4916 = vmatpush1.bf16.msra.mxu0 %v4539
    %4917 = vmatprep.subr.bf16.mxu0 0
    %4918 = vmatpush1.bf16.msra.mxu0 %v4544
    %4919 = vmatprep.subr.bf16.mxu0 0
    %4920 = vmatpush1.bf16.msra.mxu0 %v4549
    %4921 = vmatprep.mubr.bf16.mxu0 %v4588
    %4922 = vmatmul.mubr.bf16.gmra.mrb[0].mxu0 %v4586
    %v4923 = vpop.f32.mrb[0].mxu0
    %v4924 = vadd.f32 %v4884, %v4923
    %v4925 = vpop.f32.mrb[0].mxu0
    %v4926 = vpop.f32.mrb[0].mxu0
    %v4927 = vpop.f32.mrb[0].mxu0
    %4928 = vdwg.mxu0
    %4929 = vmatprep.subr.bf16.mxu0 0
    %4930 = vmatpush1.bf16.msra.mxu0 %v4554
    %4931 = vmatprep.subr.bf16.mxu0 0
    %4932 = vmatpush1.bf16.msra.mxu0 %v4559
    %4933 = vmatprep.subr.bf16.mxu0 0
    %4934 = vmatpush1.bf16.msra.mxu0 %v4564
    %4935 = vmatprep.subr.bf16.mxu0 0
    %4936 = vmatpush1.bf16.msra.mxu0 %v4569
    %4937 = vmatprep.subr.bf16.mxu0 0
    %4938 = vmatpush1.bf16.msra.mxu0 0
    %4939 = vmatprep.subr.bf16.mxu0 0
    %4940 = vmatpush1.bf16.msra.mxu0 0
    %4941 = vmatprep.subr.bf16.mxu0 0
    %4942 = vmatpush1.bf16.msra.mxu0 0
    %4943 = vmatprep.subr.bf16.mxu0 0
    %4944 = vmatpush1.bf16.msra.mxu0 0
    %4945 = vmatprep.subr.bf16.mxu0 0
    %4946 = vmatpush1.bf16.msra.mxu0 0
    %4947 = vmatprep.subr.bf16.mxu0 0
    %4948 = vmatpush1.bf16.msra.mxu0 0
    %4949 = vmatprep.subr.bf16.mxu0 0
    %4950 = vmatpush1.bf16.msra.mxu0 0
    %4951 = vmatprep.subr.bf16.mxu0 0
    %4952 = vmatpush1.bf16.msra.mxu0 0
    %4953 = vmatprep.subr.bf16.mxu0 0
    %4954 = vmatpush1.bf16.msra.mxu0 0
    %4955 = vmatprep.subr.bf16.mxu0 0
    %4956 = vmatpush1.bf16.msra.mxu0 0
    %4957 = vmatprep.subr.bf16.mxu0 0
    %4958 = vmatpush1.bf16.msra.mxu0 0
    %4959 = vmatprep.subr.bf16.mxu0 0
    %4960 = vmatpush1.bf16.msra.mxu0 0
    %4961 = vmatprep.mubr.bf16.mxu0 0
    %4962 = vmatmul.mubr.bf16.gmra.mrb[0].mxu0 %v4601
    %v4963 = vpop.f32.mrb[0].mxu0
    %v4964 = vadd.f32 %v4924, %v4963
    %v4965 = vpop.f32.mrb[0].mxu0
    %v4966 = vpop.f32.mrb[0].mxu0
    %v4967 = vpop.f32.mrb[0].mxu0
    %4968 = vdwg.mxu0
    %v4973 = vcombine.low %v4720, %v4722
    %v4974 = vcombine.low %v4843, %v4845
    %4977 = vst [vmem:[#allocation7] sm:$0x77] %v4973
    %4978 = vst [vmem:[#allocation7 + $0x8] sm:$0x77] %v4974
    %vm4979 = vcmask 813056
    %4980 = vst.msk [vmem:[#allocation7 + $0x10] sm:$0x7] %vm4979, %v4964
    // Predicated region
    $region34: #{tpu_custom_call.1} parent=1 // pred_check
      _
    $region35: #{tpu_custom_call.1} parent=1 // pred_check_branch
      %4982 = sbr.rel (0) target = $region37
    $region36: #{tpu_custom_call.1} parent=1 // pred_region
      %s4984 = ssub.s32 320, 320
      %4985 = vsyncadd [#allocation6], %s4984
      %s4987 = sshll.u32 [#allocation7], 4
      %s4988 = int_to_ptr.vmem [resolvable:$true] %s4987
      %4990 = dma.vmem_to_hbm [thread:$0]  %s4988, 320, %s7, [#allocation6]
    $region37: #{tpu_custom_call.1} parent=1 // pred_fallthru
      _
    // Predicated region
    $region38: #{tpu_custom_call.1} parent=1 // pred_check
      _
    $region39: #{tpu_custom_call.1} parent=1 // pred_check_branch
      %4992 = sbr.rel (0) target = $region41
    $region40: #{tpu_custom_call.1} parent=1 // pred_region
      %4993 = dma.done [#allocation6], 320
    $region41: #{tpu_custom_call.1} parent=1 // pred_fallthru
      _
    %4994 = vsyncpa [#allocation5], 1
    %4995 = vsyncpa [#allocation6], 1

</llo_original>
